<compile_context>
chip_gen: v7x
topology: tpu7x:2x2x1
jax: 0.10.0
libtpu: 0.0.40
codegen_flags: <defaults>
</compile_context>

<pallas_src>
import functools

import jax
import jax.numpy as jnp
from jax.experimental import pallas as pl
from jax.experimental.pallas import tpu as pltpu


_VMEM = pl.BlockSpec(memory_space=pltpu.MemorySpace.VMEM)
_BN_EPS = 1e-5


# ----------------------------------------------------------------------------
# Kernel 1: stem conv (4x4, stride 2, pad 1) + bias + ReLU, whole batch,
#           one deep-K matmul.
# ----------------------------------------------------------------------------

def _stem_conv_kernel(x_ref, w_ref, b_ref, o_ref, *, taps_off, rows,
                      apply_relu):
    """x_ref : [P, N, R, Cin] bf16   flattened stride-2 phase images (padded)
       w_ref : [T*Cin, Cout]  bf16   taps stacked along K
       b_ref : [1, Cout]      f32
       o_ref : [N, rows, Cout]bf16   rows = Ho*win (garbage cols kept; wrapper
                                     strips them)."""
    P, N, R, Cin = x_ref.shape

    per_img = []
    for n in range(N):
        cols = [x_ref[p, n, off:off + rows, :] for (p, off) in taps_off]
        per_img.append(jnp.concatenate(cols, axis=1))      # [rows, T*Cin]
    patches = jnp.concatenate(per_img, axis=0)              # [N*rows, T*Cin]

    acc = jnp.dot(patches, w_ref[...], preferred_element_type=jnp.float32)
    acc = acc + b_ref[...]
    if apply_relu:
        acc = jnp.maximum(acc, 0.0)

    # single lane-dense slab store
    o_ref[...] = acc.astype(o_ref.dtype).reshape(o_ref.shape)


# ----------------------------------------------------------------------------
# Kernel 2: conv_3 (3x3, pad 1) + ReLU fused with the full ResStack
#           (3x3 conv -> BN -> ReLU -> 1x1 conv -> BN -> +x -> ReLU) x L.
#           Single block (full-batch BN stats); padded activations live in a
#           VMEM scratch buffer, one matmul per conv over the whole batch.
# ----------------------------------------------------------------------------

def _conv3_res_stack_kernel(x_ref, w3_ref, b3_ref, w1_ref, g1_ref, b1_ref,
                            w2_ref, g2_ref, b2_ref, o_ref, cur_ref, *,
                            H, W, num_layers, eps):
    """x_ref : [N, R, C]      bf16  padded flat input (zeros at pad/slack rows)
       w3_ref: [9*C, C]       bf16  ;  b3_ref: [1, C] f32
       w1_ref: [L, 9*C, Ch]   bf16  ;  g1/b1 : [L, 1, Ch] f32
       w2_ref: [L, Ch, C]     bf16  ;  g2/b2 : [L, 1, C]  f32
       o_ref : [N, rows, C]   f32   (rows = H*(W+2); wrapper strips garbage)
       cur_ref (scratch): [N, R, C] bf16 padded activation for the next stage.
    """
    N, rows, C = o_ref.shape
    R = x_ref.shape[1]
    Wp = W + 2
    M = N * rows
    cnt = float(N * H * W)

    # mask zeroing the (Wp - W) wrap-around garbage columns of each image row
    col = jax.lax.broadcasted_iota(jnp.int32, (M, 1), 0) % Wp
    valid = (col < W).astype(jnp.float32)

    def patches3x3(src):                       # -> [M, 9*C] bf16
        per_img = []
        for n in range(N):
            cols = [src[n, i * Wp + j: i * Wp + j + rows, :]
                    for i in range(3) for j in range(3)]
            per_img.append(jnp.concatenate(cols, axis=1))
        return jnp.concatenate(per_img, axis=0)

    def write_padded(flat_f32):                # [M, C] f32 -> cur_ref interior
        flat = (flat_f32 * valid).astype(jnp.bfloat16)
        for n in range(N):
            cur_ref[n, Wp + 1: Wp + 1 + rows, :] = \
                flat[n * rows:(n + 1) * rows, :]

    def batch_stats(v):                        # training-mode BN statistics
        vm = v * valid
        mean = jnp.sum(vm, axis=0, keepdims=True) / cnt
        var = jnp.maximum(jnp.sum(vm * v, axis=0, keepdims=True) / cnt
                          - mean * mean, 0.0)
        return mean, var

    # pad ring + slack rows stay zero for every stage
    cur_ref[...] = jnp.zeros_like(cur_ref)

    # ---- conv_3 + bias + ReLU (one [M, 9C] x [9C, C] matmul) ----
    out = jnp.dot(patches3x3(x_ref), w3_ref[...],
                  preferred_element_type=jnp.float32)
    out = jnp.maximum(out + b3_ref[...], 0.0)            # [M, C] f32

    # ---- ResStack ----
    for l in range(num_layers):
        x_in = out                                        # block input (f32)
        write_padded(x_in)                                # padded bf16 copy

        y = jnp.dot(patches3x3(cur_ref), w1_ref[l],
                    preferred_element_type=jnp.float32)   # 3x3, [M, Ch]
        mean1, var1 = batch_stats(y)
        scale1 = g1_ref[l] * jax.lax.rsqrt(var1 + eps)
        shift1 = b1_ref[l] - mean1 * scale1
        h = jnp.maximum(y * scale1 + shift1, 0.0)         # BN + ReLU

        z = jnp.dot(h.astype(jnp.bfloat16), w2_ref[l],
                    preferred_element_type=jnp.float32)   # 1x1, [M, C]
        mean2, var2 = batch_stats(z)
        scale2 = g2_ref[l] * jax.lax.rsqrt(var2 + eps)
        shift2 = b2_ref[l] - mean2 * scale2

        out = jnp.maximum(z * scale2 + shift2 + x_in, 0.0)  # BN + res + ReLU

    # single lane-dense slab store; garbage columns stripped by the wrapper
    o_ref[...] = out.reshape(N, rows, C)


# ----------------------------------------------------------------------------
# Wrappers (layout plumbing only; all compute in the Pallas kernels)
# ----------------------------------------------------------------------------

def stem_conv(x_nhwc, w_oihw, bias):
    """4x4 / stride-2 / pad-1 conv + bias + ReLU.  NHWC in, NHWC bf16 out."""
    N, H, W, Cin = x_nhwc.shape
    Cout, _, KH, KW = w_oihw.shape
    stride, pad = 2, 1
    assert KH % 2 == 0 and KW % 2 == 0
    Ho = (H + 2 * pad - KH) // stride + 1
    Wo = (W + 2 * pad - KW) // stride + 1
    kh2, kw2 = KH // 2, KW // 2

    # zero-pad, make padded spatial dims even, split into 2x2 stride-1 phases
    xp = jnp.pad(x_nhwc, ((0, 0), (pad, pad), (pad, pad), (0, 0)))
    xp = jnp.pad(xp, ((0, 0), (0, xp.shape[1] % 2),
                      (0, xp.shape[2] % 2), (0, 0)))
    phases = jnp.stack([xp[:, pi::2, pj::2, :]
                        for pi in range(2) for pj in range(2)], axis=0)
    P, _, Hin, win, _ = phases.shape
    phases = phases.reshape(P, N, Hin * win, Cin)
    if kw2 > 1:                                   # slack rows keep taps in-bounds
        phases = jnp.pad(phases, ((0, 0), (0, 0), (0, kw2 - 1), (0, 0)))
    rows = Ho * win

    # taps stacked along K in the same order the kernel concatenates patches
    w_t = jnp.transpose(w_oihw, (2, 3, 1, 0))                 # [KH, KW, Cin, Cout]
    taps = jnp.stack([w_t[2 * oi + pi, 2 * oj + pj]
                      for pi in range(2) for pj in range(2)
                      for oi in range(kh2) for oj in range(kw2)], axis=0)
    w_flat = taps.reshape(P * kh2 * kw2 * Cin, Cout)
    taps_off = tuple((p, i * win + j) for p in range(P)
                     for i in range(kh2) for j in range(kw2))

    kern = functools.partial(_stem_conv_kernel, taps_off=taps_off,
                             rows=rows, apply_relu=True)
    out = pl.pallas_call(
        kern,
        out_shape=jax.ShapeDtypeStruct((N, rows, Cout), jnp.bfloat16),
        in_specs=[_VMEM, _VMEM, _VMEM],
        out_specs=_VMEM,
    )(phases.astype(jnp.bfloat16), w_flat.astype(jnp.bfloat16),
      bias.reshape(1, Cout).astype(jnp.float32))

    # wrapper-side de-garbage of the lane-dense slab
    return out.reshape(N, Ho, win, Cout)[:, :, :Wo, :]


def conv3_res_stack(x_nhwc, params, *, eps=_BN_EPS):
    """conv_3 + ReLU + ResStack, fully fused in one pallas_call."""
    N, H, W, C = x_nhwc.shape
    res = params["res"]
    L = len(res)
    Ch = res[0]["w1"].shape[0] if L else 1
    Hp, Wp = H + 2, W + 2
    rows = H * Wp
    R = Hp * Wp + 2                  # +2 slack rows keep 3x3 tap slices in-bounds

    xp = jnp.pad(x_nhwc, ((0, 0), (1, 1), (1, 1), (0, 0)))
    xflat = jnp.pad(xp.reshape(N, Hp * Wp, C),
                    ((0, 0), (0, R - Hp * Wp), (0, 0))).astype(jnp.bfloat16)

    w3 = jnp.transpose(params["conv3_w"], (2, 3, 1, 0)).reshape(9 * C, C)
    b3 = params["conv3_b"].reshape(1, C)

    if L:
        w1 = jnp.stack([jnp.transpose(b["w1"], (2, 3, 1, 0)).reshape(9 * C, Ch)
                        for b in res])
        g1 = jnp.stack([b["bn1_g"].reshape(1, Ch) for b in res])
        b1 = jnp.stack([b["bn1_b"].reshape(1, Ch) for b in res])
        w2 = jnp.stack([jnp.transpose(b["w2"], (2, 3, 1, 0)).reshape(Ch, C)
                        for b in res])
        g2 = jnp.stack([b["bn2_g"].reshape(1, C) for b in res])
        b2 = jnp.stack([b["bn2_b"].reshape(1, C) for b in res])
    else:  # dummies; never read when num_layers == 0
        w1 = jnp.zeros((1, 9 * C, Ch)); g1 = jnp.zeros((1, 1, Ch))
        b1 = jnp.zeros((1, 1, Ch));     w2 = jnp.zeros((1, Ch, C))
        g2 = jnp.zeros((1, 1, C));      b2 = jnp.zeros((1, 1, C))

    kern = functools.partial(_conv3_res_stack_kernel, H=H, W=W,
                             num_layers=L, eps=eps)
    out = pl.pallas_call(
        kern,
        out_shape=jax.ShapeDtypeStruct((N, rows, C), jnp.float32),
        in_specs=[_VMEM] * 9,
        out_specs=_VMEM,
        scratch_shapes=[pltpu.VMEM((N, R, C), jnp.bfloat16)],
    )(xflat,
      w3.astype(jnp.bfloat16), b3.astype(jnp.float32),
      w1.astype(jnp.bfloat16), g1.astype(jnp.float32), b1.astype(jnp.float32),
      w2.astype(jnp.bfloat16), g2.astype(jnp.float32), b2.astype(jnp.float32))

    return out.reshape(N, H, Wp, C)[:, :, :W, :]


# ----------------------------------------------------------------------------
# Parameters (deterministic synthetic init)
# ----------------------------------------------------------------------------

def init_params(key, in_channels, num_hiddens, num_res_hiddens, num_res_layers):
    def nxt():
        nonlocal key
        key, sub = jax.random.split(key)
        return sub

    def conv_w(cout, cin, k):
        return 0.1 * jax.random.normal(nxt(), (cout, cin, k, k), jnp.float32)

    def vec(c):
        return 0.1 * jax.random.normal(nxt(), (c,), jnp.float32)

    p = {
        "conv1_w": conv_w(num_hiddens // 2, in_channels, 4),
        "conv1_b": vec(num_hiddens // 2),
        "conv2_w": conv_w(num_hiddens, num_hiddens // 2, 4),
        "conv2_b": vec(num_hiddens),
        "conv3_w": conv_w(num_hiddens, num_hiddens, 3),
        "conv3_b": vec(num_hiddens),
        "res": [],
    }
    for _ in range(num_res_layers):
        blk = {
            "w1": conv_w(num_res_hiddens, num_hiddens, 3),     # 3x3, no bias
            "bn1_g": 1.0 + 0.1 * jax.random.normal(
                nxt(), (num_res_hiddens,), jnp.float32),
            "bn1_b": vec(num_res_hiddens),
            "w2": conv_w(num_hiddens, num_res_hiddens, 1),     # 1x1, no bias
            "bn2_g": 1.0 + 0.1 * jax.random.normal(
                nxt(), (num_hiddens,), jnp.float32),
            "bn2_b": vec(num_hiddens),
        }
        p["res"].append(blk)
    return p


# ----------------------------------------------------------------------------
# Forward pass (matches ResEncoder.forward)
# ----------------------------------------------------------------------------

def res_encoder_forward(params, x_nchw):
    x = jnp.transpose(x_nchw, (0, 2, 3, 1)).astype(jnp.float32)   # NCHW -> NHWC
    x = stem_conv(x, params["conv1_w"], params["conv1_b"])        # conv1+ReLU
    x = stem_conv(x, params["conv2_w"], params["conv2_b"])        # conv2+ReLU
    x = conv3_res_stack(x, params)                                # conv3+ReLU+ResStack
    return jnp.transpose(x, (0, 3, 1, 2))                         # -> NCHW


# ----------------------------------------------------------------------------

if __name__ == "__main__":
    in_channels = 4
    num_hiddens = 32
    num_res_hiddens = 16
    num_res_layers = 2

    key = jax.random.PRNGKey(0)
    key, pkey, xkey = jax.random.split(key, 3)
    params = init_params(pkey, in_channels, num_hiddens, num_res_hiddens,
                         num_res_layers)
    x = jax.random.normal(xkey, (2, in_channels, 16, 16), jnp.float32)

    out = jax.jit(res_encoder_forward)(params, x)
    out = jax.block_until_ready(out)
    assert out.shape == (2, num_hiddens, 4, 4), out.shape
    assert bool(jnp.all(jnp.isfinite(out)))
    print("KERNEL_OK")
</pallas_src>

<mosaic_0001>
module attributes {stable_mosaic.version = 11 : i64} {
  func.func @_stem_conv_kernel(%arg0: memref<4x2x82x4xbf16, #tpu.memory_space<vmem>>, %arg1: memref<64x16xbf16, #tpu.memory_space<vmem>>, %arg2: memref<1x16xf32, #tpu.memory_space<vmem>>, %arg3: memref<2x72x16xbf16, #tpu.memory_space<vmem>>) attributes {dimension_semantics = [], scalar_prefetch = 0 : i64, scratch_operands = 0 : i64, tpu.core_type = #tpu.core_type<tc>} {
    %c0 = arith.constant 0 : index
    %c0_0 = arith.constant 0 : index
    %c0_1 = arith.constant 0 : index
    %c0_2 = arith.constant 0 : index
    %0 = vector.load %arg0[%c0, %c0_0, %c0_1, %c0_2] : memref<4x2x82x4xbf16, #tpu.memory_space<vmem>>, vector<1x1x72x4xbf16>
    %1 = vector.shape_cast %0 : vector<1x1x72x4xbf16> to vector<72x4xbf16>
    %c0_3 = arith.constant 0 : index
    %c0_4 = arith.constant 0 : index
    %c1 = arith.constant 1 : index
    %c0_5 = arith.constant 0 : index
    %2 = vector.load %arg0[%c0_3, %c0_4, %c1, %c0_5] : memref<4x2x82x4xbf16, #tpu.memory_space<vmem>>, vector<1x1x72x4xbf16>
    %3 = vector.shape_cast %2 : vector<1x1x72x4xbf16> to vector<72x4xbf16>
    %c0_6 = arith.constant 0 : index
    %c0_7 = arith.constant 0 : index
    %c9 = arith.constant 9 : index
    %c0_8 = arith.constant 0 : index
    %4 = vector.load %arg0[%c0_6, %c0_7, %c9, %c0_8] : memref<4x2x82x4xbf16, #tpu.memory_space<vmem>>, vector<1x1x72x4xbf16>
    %5 = vector.shape_cast %4 : vector<1x1x72x4xbf16> to vector<72x4xbf16>
    %c0_9 = arith.constant 0 : index
    %c0_10 = arith.constant 0 : index
    %c10 = arith.constant 10 : index
    %c0_11 = arith.constant 0 : index
    %6 = vector.load %arg0[%c0_9, %c0_10, %c10, %c0_11] : memref<4x2x82x4xbf16, #tpu.memory_space<vmem>>, vector<1x1x72x4xbf16>
    %7 = vector.shape_cast %6 : vector<1x1x72x4xbf16> to vector<72x4xbf16>
    %c1_12 = arith.constant 1 : index
    %c0_13 = arith.constant 0 : index
    %c0_14 = arith.constant 0 : index
    %c0_15 = arith.constant 0 : index
    %8 = vector.load %arg0[%c1_12, %c0_13, %c0_14, %c0_15] : memref<4x2x82x4xbf16, #tpu.memory_space<vmem>>, vector<1x1x72x4xbf16>
    %9 = vector.shape_cast %8 : vector<1x1x72x4xbf16> to vector<72x4xbf16>
    %c1_16 = arith.constant 1 : index
    %c0_17 = arith.constant 0 : index
    %c1_18 = arith.constant 1 : index
    %c0_19 = arith.constant 0 : index
    %10 = vector.load %arg0[%c1_16, %c0_17, %c1_18, %c0_19] : memref<4x2x82x4xbf16, #tpu.memory_space<vmem>>, vector<1x1x72x4xbf16>
    %11 = vector.shape_cast %10 : vector<1x1x72x4xbf16> to vector<72x4xbf16>
    %c1_20 = arith.constant 1 : index
    %c0_21 = arith.constant 0 : index
    %c9_22 = arith.constant 9 : index
    %c0_23 = arith.constant 0 : index
    %12 = vector.load %arg0[%c1_20, %c0_21, %c9_22, %c0_23] : memref<4x2x82x4xbf16, #tpu.memory_space<vmem>>, vector<1x1x72x4xbf16>
    %13 = vector.shape_cast %12 : vector<1x1x72x4xbf16> to vector<72x4xbf16>
    %c1_24 = arith.constant 1 : index
    %c0_25 = arith.constant 0 : index
    %c10_26 = arith.constant 10 : index
    %c0_27 = arith.constant 0 : index
    %14 = vector.load %arg0[%c1_24, %c0_25, %c10_26, %c0_27] : memref<4x2x82x4xbf16, #tpu.memory_space<vmem>>, vector<1x1x72x4xbf16>
    %15 = vector.shape_cast %14 : vector<1x1x72x4xbf16> to vector<72x4xbf16>
    %c2 = arith.constant 2 : index
    %c0_28 = arith.constant 0 : index
    %c0_29 = arith.constant 0 : index
    %c0_30 = arith.constant 0 : index
    %16 = vector.load %arg0[%c2, %c0_28, %c0_29, %c0_30] : memref<4x2x82x4xbf16, #tpu.memory_space<vmem>>, vector<1x1x72x4xbf16>
    %17 = vector.shape_cast %16 : vector<1x1x72x4xbf16> to vector<72x4xbf16>
    %c2_31 = arith.constant 2 : index
    %c0_32 = arith.constant 0 : index
    %c1_33 = arith.constant 1 : index
    %c0_34 = arith.constant 0 : index
    %18 = vector.load %arg0[%c2_31, %c0_32, %c1_33, %c0_34] : memref<4x2x82x4xbf16, #tpu.memory_space<vmem>>, vector<1x1x72x4xbf16>
    %19 = vector.shape_cast %18 : vector<1x1x72x4xbf16> to vector<72x4xbf16>
    %c2_35 = arith.constant 2 : index
    %c0_36 = arith.constant 0 : index
    %c9_37 = arith.constant 9 : index
    %c0_38 = arith.constant 0 : index
    %20 = vector.load %arg0[%c2_35, %c0_36, %c9_37, %c0_38] : memref<4x2x82x4xbf16, #tpu.memory_space<vmem>>, vector<1x1x72x4xbf16>
    %21 = vector.shape_cast %20 : vector<1x1x72x4xbf16> to vector<72x4xbf16>
    %c2_39 = arith.constant 2 : index
    %c0_40 = arith.constant 0 : index
    %c10_41 = arith.constant 10 : index
    %c0_42 = arith.constant 0 : index
    %22 = vector.load %arg0[%c2_39, %c0_40, %c10_41, %c0_42] : memref<4x2x82x4xbf16, #tpu.memory_space<vmem>>, vector<1x1x72x4xbf16>
    %23 = vector.shape_cast %22 : vector<1x1x72x4xbf16> to vector<72x4xbf16>
    %c3 = arith.constant 3 : index
    %c0_43 = arith.constant 0 : index
    %c0_44 = arith.constant 0 : index
    %c0_45 = arith.constant 0 : index
    %24 = vector.load %arg0[%c3, %c0_43, %c0_44, %c0_45] : memref<4x2x82x4xbf16, #tpu.memory_space<vmem>>, vector<1x1x72x4xbf16>
    %25 = vector.shape_cast %24 : vector<1x1x72x4xbf16> to vector<72x4xbf16>
    %c3_46 = arith.constant 3 : index
    %c0_47 = arith.constant 0 : index
    %c1_48 = arith.constant 1 : index
    %c0_49 = arith.constant 0 : index
    %26 = vector.load %arg0[%c3_46, %c0_47, %c1_48, %c0_49] : memref<4x2x82x4xbf16, #tpu.memory_space<vmem>>, vector<1x1x72x4xbf16>
    %27 = vector.shape_cast %26 : vector<1x1x72x4xbf16> to vector<72x4xbf16>
    %c3_50 = arith.constant 3 : index
    %c0_51 = arith.constant 0 : index
    %c9_52 = arith.constant 9 : index
    %c0_53 = arith.constant 0 : index
    %28 = vector.load %arg0[%c3_50, %c0_51, %c9_52, %c0_53] : memref<4x2x82x4xbf16, #tpu.memory_space<vmem>>, vector<1x1x72x4xbf16>
    %29 = vector.shape_cast %28 : vector<1x1x72x4xbf16> to vector<72x4xbf16>
    %c3_54 = arith.constant 3 : index
    %c0_55 = arith.constant 0 : index
    %c10_56 = arith.constant 10 : index
    %c0_57 = arith.constant 0 : index
    %30 = vector.load %arg0[%c3_54, %c0_55, %c10_56, %c0_57] : memref<4x2x82x4xbf16, #tpu.memory_space<vmem>>, vector<1x1x72x4xbf16>
    %31 = vector.shape_cast %30 : vector<1x1x72x4xbf16> to vector<72x4xbf16>
    %32 = tpu.concatenate %1, %3, %5, %7, %9, %11, %13, %15, %17, %19, %21, %23, %25, %27, %29, %31 in 1 : vector<72x4xbf16>, vector<72x4xbf16>, vector<72x4xbf16>, vector<72x4xbf16>, vector<72x4xbf16>, vector<72x4xbf16>, vector<72x4xbf16>, vector<72x4xbf16>, vector<72x4xbf16>, vector<72x4xbf16>, vector<72x4xbf16>, vector<72x4xbf16>, vector<72x4xbf16>, vector<72x4xbf16>, vector<72x4xbf16>, vector<72x4xbf16> -> vector<72x64xbf16>
    %c0_58 = arith.constant 0 : index
    %c1_59 = arith.constant 1 : index
    %c0_60 = arith.constant 0 : index
    %c0_61 = arith.constant 0 : index
    %33 = vector.load %arg0[%c0_58, %c1_59, %c0_60, %c0_61] : memref<4x2x82x4xbf16, #tpu.memory_space<vmem>>, vector<1x1x72x4xbf16>
    %34 = vector.shape_cast %33 : vector<1x1x72x4xbf16> to vector<72x4xbf16>
    %c0_62 = arith.constant 0 : index
    %c1_63 = arith.constant 1 : index
    %c1_64 = arith.constant 1 : index
    %c0_65 = arith.constant 0 : index
    %35 = vector.load %arg0[%c0_62, %c1_63, %c1_64, %c0_65] : memref<4x2x82x4xbf16, #tpu.memory_space<vmem>>, vector<1x1x72x4xbf16>
    %36 = vector.shape_cast %35 : vector<1x1x72x4xbf16> to vector<72x4xbf16>
    %c0_66 = arith.constant 0 : index
    %c1_67 = arith.constant 1 : index
    %c9_68 = arith.constant 9 : index
    %c0_69 = arith.constant 0 : index
    %37 = vector.load %arg0[%c0_66, %c1_67, %c9_68, %c0_69] : memref<4x2x82x4xbf16, #tpu.memory_space<vmem>>, vector<1x1x72x4xbf16>
    %38 = vector.shape_cast %37 : vector<1x1x72x4xbf16> to vector<72x4xbf16>
    %c0_70 = arith.constant 0 : index
    %c1_71 = arith.constant 1 : index
    %c10_72 = arith.constant 10 : index
    %c0_73 = arith.constant 0 : index
    %39 = vector.load %arg0[%c0_70, %c1_71, %c10_72, %c0_73] : memref<4x2x82x4xbf16, #tpu.memory_space<vmem>>, vector<1x1x72x4xbf16>
    %40 = vector.shape_cast %39 : vector<1x1x72x4xbf16> to vector<72x4xbf16>
    %c1_74 = arith.constant 1 : index
    %c1_75 = arith.constant 1 : index
    %c0_76 = arith.constant 0 : index
    %c0_77 = arith.constant 0 : index
    %41 = vector.load %arg0[%c1_74, %c1_75, %c0_76, %c0_77] : memref<4x2x82x4xbf16, #tpu.memory_space<vmem>>, vector<1x1x72x4xbf16>
    %42 = vector.shape_cast %41 : vector<1x1x72x4xbf16> to vector<72x4xbf16>
    %c1_78 = arith.constant 1 : index
    %c1_79 = arith.constant 1 : index
    %c1_80 = arith.constant 1 : index
    %c0_81 = arith.constant 0 : index
    %43 = vector.load %arg0[%c1_78, %c1_79, %c1_80, %c0_81] : memref<4x2x82x4xbf16, #tpu.memory_space<vmem>>, vector<1x1x72x4xbf16>
    %44 = vector.shape_cast %43 : vector<1x1x72x4xbf16> to vector<72x4xbf16>
    %c1_82 = arith.constant 1 : index
    %c1_83 = arith.constant 1 : index
    %c9_84 = arith.constant 9 : index
    %c0_85 = arith.constant 0 : index
    %45 = vector.load %arg0[%c1_82, %c1_83, %c9_84, %c0_85] : memref<4x2x82x4xbf16, #tpu.memory_space<vmem>>, vector<1x1x72x4xbf16>
    %46 = vector.shape_cast %45 : vector<1x1x72x4xbf16> to vector<72x4xbf16>
    %c1_86 = arith.constant 1 : index
    %c1_87 = arith.constant 1 : index
    %c10_88 = arith.constant 10 : index
    %c0_89 = arith.constant 0 : index
    %47 = vector.load %arg0[%c1_86, %c1_87, %c10_88, %c0_89] : memref<4x2x82x4xbf16, #tpu.memory_space<vmem>>, vector<1x1x72x4xbf16>
    %48 = vector.shape_cast %47 : vector<1x1x72x4xbf16> to vector<72x4xbf16>
    %c2_90 = arith.constant 2 : index
    %c1_91 = arith.constant 1 : index
    %c0_92 = arith.constant 0 : index
    %c0_93 = arith.constant 0 : index
    %49 = vector.load %arg0[%c2_90, %c1_91, %c0_92, %c0_93] : memref<4x2x82x4xbf16, #tpu.memory_space<vmem>>, vector<1x1x72x4xbf16>
    %50 = vector.shape_cast %49 : vector<1x1x72x4xbf16> to vector<72x4xbf16>
    %c2_94 = arith.constant 2 : index
    %c1_95 = arith.constant 1 : index
    %c1_96 = arith.constant 1 : index
    %c0_97 = arith.constant 0 : index
    %51 = vector.load %arg0[%c2_94, %c1_95, %c1_96, %c0_97] : memref<4x2x82x4xbf16, #tpu.memory_space<vmem>>, vector<1x1x72x4xbf16>
    %52 = vector.shape_cast %51 : vector<1x1x72x4xbf16> to vector<72x4xbf16>
    %c2_98 = arith.constant 2 : index
    %c1_99 = arith.constant 1 : index
    %c9_100 = arith.constant 9 : index
    %c0_101 = arith.constant 0 : index
    %53 = vector.load %arg0[%c2_98, %c1_99, %c9_100, %c0_101] : memref<4x2x82x4xbf16, #tpu.memory_space<vmem>>, vector<1x1x72x4xbf16>
    %54 = vector.shape_cast %53 : vector<1x1x72x4xbf16> to vector<72x4xbf16>
    %c2_102 = arith.constant 2 : index
    %c1_103 = arith.constant 1 : index
    %c10_104 = arith.constant 10 : index
    %c0_105 = arith.constant 0 : index
    %55 = vector.load %arg0[%c2_102, %c1_103, %c10_104, %c0_105] : memref<4x2x82x4xbf16, #tpu.memory_space<vmem>>, vector<1x1x72x4xbf16>
    %56 = vector.shape_cast %55 : vector<1x1x72x4xbf16> to vector<72x4xbf16>
    %c3_106 = arith.constant 3 : index
    %c1_107 = arith.constant 1 : index
    %c0_108 = arith.constant 0 : index
    %c0_109 = arith.constant 0 : index
    %57 = vector.load %arg0[%c3_106, %c1_107, %c0_108, %c0_109] : memref<4x2x82x4xbf16, #tpu.memory_space<vmem>>, vector<1x1x72x4xbf16>
    %58 = vector.shape_cast %57 : vector<1x1x72x4xbf16> to vector<72x4xbf16>
    %c3_110 = arith.constant 3 : index
    %c1_111 = arith.constant 1 : index
    %c1_112 = arith.constant 1 : index
    %c0_113 = arith.constant 0 : index
    %59 = vector.load %arg0[%c3_110, %c1_111, %c1_112, %c0_113] : memref<4x2x82x4xbf16, #tpu.memory_space<vmem>>, vector<1x1x72x4xbf16>
    %60 = vector.shape_cast %59 : vector<1x1x72x4xbf16> to vector<72x4xbf16>
    %c3_114 = arith.constant 3 : index
    %c1_115 = arith.constant 1 : index
    %c9_116 = arith.constant 9 : index
    %c0_117 = arith.constant 0 : index
    %61 = vector.load %arg0[%c3_114, %c1_115, %c9_116, %c0_117] : memref<4x2x82x4xbf16, #tpu.memory_space<vmem>>, vector<1x1x72x4xbf16>
    %62 = vector.shape_cast %61 : vector<1x1x72x4xbf16> to vector<72x4xbf16>
    %c3_118 = arith.constant 3 : index
    %c1_119 = arith.constant 1 : index
    %c10_120 = arith.constant 10 : index
    %c0_121 = arith.constant 0 : index
    %63 = vector.load %arg0[%c3_118, %c1_119, %c10_120, %c0_121] : memref<4x2x82x4xbf16, #tpu.memory_space<vmem>>, vector<1x1x72x4xbf16>
    %64 = vector.shape_cast %63 : vector<1x1x72x4xbf16> to vector<72x4xbf16>
    %65 = tpu.concatenate %34, %36, %38, %40, %42, %44, %46, %48, %50, %52, %54, %56, %58, %60, %62, %64 in 1 : vector<72x4xbf16>, vector<72x4xbf16>, vector<72x4xbf16>, vector<72x4xbf16>, vector<72x4xbf16>, vector<72x4xbf16>, vector<72x4xbf16>, vector<72x4xbf16>, vector<72x4xbf16>, vector<72x4xbf16>, vector<72x4xbf16>, vector<72x4xbf16>, vector<72x4xbf16>, vector<72x4xbf16>, vector<72x4xbf16>, vector<72x4xbf16> -> vector<72x64xbf16>
    %66 = tpu.concatenate %32, %65 in 0 : vector<72x64xbf16>, vector<72x64xbf16> -> vector<144x64xbf16>
    %c0_122 = arith.constant 0 : index
    %c0_123 = arith.constant 0 : index
    %67 = vector.load %arg1[%c0_122, %c0_123] : memref<64x16xbf16, #tpu.memory_space<vmem>>, vector<64x16xbf16>
    %cst = arith.constant dense<0.000000e+00> : vector<144x16xf32>
    %68 = tpu.matmul %66, %67, %cst {dimension_numbers = #tpu.dot_dimension_numbers<[1], [0], [0], [1], [0, 0, 1, 1], [], []>} : vector<144x64xbf16>, vector<64x16xbf16>, vector<144x16xf32> -> vector<144x16xf32>
    %c0_124 = arith.constant 0 : index
    %c0_125 = arith.constant 0 : index
    %69 = vector.load %arg2[%c0_124, %c0_125] : memref<1x16xf32, #tpu.memory_space<vmem>>, vector<1x16xf32>
    %70 = vector.broadcast %69 : vector<1x16xf32> to vector<144x16xf32>
    %71 = arith.addf %68, %70 : vector<144x16xf32>
    %cst_126 = arith.constant 0.000000e+00 : f32
    %72 = vector.broadcast %cst_126 : f32 to vector<144x16xf32>
    %73 = arith.maximumf %71, %72 : vector<144x16xf32>
    %74 = arith.truncf %73 : vector<144x16xf32> to vector<144x16xbf16>
    %75 = vector.shape_cast %74 : vector<144x16xbf16> to vector<2x72x16xbf16>
    %c0_127 = arith.constant 0 : index
    %c0_128 = arith.constant 0 : index
    %c0_129 = arith.constant 0 : index
    %76 = vector.load %arg3[%c0_127, %c0_128, %c0_129] : memref<2x72x16xbf16, #tpu.memory_space<vmem>>, vector<2x72x16xbf16>
    tpu.vector_store %arg3[%c0_127, %c0_128, %c0_129], %75 {strides = array<i32>} : memref<2x72x16xbf16, #tpu.memory_space<vmem>>, vector<2x72x16xbf16>,
    return
  }
}

module attributes {stable_mosaic.version = 11 : i64} {
  func.func @_stem_conv_kernel(%arg0: memref<4x2x26x16xbf16, #tpu.memory_space<vmem>>, %arg1: memref<256x32xbf16, #tpu.memory_space<vmem>>, %arg2: memref<1x32xf32, #tpu.memory_space<vmem>>, %arg3: memref<2x20x32xbf16, #tpu.memory_space<vmem>>) attributes {dimension_semantics = [], scalar_prefetch = 0 : i64, scratch_operands = 0 : i64, tpu.core_type = #tpu.core_type<tc>} {
    %c0 = arith.constant 0 : index
    %c0_0 = arith.constant 0 : index
    %c0_1 = arith.constant 0 : index
    %c0_2 = arith.constant 0 : index
    %0 = vector.load %arg0[%c0, %c0_0, %c0_1, %c0_2] : memref<4x2x26x16xbf16, #tpu.memory_space<vmem>>, vector<1x1x20x16xbf16>
    %1 = vector.shape_cast %0 : vector<1x1x20x16xbf16> to vector<20x16xbf16>
    %c0_3 = arith.constant 0 : index
    %c0_4 = arith.constant 0 : index
    %c1 = arith.constant 1 : index
    %c0_5 = arith.constant 0 : index
    %2 = vector.load %arg0[%c0_3, %c0_4, %c1, %c0_5] : memref<4x2x26x16xbf16, #tpu.memory_space<vmem>>, vector<1x1x20x16xbf16>
    %3 = vector.shape_cast %2 : vector<1x1x20x16xbf16> to vector<20x16xbf16>
    %c0_6 = arith.constant 0 : index
    %c0_7 = arith.constant 0 : index
    %c5 = arith.constant 5 : index
    %c0_8 = arith.constant 0 : index
    %4 = vector.load %arg0[%c0_6, %c0_7, %c5, %c0_8] : memref<4x2x26x16xbf16, #tpu.memory_space<vmem>>, vector<1x1x20x16xbf16>
    %5 = vector.shape_cast %4 : vector<1x1x20x16xbf16> to vector<20x16xbf16>
    %c0_9 = arith.constant 0 : index
    %c0_10 = arith.constant 0 : index
    %c6 = arith.constant 6 : index
    %c0_11 = arith.constant 0 : index
    %6 = vector.load %arg0[%c0_9, %c0_10, %c6, %c0_11] : memref<4x2x26x16xbf16, #tpu.memory_space<vmem>>, vector<1x1x20x16xbf16>
    %7 = vector.shape_cast %6 : vector<1x1x20x16xbf16> to vector<20x16xbf16>
    %c1_12 = arith.constant 1 : index
    %c0_13 = arith.constant 0 : index
    %c0_14 = arith.constant 0 : index
    %c0_15 = arith.constant 0 : index
    %8 = vector.load %arg0[%c1_12, %c0_13, %c0_14, %c0_15] : memref<4x2x26x16xbf16, #tpu.memory_space<vmem>>, vector<1x1x20x16xbf16>
    %9 = vector.shape_cast %8 : vector<1x1x20x16xbf16> to vector<20x16xbf16>
    %c1_16 = arith.constant 1 : index
    %c0_17 = arith.constant 0 : index
    %c1_18 = arith.constant 1 : index
    %c0_19 = arith.constant 0 : index
    %10 = vector.load %arg0[%c1_16, %c0_17, %c1_18, %c0_19] : memref<4x2x26x16xbf16, #tpu.memory_space<vmem>>, vector<1x1x20x16xbf16>
    %11 = vector.shape_cast %10 : vector<1x1x20x16xbf16> to vector<20x16xbf16>
    %c1_20 = arith.constant 1 : index
    %c0_21 = arith.constant 0 : index
    %c5_22 = arith.constant 5 : index
    %c0_23 = arith.constant 0 : index
    %12 = vector.load %arg0[%c1_20, %c0_21, %c5_22, %c0_23] : memref<4x2x26x16xbf16, #tpu.memory_space<vmem>>, vector<1x1x20x16xbf16>
    %13 = vector.shape_cast %12 : vector<1x1x20x16xbf16> to vector<20x16xbf16>
    %c1_24 = arith.constant 1 : index
    %c0_25 = arith.constant 0 : index
    %c6_26 = arith.constant 6 : index
    %c0_27 = arith.constant 0 : index
    %14 = vector.load %arg0[%c1_24, %c0_25, %c6_26, %c0_27] : memref<4x2x26x16xbf16, #tpu.memory_space<vmem>>, vector<1x1x20x16xbf16>
    %15 = vector.shape_cast %14 : vector<1x1x20x16xbf16> to vector<20x16xbf16>
    %c2 = arith.constant 2 : index
    %c0_28 = arith.constant 0 : index
    %c0_29 = arith.constant 0 : index
    %c0_30 = arith.constant 0 : index
    %16 = vector.load %arg0[%c2, %c0_28, %c0_29, %c0_30] : memref<4x2x26x16xbf16, #tpu.memory_space<vmem>>, vector<1x1x20x16xbf16>
    %17 = vector.shape_cast %16 : vector<1x1x20x16xbf16> to vector<20x16xbf16>
    %c2_31 = arith.constant 2 : index
    %c0_32 = arith.constant 0 : index
    %c1_33 = arith.constant 1 : index
    %c0_34 = arith.constant 0 : index
    %18 = vector.load %arg0[%c2_31, %c0_32, %c1_33, %c0_34] : memref<4x2x26x16xbf16, #tpu.memory_space<vmem>>, vector<1x1x20x16xbf16>
    %19 = vector.shape_cast %18 : vector<1x1x20x16xbf16> to vector<20x16xbf16>
    %c2_35 = arith.constant 2 : index
    %c0_36 = arith.constant 0 : index
    %c5_37 = arith.constant 5 : index
    %c0_38 = arith.constant 0 : index
    %20 = vector.load %arg0[%c2_35, %c0_36, %c5_37, %c0_38] : memref<4x2x26x16xbf16, #tpu.memory_space<vmem>>, vector<1x1x20x16xbf16>
    %21 = vector.shape_cast %20 : vector<1x1x20x16xbf16> to vector<20x16xbf16>
    %c2_39 = arith.constant 2 : index
    %c0_40 = arith.constant 0 : index
    %c6_41 = arith.constant 6 : index
    %c0_42 = arith.constant 0 : index
    %22 = vector.load %arg0[%c2_39, %c0_40, %c6_41, %c0_42] : memref<4x2x26x16xbf16, #tpu.memory_space<vmem>>, vector<1x1x20x16xbf16>
    %23 = vector.shape_cast %22 : vector<1x1x20x16xbf16> to vector<20x16xbf16>
    %c3 = arith.constant 3 : index
    %c0_43 = arith.constant 0 : index
    %c0_44 = arith.constant 0 : index
    %c0_45 = arith.constant 0 : index
    %24 = vector.load %arg0[%c3, %c0_43, %c0_44, %c0_45] : memref<4x2x26x16xbf16, #tpu.memory_space<vmem>>, vector<1x1x20x16xbf16>
    %25 = vector.shape_cast %24 : vector<1x1x20x16xbf16> to vector<20x16xbf16>
    %c3_46 = arith.constant 3 : index
    %c0_47 = arith.constant 0 : index
    %c1_48 = arith.constant 1 : index
    %c0_49 = arith.constant 0 : index
    %26 = vector.load %arg0[%c3_46, %c0_47, %c1_48, %c0_49] : memref<4x2x26x16xbf16, #tpu.memory_space<vmem>>, vector<1x1x20x16xbf16>
    %27 = vector.shape_cast %26 : vector<1x1x20x16xbf16> to vector<20x16xbf16>
    %c3_50 = arith.constant 3 : index
    %c0_51 = arith.constant 0 : index
    %c5_52 = arith.constant 5 : index
    %c0_53 = arith.constant 0 : index
    %28 = vector.load %arg0[%c3_50, %c0_51, %c5_52, %c0_53] : memref<4x2x26x16xbf16, #tpu.memory_space<vmem>>, vector<1x1x20x16xbf16>
    %29 = vector.shape_cast %28 : vector<1x1x20x16xbf16> to vector<20x16xbf16>
    %c3_54 = arith.constant 3 : index
    %c0_55 = arith.constant 0 : index
    %c6_56 = arith.constant 6 : index
    %c0_57 = arith.constant 0 : index
    %30 = vector.load %arg0[%c3_54, %c0_55, %c6_56, %c0_57] : memref<4x2x26x16xbf16, #tpu.memory_space<vmem>>, vector<1x1x20x16xbf16>
    %31 = vector.shape_cast %30 : vector<1x1x20x16xbf16> to vector<20x16xbf16>
    %32 = tpu.concatenate %1, %3, %5, %7, %9, %11, %13, %15, %17, %19, %21, %23, %25, %27, %29, %31 in 1 : vector<20x16xbf16>, vector<20x16xbf16>, vector<20x16xbf16>, vector<20x16xbf16>, vector<20x16xbf16>, vector<20x16xbf16>, vector<20x16xbf16>, vector<20x16xbf16>, vector<20x16xbf16>, vector<20x16xbf16>, vector<20x16xbf16>, vector<20x16xbf16>, vector<20x16xbf16>, vector<20x16xbf16>, vector<20x16xbf16>, vector<20x16xbf16> -> vector<20x256xbf16>
    %c0_58 = arith.constant 0 : index
    %c1_59 = arith.constant 1 : index
    %c0_60 = arith.constant 0 : index
    %c0_61 = arith.constant 0 : index
    %33 = vector.load %arg0[%c0_58, %c1_59, %c0_60, %c0_61] : memref<4x2x26x16xbf16, #tpu.memory_space<vmem>>, vector<1x1x20x16xbf16>
    %34 = vector.shape_cast %33 : vector<1x1x20x16xbf16> to vector<20x16xbf16>
    %c0_62 = arith.constant 0 : index
    %c1_63 = arith.constant 1 : index
    %c1_64 = arith.constant 1 : index
    %c0_65 = arith.constant 0 : index
    %35 = vector.load %arg0[%c0_62, %c1_63, %c1_64, %c0_65] : memref<4x2x26x16xbf16, #tpu.memory_space<vmem>>, vector<1x1x20x16xbf16>
    %36 = vector.shape_cast %35 : vector<1x1x20x16xbf16> to vector<20x16xbf16>
    %c0_66 = arith.constant 0 : index
    %c1_67 = arith.constant 1 : index
    %c5_68 = arith.constant 5 : index
    %c0_69 = arith.constant 0 : index
    %37 = vector.load %arg0[%c0_66, %c1_67, %c5_68, %c0_69] : memref<4x2x26x16xbf16, #tpu.memory_space<vmem>>, vector<1x1x20x16xbf16>
    %38 = vector.shape_cast %37 : vector<1x1x20x16xbf16> to vector<20x16xbf16>
    %c0_70 = arith.constant 0 : index
    %c1_71 = arith.constant 1 : index
    %c6_72 = arith.constant 6 : index
    %c0_73 = arith.constant 0 : index
    %39 = vector.load %arg0[%c0_70, %c1_71, %c6_72, %c0_73] : memref<4x2x26x16xbf16, #tpu.memory_space<vmem>>, vector<1x1x20x16xbf16>
    %40 = vector.shape_cast %39 : vector<1x1x20x16xbf16> to vector<20x16xbf16>
    %c1_74 = arith.constant 1 : index
    %c1_75 = arith.constant 1 : index
    %c0_76 = arith.constant 0 : index
    %c0_77 = arith.constant 0 : index
    %41 = vector.load %arg0[%c1_74, %c1_75, %c0_76, %c0_77] : memref<4x2x26x16xbf16, #tpu.memory_space<vmem>>, vector<1x1x20x16xbf16>
    %42 = vector.shape_cast %41 : vector<1x1x20x16xbf16> to vector<20x16xbf16>
    %c1_78 = arith.constant 1 : index
    %c1_79 = arith.constant 1 : index
    %c1_80 = arith.constant 1 : index
    %c0_81 = arith.constant 0 : index
    %43 = vector.load %arg0[%c1_78, %c1_79, %c1_80, %c0_81] : memref<4x2x26x16xbf16, #tpu.memory_space<vmem>>, vector<1x1x20x16xbf16>
    %44 = vector.shape_cast %43 : vector<1x1x20x16xbf16> to vector<20x16xbf16>
    %c1_82 = arith.constant 1 : index
    %c1_83 = arith.constant 1 : index
    %c5_84 = arith.constant 5 : index
    %c0_85 = arith.constant 0 : index
    %45 = vector.load %arg0[%c1_82, %c1_83, %c5_84, %c0_85] : memref<4x2x26x16xbf16, #tpu.memory_space<vmem>>, vector<1x1x20x16xbf16>
    %46 = vector.shape_cast %45 : vector<1x1x20x16xbf16> to vector<20x16xbf16>
    %c1_86 = arith.constant 1 : index
    %c1_87 = arith.constant 1 : index
    %c6_88 = arith.constant 6 : index
    %c0_89 = arith.constant 0 : index
    %47 = vector.load %arg0[%c1_86, %c1_87, %c6_88, %c0_89] : memref<4x2x26x16xbf16, #tpu.memory_space<vmem>>, vector<1x1x20x16xbf16>
    %48 = vector.shape_cast %47 : vector<1x1x20x16xbf16> to vector<20x16xbf16>
    %c2_90 = arith.constant 2 : index
    %c1_91 = arith.constant 1 : index
    %c0_92 = arith.constant 0 : index
    %c0_93 = arith.constant 0 : index
    %49 = vector.load %arg0[%c2_90, %c1_91, %c0_92, %c0_93] : memref<4x2x26x16xbf16, #tpu.memory_space<vmem>>, vector<1x1x20x16xbf16>
    %50 = vector.shape_cast %49 : vector<1x1x20x16xbf16> to vector<20x16xbf16>
    %c2_94 = arith.constant 2 : index
    %c1_95 = arith.constant 1 : index
    %c1_96 = arith.constant 1 : index
    %c0_97 = arith.constant 0 : index
    %51 = vector.load %arg0[%c2_94, %c1_95, %c1_96, %c0_97] : memref<4x2x26x16xbf16, #tpu.memory_space<vmem>>, vector<1x1x20x16xbf16>
    %52 = vector.shape_cast %51 : vector<1x1x20x16xbf16> to vector<20x16xbf16>
    %c2_98 = arith.constant 2 : index
    %c1_99 = arith.constant 1 : index
    %c5_100 = arith.constant 5 : index
    %c0_101 = arith.constant 0 : index
    %53 = vector.load %arg0[%c2_98, %c1_99, %c5_100, %c0_101] : memref<4x2x26x16xbf16, #tpu.memory_space<vmem>>, vector<1x1x20x16xbf16>
    %54 = vector.shape_cast %53 : vector<1x1x20x16xbf16> to vector<20x16xbf16>
    %c2_102 = arith.constant 2 : index
    %c1_103 = arith.constant 1 : index
    %c6_104 = arith.constant 6 : index
    %c0_105 = arith.constant 0 : index
    %55 = vector.load %arg0[%c2_102, %c1_103, %c6_104, %c0_105] : memref<4x2x26x16xbf16, #tpu.memory_space<vmem>>, vector<1x1x20x16xbf16>
    %56 = vector.shape_cast %55 : vector<1x1x20x16xbf16> to vector<20x16xbf16>
    %c3_106 = arith.constant 3 : index
    %c1_107 = arith.constant 1 : index
    %c0_108 = arith.constant 0 : index
    %c0_109 = arith.constant 0 : index
    %57 = vector.load %arg0[%c3_106, %c1_107, %c0_108, %c0_109] : memref<4x2x26x16xbf16, #tpu.memory_space<vmem>>, vector<1x1x20x16xbf16>
    %58 = vector.shape_cast %57 : vector<1x1x20x16xbf16> to vector<20x16xbf16>
    %c3_110 = arith.constant 3 : index
    %c1_111 = arith.constant 1 : index
    %c1_112 = arith.constant 1 : index
    %c0_113 = arith.constant 0 : index
    %59 = vector.load %arg0[%c3_110, %c1_111, %c1_112, %c0_113] : memref<4x2x26x16xbf16, #tpu.memory_space<vmem>>, vector<1x1x20x16xbf16>
    %60 = vector.shape_cast %59 : vector<1x1x20x16xbf16> to vector<20x16xbf16>
    %c3_114 = arith.constant 3 : index
    %c1_115 = arith.constant 1 : index
    %c5_116 = arith.constant 5 : index
    %c0_117 = arith.constant 0 : index
    %61 = vector.load %arg0[%c3_114, %c1_115, %c5_116, %c0_117] : memref<4x2x26x16xbf16, #tpu.memory_space<vmem>>, vector<1x1x20x16xbf16>
    %62 = vector.shape_cast %61 : vector<1x1x20x16xbf16> to vector<20x16xbf16>
    %c3_118 = arith.constant 3 : index
    %c1_119 = arith.constant 1 : index
    %c6_120 = arith.constant 6 : index
    %c0_121 = arith.constant 0 : index
    %63 = vector.load %arg0[%c3_118, %c1_119, %c6_120, %c0_121] : memref<4x2x26x16xbf16, #tpu.memory_space<vmem>>, vector<1x1x20x16xbf16>
    %64 = vector.shape_cast %63 : vector<1x1x20x16xbf16> to vector<20x16xbf16>
    %65 = tpu.concatenate %34, %36, %38, %40, %42, %44, %46, %48, %50, %52, %54, %56, %58, %60, %62, %64 in 1 : vector<20x16xbf16>, vector<20x16xbf16>, vector<20x16xbf16>, vector<20x16xbf16>, vector<20x16xbf16>, vector<20x16xbf16>, vector<20x16xbf16>, vector<20x16xbf16>, vector<20x16xbf16>, vector<20x16xbf16>, vector<20x16xbf16>, vector<20x16xbf16>, vector<20x16xbf16>, vector<20x16xbf16>, vector<20x16xbf16>, vector<20x16xbf16> -> vector<20x256xbf16>
    %66 = tpu.concatenate %32, %65 in 0 : vector<20x256xbf16>, vector<20x256xbf16> -> vector<40x256xbf16>
    %c0_122 = arith.constant 0 : index
    %c0_123 = arith.constant 0 : index
    %67 = vector.load %arg1[%c0_122, %c0_123] : memref<256x32xbf16, #tpu.memory_space<vmem>>, vector<256x32xbf16>
    %cst = arith.constant dense<0.000000e+00> : vector<40x32xf32>
    %68 = tpu.matmul %66, %67, %cst {dimension_numbers = #tpu.dot_dimension_numbers<[1], [0], [0], [1], [0, 0, 1, 1], [], []>} : vector<40x256xbf16>, vector<256x32xbf16>, vector<40x32xf32> -> vector<40x32xf32>
    %c0_124 = arith.constant 0 : index
    %c0_125 = arith.constant 0 : index
    %69 = vector.load %arg2[%c0_124, %c0_125] : memref<1x32xf32, #tpu.memory_space<vmem>>, vector<1x32xf32>
    %70 = vector.broadcast %69 : vector<1x32xf32> to vector<40x32xf32>
    %71 = arith.addf %68, %70 : vector<40x32xf32>
    %cst_126 = arith.constant 0.000000e+00 : f32
    %72 = vector.broadcast %cst_126 : f32 to vector<40x32xf32>
    %73 = arith.maximumf %71, %72 : vector<40x32xf32>
    %74 = arith.truncf %73 : vector<40x32xf32> to vector<40x32xbf16>
    %75 = vector.shape_cast %74 : vector<40x32xbf16> to vector<2x20x32xbf16>
    %c0_127 = arith.constant 0 : index
    %c0_128 = arith.constant 0 : index
    %c0_129 = arith.constant 0 : index
    %76 = vector.load %arg3[%c0_127, %c0_128, %c0_129] : memref<2x20x32xbf16, #tpu.memory_space<vmem>>, vector<2x20x32xbf16>
    tpu.vector_store %arg3[%c0_127, %c0_128, %c0_129], %75 {strides = array<i32>} : memref<2x20x32xbf16, #tpu.memory_space<vmem>>, vector<2x20x32xbf16>,
    return
  }
}

module attributes {stable_mosaic.version = 11 : i64} {
  func.func @_conv3_res_stack_kernel(%arg0: memref<2x38x32xbf16, #tpu.memory_space<vmem>>, %arg1: memref<288x32xbf16, #tpu.memory_space<vmem>>, %arg2: memref<1x32xf32, #tpu.memory_space<vmem>>, %arg3: memref<2x288x16xbf16, #tpu.memory_space<vmem>>, %arg4: memref<2x1x16xf32, #tpu.memory_space<vmem>>, %arg5: memref<2x1x16xf32, #tpu.memory_space<vmem>>, %arg6: memref<2x16x32xbf16, #tpu.memory_space<vmem>>, %arg7: memref<2x1x32xf32, #tpu.memory_space<vmem>>, %arg8: memref<2x1x32xf32, #tpu.memory_space<vmem>>, %arg9: memref<2x24x32xf32, #tpu.memory_space<vmem>>, %arg10: memref<2x38x32xbf16, #tpu.memory_space<vmem>>) attributes {dimension_semantics = [], scalar_prefetch = 0 : i64, scratch_operands = 1 : i64, tpu.core_type = #tpu.core_type<tc>} {
    %0 = tpu.iota {dimensions = array<i32: 0>} : vector<48x1xi32>
    %c6_i32 = arith.constant 6 : i32
    %c0_i32 = arith.constant 0 : i32
    %1 = arith.cmpi eq, %c6_i32, %c0_i32 : i32
    %c1_i32 = arith.constant 1 : i32
    %2 = arith.select %1, %c1_i32, %c6_i32 : i32
    %3 = vector.broadcast %2 : i32 to vector<48x1xi32>
    %4 = arith.remsi %0, %3 : vector<48x1xi32>
    %c0_i32_0 = arith.constant 0 : i32
    %5 = vector.broadcast %c0_i32_0 : i32 to vector<48x1xi32>
    %6 = arith.cmpi ne, %4, %5 : vector<48x1xi32>
    %c0_i32_1 = arith.constant 0 : i32
    %7 = vector.broadcast %c0_i32_1 : i32 to vector<48x1xi32>
    %8 = arith.cmpi slt, %4, %7 : vector<48x1xi32>
    %c0_i32_2 = arith.constant 0 : i32
    %9 = arith.cmpi slt, %2, %c0_i32_2 : i32
    %10 = vector.broadcast %9 : i1 to vector<48x1xi1>
    %11 = vector.broadcast %10 : vector<48x1xi1> to vector<48x1xi1>
    %12 = arith.xori %8, %11 : vector<48x1xi1>
    %13 = arith.andi %12, %6 : vector<48x1xi1>
    %14 = vector.broadcast %2 : i32 to vector<48x1xi32>
    %15 = arith.addi %4, %14 : vector<48x1xi32>
    %16 = arith.select %13, %15, %4 : vector<48x1xi1>, vector<48x1xi32>
    %c4_i32 = arith.constant 4 : i32
    %17 = vector.broadcast %c4_i32 : i32 to vector<48x1xi32>
    %18 = arith.cmpi slt, %16, %17 : vector<48x1xi32>
    %19 = arith.extui %18 : vector<48x1xi1> to vector<48x1xi32>
    %20 = arith.sitofp %19 : vector<48x1xi32> to vector<48x1xf32>
    %cst = arith.constant 0.000000e+00 : bf16
    %21 = vector.broadcast %cst : bf16 to vector<2x38x32xbf16>
    %c0 = arith.constant 0 : index
    %c0_3 = arith.constant 0 : index
    %c0_4 = arith.constant 0 : index
    %22 = vector.load %arg10[%c0, %c0_3, %c0_4] : memref<2x38x32xbf16, #tpu.memory_space<vmem>>, vector<2x38x32xbf16>
    tpu.vector_store %arg10[%c0, %c0_3, %c0_4], %21 {strides = array<i32>} : memref<2x38x32xbf16, #tpu.memory_space<vmem>>, vector<2x38x32xbf16>,
    %c0_5 = arith.constant 0 : index
    %c0_6 = arith.constant 0 : index
    %c0_7 = arith.constant 0 : index
    %23 = vector.load %arg0[%c0_5, %c0_6, %c0_7] : memref<2x38x32xbf16, #tpu.memory_space<vmem>>, vector<1x24x32xbf16>
    %24 = vector.shape_cast %23 : vector<1x24x32xbf16> to vector<24x32xbf16>
    %c0_8 = arith.constant 0 : index
    %c1 = arith.constant 1 : index
    %c0_9 = arith.constant 0 : index
    %25 = vector.load %arg0[%c0_8, %c1, %c0_9] : memref<2x38x32xbf16, #tpu.memory_space<vmem>>, vector<1x24x32xbf16>
    %26 = vector.shape_cast %25 : vector<1x24x32xbf16> to vector<24x32xbf16>
    %c0_10 = arith.constant 0 : index
    %c2 = arith.constant 2 : index
    %c0_11 = arith.constant 0 : index
    %27 = vector.load %arg0[%c0_10, %c2, %c0_11] : memref<2x38x32xbf16, #tpu.memory_space<vmem>>, vector<1x24x32xbf16>
    %28 = vector.shape_cast %27 : vector<1x24x32xbf16> to vector<24x32xbf16>
    %c0_12 = arith.constant 0 : index
    %c6 = arith.constant 6 : index
    %c0_13 = arith.constant 0 : index
    %29 = vector.load %arg0[%c0_12, %c6, %c0_13] : memref<2x38x32xbf16, #tpu.memory_space<vmem>>, vector<1x24x32xbf16>
    %30 = vector.shape_cast %29 : vector<1x24x32xbf16> to vector<24x32xbf16>
    %c0_14 = arith.constant 0 : index
    %c7 = arith.constant 7 : index
    %c0_15 = arith.constant 0 : index
    %31 = vector.load %arg0[%c0_14, %c7, %c0_15] : memref<2x38x32xbf16, #tpu.memory_space<vmem>>, vector<1x24x32xbf16>
    %32 = vector.shape_cast %31 : vector<1x24x32xbf16> to vector<24x32xbf16>
    %c0_16 = arith.constant 0 : index
    %c8 = arith.constant 8 : index
    %c0_17 = arith.constant 0 : index
    %33 = vector.load %arg0[%c0_16, %c8, %c0_17] : memref<2x38x32xbf16, #tpu.memory_space<vmem>>, vector<1x24x32xbf16>
    %34 = vector.shape_cast %33 : vector<1x24x32xbf16> to vector<24x32xbf16>
    %c0_18 = arith.constant 0 : index
    %c12 = arith.constant 12 : index
    %c0_19 = arith.constant 0 : index
    %35 = vector.load %arg0[%c0_18, %c12, %c0_19] : memref<2x38x32xbf16, #tpu.memory_space<vmem>>, vector<1x24x32xbf16>
    %36 = vector.shape_cast %35 : vector<1x24x32xbf16> to vector<24x32xbf16>
    %c0_20 = arith.constant 0 : index
    %c13 = arith.constant 13 : index
    %c0_21 = arith.constant 0 : index
    %37 = vector.load %arg0[%c0_20, %c13, %c0_21] : memref<2x38x32xbf16, #tpu.memory_space<vmem>>, vector<1x24x32xbf16>
    %38 = vector.shape_cast %37 : vector<1x24x32xbf16> to vector<24x32xbf16>
    %c0_22 = arith.constant 0 : index
    %c14 = arith.constant 14 : index
    %c0_23 = arith.constant 0 : index
    %39 = vector.load %arg0[%c0_22, %c14, %c0_23] : memref<2x38x32xbf16, #tpu.memory_space<vmem>>, vector<1x24x32xbf16>
    %40 = vector.shape_cast %39 : vector<1x24x32xbf16> to vector<24x32xbf16>
    %41 = tpu.concatenate %24, %26, %28, %30, %32, %34, %36, %38, %40 in 1 : vector<24x32xbf16>, vector<24x32xbf16>, vector<24x32xbf16>, vector<24x32xbf16>, vector<24x32xbf16>, vector<24x32xbf16>, vector<24x32xbf16>, vector<24x32xbf16>, vector<24x32xbf16> -> vector<24x288xbf16>
    %c1_24 = arith.constant 1 : index
    %c0_25 = arith.constant 0 : index
    %c0_26 = arith.constant 0 : index
    %42 = vector.load %arg0[%c1_24, %c0_25, %c0_26] : memref<2x38x32xbf16, #tpu.memory_space<vmem>>, vector<1x24x32xbf16>
    %43 = vector.shape_cast %42 : vector<1x24x32xbf16> to vector<24x32xbf16>
    %c1_27 = arith.constant 1 : index
    %c1_28 = arith.constant 1 : index
    %c0_29 = arith.constant 0 : index
    %44 = vector.load %arg0[%c1_27, %c1_28, %c0_29] : memref<2x38x32xbf16, #tpu.memory_space<vmem>>, vector<1x24x32xbf16>
    %45 = vector.shape_cast %44 : vector<1x24x32xbf16> to vector<24x32xbf16>
    %c1_30 = arith.constant 1 : index
    %c2_31 = arith.constant 2 : index
    %c0_32 = arith.constant 0 : index
    %46 = vector.load %arg0[%c1_30, %c2_31, %c0_32] : memref<2x38x32xbf16, #tpu.memory_space<vmem>>, vector<1x24x32xbf16>
    %47 = vector.shape_cast %46 : vector<1x24x32xbf16> to vector<24x32xbf16>
    %c1_33 = arith.constant 1 : index
    %c6_34 = arith.constant 6 : index
    %c0_35 = arith.constant 0 : index
    %48 = vector.load %arg0[%c1_33, %c6_34, %c0_35] : memref<2x38x32xbf16, #tpu.memory_space<vmem>>, vector<1x24x32xbf16>
    %49 = vector.shape_cast %48 : vector<1x24x32xbf16> to vector<24x32xbf16>
    %c1_36 = arith.constant 1 : index
    %c7_37 = arith.constant 7 : index
    %c0_38 = arith.constant 0 : index
    %50 = vector.load %arg0[%c1_36, %c7_37, %c0_38] : memref<2x38x32xbf16, #tpu.memory_space<vmem>>, vector<1x24x32xbf16>
    %51 = vector.shape_cast %50 : vector<1x24x32xbf16> to vector<24x32xbf16>
    %c1_39 = arith.constant 1 : index
    %c8_40 = arith.constant 8 : index
    %c0_41 = arith.constant 0 : index
    %52 = vector.load %arg0[%c1_39, %c8_40, %c0_41] : memref<2x38x32xbf16, #tpu.memory_space<vmem>>, vector<1x24x32xbf16>
    %53 = vector.shape_cast %52 : vector<1x24x32xbf16> to vector<24x32xbf16>
    %c1_42 = arith.constant 1 : index
    %c12_43 = arith.constant 12 : index
    %c0_44 = arith.constant 0 : index
    %54 = vector.load %arg0[%c1_42, %c12_43, %c0_44] : memref<2x38x32xbf16, #tpu.memory_space<vmem>>, vector<1x24x32xbf16>
    %55 = vector.shape_cast %54 : vector<1x24x32xbf16> to vector<24x32xbf16>
    %c1_45 = arith.constant 1 : index
    %c13_46 = arith.constant 13 : index
    %c0_47 = arith.constant 0 : index
    %56 = vector.load %arg0[%c1_45, %c13_46, %c0_47] : memref<2x38x32xbf16, #tpu.memory_space<vmem>>, vector<1x24x32xbf16>
    %57 = vector.shape_cast %56 : vector<1x24x32xbf16> to vector<24x32xbf16>
    %c1_48 = arith.constant 1 : index
    %c14_49 = arith.constant 14 : index
    %c0_50 = arith.constant 0 : index
    %58 = vector.load %arg0[%c1_48, %c14_49, %c0_50] : memref<2x38x32xbf16, #tpu.memory_space<vmem>>, vector<1x24x32xbf16>
    %59 = vector.shape_cast %58 : vector<1x24x32xbf16> to vector<24x32xbf16>
    %60 = tpu.concatenate %43, %45, %47, %49, %51, %53, %55, %57, %59 in 1 : vector<24x32xbf16>, vector<24x32xbf16>, vector<24x32xbf16>, vector<24x32xbf16>, vector<24x32xbf16>, vector<24x32xbf16>, vector<24x32xbf16>, vector<24x32xbf16>, vector<24x32xbf16> -> vector<24x288xbf16>
    %61 = tpu.concatenate %41, %60 in 0 : vector<24x288xbf16>, vector<24x288xbf16> -> vector<48x288xbf16>
    %c0_51 = arith.constant 0 : index
    %c0_52 = arith.constant 0 : index
    %62 = vector.load %arg1[%c0_51, %c0_52] : memref<288x32xbf16, #tpu.memory_space<vmem>>, vector<288x32xbf16>
    %cst_53 = arith.constant dense<0.000000e+00> : vector<48x32xf32>
    %63 = tpu.matmul %61, %62, %cst_53 {dimension_numbers = #tpu.dot_dimension_numbers<[1], [0], [0], [1], [0, 0, 1, 1], [], []>} : vector<48x288xbf16>, vector<288x32xbf16>, vector<48x32xf32> -> vector<48x32xf32>
    %c0_54 = arith.constant 0 : index
    %c0_55 = arith.constant 0 : index
    %64 = vector.load %arg2[%c0_54, %c0_55] : memref<1x32xf32, #tpu.memory_space<vmem>>, vector<1x32xf32>
    %65 = vector.broadcast %64 : vector<1x32xf32> to vector<48x32xf32>
    %66 = arith.addf %63, %65 : vector<48x32xf32>
    %cst_56 = arith.constant 0.000000e+00 : f32
    %67 = vector.broadcast %cst_56 : f32 to vector<48x32xf32>
    %68 = arith.maximumf %66, %67 : vector<48x32xf32>
    %69 = vector.broadcast %20 : vector<48x1xf32> to vector<48x32xf32>
    %70 = arith.mulf %68, %69 : vector<48x32xf32>
    %71 = arith.truncf %70 : vector<48x32xf32> to vector<48x32xbf16>
    %72 = vector.extract_strided_slice %71 {offsets = [0, 0], sizes = [24, 32], strides = [1, 1]} : vector<48x32xbf16> to vector<24x32xbf16>
    %c0_57 = arith.constant 0 : index
    %c7_58 = arith.constant 7 : index
    %c0_59 = arith.constant 0 : index
    %73 = vector.load %arg10[%c0_57, %c7_58, %c0_59] : memref<2x38x32xbf16, #tpu.memory_space<vmem>>, vector<1x24x32xbf16>
    %74 = vector.shape_cast %73 : vector<1x24x32xbf16> to vector<24x32xbf16>
    %75 = vector.shape_cast %72 : vector<24x32xbf16> to vector<1x24x32xbf16>
    tpu.vector_store %arg10[%c0_57, %c7_58, %c0_59], %75 {strides = array<i32>} : memref<2x38x32xbf16, #tpu.memory_space<vmem>>, vector<1x24x32xbf16>,
    %76 = vector.extract_strided_slice %71 {offsets = [24, 0], sizes = [24, 32], strides = [1, 1]} : vector<48x32xbf16> to vector<24x32xbf16>
    %c1_60 = arith.constant 1 : index
    %c7_61 = arith.constant 7 : index
    %c0_62 = arith.constant 0 : index
    %77 = vector.load %arg10[%c1_60, %c7_61, %c0_62] : memref<2x38x32xbf16, #tpu.memory_space<vmem>>, vector<1x24x32xbf16>
    %78 = vector.shape_cast %77 : vector<1x24x32xbf16> to vector<24x32xbf16>
    %79 = vector.shape_cast %76 : vector<24x32xbf16> to vector<1x24x32xbf16>
    tpu.vector_store %arg10[%c1_60, %c7_61, %c0_62], %79 {strides = array<i32>} : memref<2x38x32xbf16, #tpu.memory_space<vmem>>, vector<1x24x32xbf16>,
    %c0_63 = arith.constant 0 : index
    %c0_64 = arith.constant 0 : index
    %c0_65 = arith.constant 0 : index
    %80 = vector.load %arg10[%c0_63, %c0_64, %c0_65] : memref<2x38x32xbf16, #tpu.memory_space<vmem>>, vector<1x24x32xbf16>
    %81 = vector.shape_cast %80 : vector<1x24x32xbf16> to vector<24x32xbf16>
    %c0_66 = arith.constant 0 : index
    %c1_67 = arith.constant 1 : index
    %c0_68 = arith.constant 0 : index
    %82 = vector.load %arg10[%c0_66, %c1_67, %c0_68] : memref<2x38x32xbf16, #tpu.memory_space<vmem>>, vector<1x24x32xbf16>
    %83 = vector.shape_cast %82 : vector<1x24x32xbf16> to vector<24x32xbf16>
    %c0_69 = arith.constant 0 : index
    %c2_70 = arith.constant 2 : index
    %c0_71 = arith.constant 0 : index
    %84 = vector.load %arg10[%c0_69, %c2_70, %c0_71] : memref<2x38x32xbf16, #tpu.memory_space<vmem>>, vector<1x24x32xbf16>
    %85 = vector.shape_cast %84 : vector<1x24x32xbf16> to vector<24x32xbf16>
    %c0_72 = arith.constant 0 : index
    %c6_73 = arith.constant 6 : index
    %c0_74 = arith.constant 0 : index
    %86 = vector.load %arg10[%c0_72, %c6_73, %c0_74] : memref<2x38x32xbf16, #tpu.memory_space<vmem>>, vector<1x24x32xbf16>
    %87 = vector.shape_cast %86 : vector<1x24x32xbf16> to vector<24x32xbf16>
    %c0_75 = arith.constant 0 : index
    %c7_76 = arith.constant 7 : index
    %c0_77 = arith.constant 0 : index
    %88 = vector.load %arg10[%c0_75, %c7_76, %c0_77] : memref<2x38x32xbf16, #tpu.memory_space<vmem>>, vector<1x24x32xbf16>
    %89 = vector.shape_cast %88 : vector<1x24x32xbf16> to vector<24x32xbf16>
    %c0_78 = arith.constant 0 : index
    %c8_79 = arith.constant 8 : index
    %c0_80 = arith.constant 0 : index
    %90 = vector.load %arg10[%c0_78, %c8_79, %c0_80] : memref<2x38x32xbf16, #tpu.memory_space<vmem>>, vector<1x24x32xbf16>
    %91 = vector.shape_cast %90 : vector<1x24x32xbf16> to vector<24x32xbf16>
    %c0_81 = arith.constant 0 : index
    %c12_82 = arith.constant 12 : index
    %c0_83 = arith.constant 0 : index
    %92 = vector.load %arg10[%c0_81, %c12_82, %c0_83] : memref<2x38x32xbf16, #tpu.memory_space<vmem>>, vector<1x24x32xbf16>
    %93 = vector.shape_cast %92 : vector<1x24x32xbf16> to vector<24x32xbf16>
    %c0_84 = arith.constant 0 : index
    %c13_85 = arith.constant 13 : index
    %c0_86 = arith.constant 0 : index
    %94 = vector.load %arg10[%c0_84, %c13_85, %c0_86] : memref<2x38x32xbf16, #tpu.memory_space<vmem>>, vector<1x24x32xbf16>
    %95 = vector.shape_cast %94 : vector<1x24x32xbf16> to vector<24x32xbf16>
    %c0_87 = arith.constant 0 : index
    %c14_88 = arith.constant 14 : index
    %c0_89 = arith.constant 0 : index
    %96 = vector.load %arg10[%c0_87, %c14_88, %c0_89] : memref<2x38x32xbf16, #tpu.memory_space<vmem>>, vector<1x24x32xbf16>
    %97 = vector.shape_cast %96 : vector<1x24x32xbf16> to vector<24x32xbf16>
    %98 = tpu.concatenate %81, %83, %85, %87, %89, %91, %93, %95, %97 in 1 : vector<24x32xbf16>, vector<24x32xbf16>, vector<24x32xbf16>, vector<24x32xbf16>, vector<24x32xbf16>, vector<24x32xbf16>, vector<24x32xbf16>, vector<24x32xbf16>, vector<24x32xbf16> -> vector<24x288xbf16>
    %c1_90 = arith.constant 1 : index
    %c0_91 = arith.constant 0 : index
    %c0_92 = arith.constant 0 : index
    %99 = vector.load %arg10[%c1_90, %c0_91, %c0_92] : memref<2x38x32xbf16, #tpu.memory_space<vmem>>, vector<1x24x32xbf16>
    %100 = vector.shape_cast %99 : vector<1x24x32xbf16> to vector<24x32xbf16>
    %c1_93 = arith.constant 1 : index
    %c1_94 = arith.constant 1 : index
    %c0_95 = arith.constant 0 : index
    %101 = vector.load %arg10[%c1_93, %c1_94, %c0_95] : memref<2x38x32xbf16, #tpu.memory_space<vmem>>, vector<1x24x32xbf16>
    %102 = vector.shape_cast %101 : vector<1x24x32xbf16> to vector<24x32xbf16>
    %c1_96 = arith.constant 1 : index
    %c2_97 = arith.constant 2 : index
    %c0_98 = arith.constant 0 : index
    %103 = vector.load %arg10[%c1_96, %c2_97, %c0_98] : memref<2x38x32xbf16, #tpu.memory_space<vmem>>, vector<1x24x32xbf16>
    %104 = vector.shape_cast %103 : vector<1x24x32xbf16> to vector<24x32xbf16>
    %c1_99 = arith.constant 1 : index
    %c6_100 = arith.constant 6 : index
    %c0_101 = arith.constant 0 : index
    %105 = vector.load %arg10[%c1_99, %c6_100, %c0_101] : memref<2x38x32xbf16, #tpu.memory_space<vmem>>, vector<1x24x32xbf16>
    %106 = vector.shape_cast %105 : vector<1x24x32xbf16> to vector<24x32xbf16>
    %c1_102 = arith.constant 1 : index
    %c7_103 = arith.constant 7 : index
    %c0_104 = arith.constant 0 : index
    %107 = vector.load %arg10[%c1_102, %c7_103, %c0_104] : memref<2x38x32xbf16, #tpu.memory_space<vmem>>, vector<1x24x32xbf16>
    %108 = vector.shape_cast %107 : vector<1x24x32xbf16> to vector<24x32xbf16>
    %c1_105 = arith.constant 1 : index
    %c8_106 = arith.constant 8 : index
    %c0_107 = arith.constant 0 : index
    %109 = vector.load %arg10[%c1_105, %c8_106, %c0_107] : memref<2x38x32xbf16, #tpu.memory_space<vmem>>, vector<1x24x32xbf16>
    %110 = vector.shape_cast %109 : vector<1x24x32xbf16> to vector<24x32xbf16>
    %c1_108 = arith.constant 1 : index
    %c12_109 = arith.constant 12 : index
    %c0_110 = arith.constant 0 : index
    %111 = vector.load %arg10[%c1_108, %c12_109, %c0_110] : memref<2x38x32xbf16, #tpu.memory_space<vmem>>, vector<1x24x32xbf16>
    %112 = vector.shape_cast %111 : vector<1x24x32xbf16> to vector<24x32xbf16>
    %c1_111 = arith.constant 1 : index
    %c13_112 = arith.constant 13 : index
    %c0_113 = arith.constant 0 : index
    %113 = vector.load %arg10[%c1_111, %c13_112, %c0_113] : memref<2x38x32xbf16, #tpu.memory_space<vmem>>, vector<1x24x32xbf16>
    %114 = vector.shape_cast %113 : vector<1x24x32xbf16> to vector<24x32xbf16>
    %c1_114 = arith.constant 1 : index
    %c14_115 = arith.constant 14 : index
    %c0_116 = arith.constant 0 : index
    %115 = vector.load %arg10[%c1_114, %c14_115, %c0_116] : memref<2x38x32xbf16, #tpu.memory_space<vmem>>, vector<1x24x32xbf16>
    %116 = vector.shape_cast %115 : vector<1x24x32xbf16> to vector<24x32xbf16>
    %117 = tpu.concatenate %100, %102, %104, %106, %108, %110, %112, %114, %116 in 1 : vector<24x32xbf16>, vector<24x32xbf16>, vector<24x32xbf16>, vector<24x32xbf16>, vector<24x32xbf16>, vector<24x32xbf16>, vector<24x32xbf16>, vector<24x32xbf16>, vector<24x32xbf16> -> vector<24x288xbf16>
    %118 = tpu.concatenate %98, %117 in 0 : vector<24x288xbf16>, vector<24x288xbf16> -> vector<48x288xbf16>
    %c0_117 = arith.constant 0 : index
    %c0_118 = arith.constant 0 : index
    %c0_119 = arith.constant 0 : index
    %119 = vector.load %arg3[%c0_117, %c0_118, %c0_119] : memref<2x288x16xbf16, #tpu.memory_space<vmem>>, vector<1x288x16xbf16>
    %120 = vector.shape_cast %119 : vector<1x288x16xbf16> to vector<288x16xbf16>
    %cst_120 = arith.constant dense<0.000000e+00> : vector<48x16xf32>
    %121 = tpu.matmul %118, %120, %cst_120 {dimension_numbers = #tpu.dot_dimension_numbers<[1], [0], [0], [1], [0, 0, 1, 1], [], []>} : vector<48x288xbf16>, vector<288x16xbf16>, vector<48x16xf32> -> vector<48x16xf32>
    %122 = vector.broadcast %20 : vector<48x1xf32> to vector<48x16xf32>
    %123 = arith.mulf %121, %122 : vector<48x16xf32>
    %cst_121 = arith.constant dense<0.000000e+00> : vector<16xf32>
    %124 = vector.multi_reduction <add>, %123, %cst_121 [0] : vector<48x16xf32> to vector<16xf32>
    %125 = vector.shape_cast %124 : vector<16xf32> to vector<1x16xf32>
    %cst_122 = arith.constant 3.200000e+01 : f32
    %126 = vector.broadcast %cst_122 : f32 to vector<1x16xf32>
    %127 = arith.divf %125, %126 : vector<1x16xf32>
    %128 = arith.mulf %123, %121 : vector<48x16xf32>
    %cst_123 = arith.constant dense<0.000000e+00> : vector<16xf32>
    %129 = vector.multi_reduction <add>, %128, %cst_123 [0] : vector<48x16xf32> to vector<16xf32>
    %130 = vector.shape_cast %129 : vector<16xf32> to vector<1x16xf32>
    %cst_124 = arith.constant 3.200000e+01 : f32
    %131 = vector.broadcast %cst_124 : f32 to vector<1x16xf32>
    %132 = arith.divf %130, %131 : vector<1x16xf32>
    %133 = arith.mulf %127, %127 : vector<1x16xf32>
    %134 = arith.subf %132, %133 : vector<1x16xf32>
    %cst_125 = arith.constant 0.000000e+00 : f32
    %135 = vector.broadcast %cst_125 : f32 to vector<1x16xf32>
    %136 = arith.maximumf %134, %135 : vector<1x16xf32>
    %c0_126 = arith.constant 0 : index
    %c0_127 = arith.constant 0 : index
    %c0_128 = arith.constant 0 : index
    %137 = vector.load %arg4[%c0_126, %c0_127, %c0_128] : memref<2x1x16xf32, #tpu.memory_space<vmem>>, vector<1x1x16xf32>
    %138 = vector.shape_cast %137 : vector<1x1x16xf32> to vector<1x16xf32>
    %cst_129 = arith.constant 9.99999974E-6 : f32
    %139 = vector.broadcast %cst_129 : f32 to vector<1x16xf32>
    %140 = arith.addf %136, %139 : vector<1x16xf32>
    %141 = math.rsqrt %140 : vector<1x16xf32>
    %142 = arith.mulf %138, %141 : vector<1x16xf32>
    %c0_130 = arith.constant 0 : index
    %c0_131 = arith.constant 0 : index
    %c0_132 = arith.constant 0 : index
    %143 = vector.load %arg5[%c0_130, %c0_131, %c0_132] : memref<2x1x16xf32, #tpu.memory_space<vmem>>, vector<1x1x16xf32>
    %144 = vector.shape_cast %143 : vector<1x1x16xf32> to vector<1x16xf32>
    %145 = arith.mulf %127, %142 : vector<1x16xf32>
    %146 = arith.subf %144, %145 : vector<1x16xf32>
    %147 = vector.broadcast %142 : vector<1x16xf32> to vector<48x16xf32>
    %148 = arith.mulf %121, %147 : vector<48x16xf32>
    %149 = vector.broadcast %146 : vector<1x16xf32> to vector<48x16xf32>
    %150 = arith.addf %148, %149 : vector<48x16xf32>
    %cst_133 = arith.constant 0.000000e+00 : f32
    %151 = vector.broadcast %cst_133 : f32 to vector<48x16xf32>
    %152 = arith.maximumf %150, %151 : vector<48x16xf32>
    %153 = arith.truncf %152 : vector<48x16xf32> to vector<48x16xbf16>
    %c0_134 = arith.constant 0 : index
    %c0_135 = arith.constant 0 : index
    %c0_136 = arith.constant 0 : index
    %154 = vector.load %arg6[%c0_134, %c0_135, %c0_136] : memref<2x16x32xbf16, #tpu.memory_space<vmem>>, vector<1x16x32xbf16>
    %155 = vector.shape_cast %154 : vector<1x16x32xbf16> to vector<16x32xbf16>
    %cst_137 = arith.constant dense<0.000000e+00> : vector<48x32xf32>
    %156 = tpu.matmul %153, %155, %cst_137 {dimension_numbers = #tpu.dot_dimension_numbers<[1], [0], [0], [1], [0, 0, 1, 1], [], []>} : vector<48x16xbf16>, vector<16x32xbf16>, vector<48x32xf32> -> vector<48x32xf32>
    %157 = vector.broadcast %20 : vector<48x1xf32> to vector<48x32xf32>
    %158 = arith.mulf %156, %157 : vector<48x32xf32>
    %cst_138 = arith.constant dense<0.000000e+00> : vector<32xf32>
    %159 = vector.multi_reduction <add>, %158, %cst_138 [0] : vector<48x32xf32> to vector<32xf32>
    %160 = vector.shape_cast %159 : vector<32xf32> to vector<1x32xf32>
    %cst_139 = arith.constant 3.200000e+01 : f32
    %161 = vector.broadcast %cst_139 : f32 to vector<1x32xf32>
    %162 = arith.divf %160, %161 : vector<1x32xf32>
    %163 = arith.mulf %158, %156 : vector<48x32xf32>
    %cst_140 = arith.constant dense<0.000000e+00> : vector<32xf32>
    %164 = vector.multi_reduction <add>, %163, %cst_140 [0] : vector<48x32xf32> to vector<32xf32>
    %165 = vector.shape_cast %164 : vector<32xf32> to vector<1x32xf32>
    %cst_141 = arith.constant 3.200000e+01 : f32
    %166 = vector.broadcast %cst_141 : f32 to vector<1x32xf32>
    %167 = arith.divf %165, %166 : vector<1x32xf32>
    %168 = arith.mulf %162, %162 : vector<1x32xf32>
    %169 = arith.subf %167, %168 : vector<1x32xf32>
    %cst_142 = arith.constant 0.000000e+00 : f32
    %170 = vector.broadcast %cst_142 : f32 to vector<1x32xf32>
    %171 = arith.maximumf %169, %170 : vector<1x32xf32>
    %c0_143 = arith.constant 0 : index
    %c0_144 = arith.constant 0 : index
    %c0_145 = arith.constant 0 : index
    %172 = vector.load %arg7[%c0_143, %c0_144, %c0_145] : memref<2x1x32xf32, #tpu.memory_space<vmem>>, vector<1x1x32xf32>
    %173 = vector.shape_cast %172 : vector<1x1x32xf32> to vector<1x32xf32>
    %cst_146 = arith.constant 9.99999974E-6 : f32
    %174 = vector.broadcast %cst_146 : f32 to vector<1x32xf32>
    %175 = arith.addf %171, %174 : vector<1x32xf32>
    %176 = math.rsqrt %175 : vector<1x32xf32>
    %177 = arith.mulf %173, %176 : vector<1x32xf32>
    %c0_147 = arith.constant 0 : index
    %c0_148 = arith.constant 0 : index
    %c0_149 = arith.constant 0 : index
    %178 = vector.load %arg8[%c0_147, %c0_148, %c0_149] : memref<2x1x32xf32, #tpu.memory_space<vmem>>, vector<1x1x32xf32>
    %179 = vector.shape_cast %178 : vector<1x1x32xf32> to vector<1x32xf32>
    %180 = arith.mulf %162, %177 : vector<1x32xf32>
    %181 = arith.subf %179, %180 : vector<1x32xf32>
    %182 = vector.broadcast %177 : vector<1x32xf32> to vector<48x32xf32>
    %183 = arith.mulf %156, %182 : vector<48x32xf32>
    %184 = vector.broadcast %181 : vector<1x32xf32> to vector<48x32xf32>
    %185 = arith.addf %183, %184 : vector<48x32xf32>
    %186 = arith.addf %185, %68 : vector<48x32xf32>
    %cst_150 = arith.constant 0.000000e+00 : f32
    %187 = vector.broadcast %cst_150 : f32 to vector<48x32xf32>
    %188 = arith.maximumf %186, %187 : vector<48x32xf32>
    %189 = vector.broadcast %20 : vector<48x1xf32> to vector<48x32xf32>
    %190 = arith.mulf %188, %189 : vector<48x32xf32>
    %191 = arith.truncf %190 : vector<48x32xf32> to vector<48x32xbf16>
    %192 = vector.extract_strided_slice %191 {offsets = [0, 0], sizes = [24, 32], strides = [1, 1]} : vector<48x32xbf16> to vector<24x32xbf16>
    %c0_151 = arith.constant 0 : index
    %c7_152 = arith.constant 7 : index
    %c0_153 = arith.constant 0 : index
    %193 = vector.load %arg10[%c0_151, %c7_152, %c0_153] : memref<2x38x32xbf16, #tpu.memory_space<vmem>>, vector<1x24x32xbf16>
    %194 = vector.shape_cast %193 : vector<1x24x32xbf16> to vector<24x32xbf16>
    %195 = vector.shape_cast %192 : vector<24x32xbf16> to vector<1x24x32xbf16>
    tpu.vector_store %arg10[%c0_151, %c7_152, %c0_153], %195 {strides = array<i32>} : memref<2x38x32xbf16, #tpu.memory_space<vmem>>, vector<1x24x32xbf16>,
    %196 = vector.extract_strided_slice %191 {offsets = [24, 0], sizes = [24, 32], strides = [1, 1]} : vector<48x32xbf16> to vector<24x32xbf16>
    %c1_154 = arith.constant 1 : index
    %c7_155 = arith.constant 7 : index
    %c0_156 = arith.constant 0 : index
    %197 = vector.load %arg10[%c1_154, %c7_155, %c0_156] : memref<2x38x32xbf16, #tpu.memory_space<vmem>>, vector<1x24x32xbf16>
    %198 = vector.shape_cast %197 : vector<1x24x32xbf16> to vector<24x32xbf16>
    %199 = vector.shape_cast %196 : vector<24x32xbf16> to vector<1x24x32xbf16>
    tpu.vector_store %arg10[%c1_154, %c7_155, %c0_156], %199 {strides = array<i32>} : memref<2x38x32xbf16, #tpu.memory_space<vmem>>, vector<1x24x32xbf16>,
    %c0_157 = arith.constant 0 : index
    %c0_158 = arith.constant 0 : index
    %c0_159 = arith.constant 0 : index
    %200 = vector.load %arg10[%c0_157, %c0_158, %c0_159] : memref<2x38x32xbf16, #tpu.memory_space<vmem>>, vector<1x24x32xbf16>
    %201 = vector.shape_cast %200 : vector<1x24x32xbf16> to vector<24x32xbf16>
    %c0_160 = arith.constant 0 : index
    %c1_161 = arith.constant 1 : index
    %c0_162 = arith.constant 0 : index
    %202 = vector.load %arg10[%c0_160, %c1_161, %c0_162] : memref<2x38x32xbf16, #tpu.memory_space<vmem>>, vector<1x24x32xbf16>
    %203 = vector.shape_cast %202 : vector<1x24x32xbf16> to vector<24x32xbf16>
    %c0_163 = arith.constant 0 : index
    %c2_164 = arith.constant 2 : index
    %c0_165 = arith.constant 0 : index
    %204 = vector.load %arg10[%c0_163, %c2_164, %c0_165] : memref<2x38x32xbf16, #tpu.memory_space<vmem>>, vector<1x24x32xbf16>
    %205 = vector.shape_cast %204 : vector<1x24x32xbf16> to vector<24x32xbf16>
    %c0_166 = arith.constant 0 : index
    %c6_167 = arith.constant 6 : index
    %c0_168 = arith.constant 0 : index
    %206 = vector.load %arg10[%c0_166, %c6_167, %c0_168] : memref<2x38x32xbf16, #tpu.memory_space<vmem>>, vector<1x24x32xbf16>
    %207 = vector.shape_cast %206 : vector<1x24x32xbf16> to vector<24x32xbf16>
    %c0_169 = arith.constant 0 : index
    %c7_170 = arith.constant 7 : index
    %c0_171 = arith.constant 0 : index
    %208 = vector.load %arg10[%c0_169, %c7_170, %c0_171] : memref<2x38x32xbf16, #tpu.memory_space<vmem>>, vector<1x24x32xbf16>
    %209 = vector.shape_cast %208 : vector<1x24x32xbf16> to vector<24x32xbf16>
    %c0_172 = arith.constant 0 : index
    %c8_173 = arith.constant 8 : index
    %c0_174 = arith.constant 0 : index
    %210 = vector.load %arg10[%c0_172, %c8_173, %c0_174] : memref<2x38x32xbf16, #tpu.memory_space<vmem>>, vector<1x24x32xbf16>
    %211 = vector.shape_cast %210 : vector<1x24x32xbf16> to vector<24x32xbf16>
    %c0_175 = arith.constant 0 : index
    %c12_176 = arith.constant 12 : index
    %c0_177 = arith.constant 0 : index
    %212 = vector.load %arg10[%c0_175, %c12_176, %c0_177] : memref<2x38x32xbf16, #tpu.memory_space<vmem>>, vector<1x24x32xbf16>
    %213 = vector.shape_cast %212 : vector<1x24x32xbf16> to vector<24x32xbf16>
    %c0_178 = arith.constant 0 : index
    %c13_179 = arith.constant 13 : index
    %c0_180 = arith.constant 0 : index
    %214 = vector.load %arg10[%c0_178, %c13_179, %c0_180] : memref<2x38x32xbf16, #tpu.memory_space<vmem>>, vector<1x24x32xbf16>
    %215 = vector.shape_cast %214 : vector<1x24x32xbf16> to vector<24x32xbf16>
    %c0_181 = arith.constant 0 : index
    %c14_182 = arith.constant 14 : index
    %c0_183 = arith.constant 0 : index
    %216 = vector.load %arg10[%c0_181, %c14_182, %c0_183] : memref<2x38x32xbf16, #tpu.memory_space<vmem>>, vector<1x24x32xbf16>
    %217 = vector.shape_cast %216 : vector<1x24x32xbf16> to vector<24x32xbf16>
    %218 = tpu.concatenate %201, %203, %205, %207, %209, %211, %213, %215, %217 in 1 : vector<24x32xbf16>, vector<24x32xbf16>, vector<24x32xbf16>, vector<24x32xbf16>, vector<24x32xbf16>, vector<24x32xbf16>, vector<24x32xbf16>, vector<24x32xbf16>, vector<24x32xbf16> -> vector<24x288xbf16>
    %c1_184 = arith.constant 1 : index
    %c0_185 = arith.constant 0 : index
    %c0_186 = arith.constant 0 : index
    %219 = vector.load %arg10[%c1_184, %c0_185, %c0_186] : memref<2x38x32xbf16, #tpu.memory_space<vmem>>, vector<1x24x32xbf16>
    %220 = vector.shape_cast %219 : vector<1x24x32xbf16> to vector<24x32xbf16>
    %c1_187 = arith.constant 1 : index
    %c1_188 = arith.constant 1 : index
    %c0_189 = arith.constant 0 : index
    %221 = vector.load %arg10[%c1_187, %c1_188, %c0_189] : memref<2x38x32xbf16, #tpu.memory_space<vmem>>, vector<1x24x32xbf16>
    %222 = vector.shape_cast %221 : vector<1x24x32xbf16> to vector<24x32xbf16>
    %c1_190 = arith.constant 1 : index
    %c2_191 = arith.constant 2 : index
    %c0_192 = arith.constant 0 : index
    %223 = vector.load %arg10[%c1_190, %c2_191, %c0_192] : memref<2x38x32xbf16, #tpu.memory_space<vmem>>, vector<1x24x32xbf16>
    %224 = vector.shape_cast %223 : vector<1x24x32xbf16> to vector<24x32xbf16>
    %c1_193 = arith.constant 1 : index
    %c6_194 = arith.constant 6 : index
    %c0_195 = arith.constant 0 : index
    %225 = vector.load %arg10[%c1_193, %c6_194, %c0_195] : memref<2x38x32xbf16, #tpu.memory_space<vmem>>, vector<1x24x32xbf16>
    %226 = vector.shape_cast %225 : vector<1x24x32xbf16> to vector<24x32xbf16>
    %c1_196 = arith.constant 1 : index
    %c7_197 = arith.constant 7 : index
    %c0_198 = arith.constant 0 : index
    %227 = vector.load %arg10[%c1_196, %c7_197, %c0_198] : memref<2x38x32xbf16, #tpu.memory_space<vmem>>, vector<1x24x32xbf16>
    %228 = vector.shape_cast %227 : vector<1x24x32xbf16> to vector<24x32xbf16>
    %c1_199 = arith.constant 1 : index
    %c8_200 = arith.constant 8 : index
    %c0_201 = arith.constant 0 : index
    %229 = vector.load %arg10[%c1_199, %c8_200, %c0_201] : memref<2x38x32xbf16, #tpu.memory_space<vmem>>, vector<1x24x32xbf16>
    %230 = vector.shape_cast %229 : vector<1x24x32xbf16> to vector<24x32xbf16>
    %c1_202 = arith.constant 1 : index
    %c12_203 = arith.constant 12 : index
    %c0_204 = arith.constant 0 : index
    %231 = vector.load %arg10[%c1_202, %c12_203, %c0_204] : memref<2x38x32xbf16, #tpu.memory_space<vmem>>, vector<1x24x32xbf16>
    %232 = vector.shape_cast %231 : vector<1x24x32xbf16> to vector<24x32xbf16>
    %c1_205 = arith.constant 1 : index
    %c13_206 = arith.constant 13 : index
    %c0_207 = arith.constant 0 : index
    %233 = vector.load %arg10[%c1_205, %c13_206, %c0_207] : memref<2x38x32xbf16, #tpu.memory_space<vmem>>, vector<1x24x32xbf16>
    %234 = vector.shape_cast %233 : vector<1x24x32xbf16> to vector<24x32xbf16>
    %c1_208 = arith.constant 1 : index
    %c14_209 = arith.constant 14 : index
    %c0_210 = arith.constant 0 : index
    %235 = vector.load %arg10[%c1_208, %c14_209, %c0_210] : memref<2x38x32xbf16, #tpu.memory_space<vmem>>, vector<1x24x32xbf16>
    %236 = vector.shape_cast %235 : vector<1x24x32xbf16> to vector<24x32xbf16>
    %237 = tpu.concatenate %220, %222, %224, %226, %228, %230, %232, %234, %236 in 1 : vector<24x32xbf16>, vector<24x32xbf16>, vector<24x32xbf16>, vector<24x32xbf16>, vector<24x32xbf16>, vector<24x32xbf16>, vector<24x32xbf16>, vector<24x32xbf16>, vector<24x32xbf16> -> vector<24x288xbf16>
    %238 = tpu.concatenate %218, %237 in 0 : vector<24x288xbf16>, vector<24x288xbf16> -> vector<48x288xbf16>
    %c1_211 = arith.constant 1 : index
    %c0_212 = arith.constant 0 : index
    %c0_213 = arith.constant 0 : index
    %239 = vector.load %arg3[%c1_211, %c0_212, %c0_213] : memref<2x288x16xbf16, #tpu.memory_space<vmem>>, vector<1x288x16xbf16>
    %240 = vector.shape_cast %239 : vector<1x288x16xbf16> to vector<288x16xbf16>
    %cst_214 = arith.constant dense<0.000000e+00> : vector<48x16xf32>
    %241 = tpu.matmul %238, %240, %cst_214 {dimension_numbers = #tpu.dot_dimension_numbers<[1], [0], [0], [1], [0, 0, 1, 1], [], []>} : vector<48x288xbf16>, vector<288x16xbf16>, vector<48x16xf32> -> vector<48x16xf32>
    %242 = vector.broadcast %20 : vector<48x1xf32> to vector<48x16xf32>
    %243 = arith.mulf %241, %242 : vector<48x16xf32>
    %cst_215 = arith.constant dense<0.000000e+00> : vector<16xf32>
    %244 = vector.multi_reduction <add>, %243, %cst_215 [0] : vector<48x16xf32> to vector<16xf32>
    %245 = vector.shape_cast %244 : vector<16xf32> to vector<1x16xf32>
    %cst_216 = arith.constant 3.200000e+01 : f32
    %246 = vector.broadcast %cst_216 : f32 to vector<1x16xf32>
    %247 = arith.divf %245, %246 : vector<1x16xf32>
    %248 = arith.mulf %243, %241 : vector<48x16xf32>
    %cst_217 = arith.constant dense<0.000000e+00> : vector<16xf32>
    %249 = vector.multi_reduction <add>, %248, %cst_217 [0] : vector<48x16xf32> to vector<16xf32>
    %250 = vector.shape_cast %249 : vector<16xf32> to vector<1x16xf32>
    %cst_218 = arith.constant 3.200000e+01 : f32
    %251 = vector.broadcast %cst_218 : f32 to vector<1x16xf32>
    %252 = arith.divf %250, %251 : vector<1x16xf32>
    %253 = arith.mulf %247, %247 : vector<1x16xf32>
    %254 = arith.subf %252, %253 : vector<1x16xf32>
    %cst_219 = arith.constant 0.000000e+00 : f32
    %255 = vector.broadcast %cst_219 : f32 to vector<1x16xf32>
    %256 = arith.maximumf %254, %255 : vector<1x16xf32>
    %c1_220 = arith.constant 1 : index
    %c0_221 = arith.constant 0 : index
    %c0_222 = arith.constant 0 : index
    %257 = vector.load %arg4[%c1_220, %c0_221, %c0_222] : memref<2x1x16xf32, #tpu.memory_space<vmem>>, vector<1x1x16xf32>
    %258 = vector.shape_cast %257 : vector<1x1x16xf32> to vector<1x16xf32>
    %cst_223 = arith.constant 9.99999974E-6 : f32
    %259 = vector.broadcast %cst_223 : f32 to vector<1x16xf32>
    %260 = arith.addf %256, %259 : vector<1x16xf32>
    %261 = math.rsqrt %260 : vector<1x16xf32>
    %262 = arith.mulf %258, %261 : vector<1x16xf32>
    %c1_224 = arith.constant 1 : index
    %c0_225 = arith.constant 0 : index
    %c0_226 = arith.constant 0 : index
    %263 = vector.load %arg5[%c1_224, %c0_225, %c0_226] : memref<2x1x16xf32, #tpu.memory_space<vmem>>, vector<1x1x16xf32>
    %264 = vector.shape_cast %263 : vector<1x1x16xf32> to vector<1x16xf32>
    %265 = arith.mulf %247, %262 : vector<1x16xf32>
    %266 = arith.subf %264, %265 : vector<1x16xf32>
    %267 = vector.broadcast %262 : vector<1x16xf32> to vector<48x16xf32>
    %268 = arith.mulf %241, %267 : vector<48x16xf32>
    %269 = vector.broadcast %266 : vector<1x16xf32> to vector<48x16xf32>
    %270 = arith.addf %268, %269 : vector<48x16xf32>
    %cst_227 = arith.constant 0.000000e+00 : f32
    %271 = vector.broadcast %cst_227 : f32 to vector<48x16xf32>
    %272 = arith.maximumf %270, %271 : vector<48x16xf32>
    %273 = arith.truncf %272 : vector<48x16xf32> to vector<48x16xbf16>
    %c1_228 = arith.constant 1 : index
    %c0_229 = arith.constant 0 : index
    %c0_230 = arith.constant 0 : index
    %274 = vector.load %arg6[%c1_228, %c0_229, %c0_230] : memref<2x16x32xbf16, #tpu.memory_space<vmem>>, vector<1x16x32xbf16>
    %275 = vector.shape_cast %274 : vector<1x16x32xbf16> to vector<16x32xbf16>
    %cst_231 = arith.constant dense<0.000000e+00> : vector<48x32xf32>
    %276 = tpu.matmul %273, %275, %cst_231 {dimension_numbers = #tpu.dot_dimension_numbers<[1], [0], [0], [1], [0, 0, 1, 1], [], []>} : vector<48x16xbf16>, vector<16x32xbf16>, vector<48x32xf32> -> vector<48x32xf32>
    %277 = vector.broadcast %20 : vector<48x1xf32> to vector<48x32xf32>
    %278 = arith.mulf %276, %277 : vector<48x32xf32>
    %cst_232 = arith.constant dense<0.000000e+00> : vector<32xf32>
    %279 = vector.multi_reduction <add>, %278, %cst_232 [0] : vector<48x32xf32> to vector<32xf32>
    %280 = vector.shape_cast %279 : vector<32xf32> to vector<1x32xf32>
    %cst_233 = arith.constant 3.200000e+01 : f32
    %281 = vector.broadcast %cst_233 : f32 to vector<1x32xf32>
    %282 = arith.divf %280, %281 : vector<1x32xf32>
    %283 = arith.mulf %278, %276 : vector<48x32xf32>
    %cst_234 = arith.constant dense<0.000000e+00> : vector<32xf32>
    %284 = vector.multi_reduction <add>, %283, %cst_234 [0] : vector<48x32xf32> to vector<32xf32>
    %285 = vector.shape_cast %284 : vector<32xf32> to vector<1x32xf32>
    %cst_235 = arith.constant 3.200000e+01 : f32
    %286 = vector.broadcast %cst_235 : f32 to vector<1x32xf32>
    %287 = arith.divf %285, %286 : vector<1x32xf32>
    %288 = arith.mulf %282, %282 : vector<1x32xf32>
    %289 = arith.subf %287, %288 : vector<1x32xf32>
    %cst_236 = arith.constant 0.000000e+00 : f32
    %290 = vector.broadcast %cst_236 : f32 to vector<1x32xf32>
    %291 = arith.maximumf %289, %290 : vector<1x32xf32>
    %c1_237 = arith.constant 1 : index
    %c0_238 = arith.constant 0 : index
    %c0_239 = arith.constant 0 : index
    %292 = vector.load %arg7[%c1_237, %c0_238, %c0_239] : memref<2x1x32xf32, #tpu.memory_space<vmem>>, vector<1x1x32xf32>
    %293 = vector.shape_cast %292 : vector<1x1x32xf32> to vector<1x32xf32>
    %cst_240 = arith.constant 9.99999974E-6 : f32
    %294 = vector.broadcast %cst_240 : f32 to vector<1x32xf32>
    %295 = arith.addf %291, %294 : vector<1x32xf32>
    %296 = math.rsqrt %295 : vector<1x32xf32>
    %297 = arith.mulf %293, %296 : vector<1x32xf32>
    %c1_241 = arith.constant 1 : index
    %c0_242 = arith.constant 0 : index
    %c0_243 = arith.constant 0 : index
    %298 = vector.load %arg8[%c1_241, %c0_242, %c0_243] : memref<2x1x32xf32, #tpu.memory_space<vmem>>, vector<1x1x32xf32>
    %299 = vector.shape_cast %298 : vector<1x1x32xf32> to vector<1x32xf32>
    %300 = arith.mulf %282, %297 : vector<1x32xf32>
    %301 = arith.subf %299, %300 : vector<1x32xf32>
    %302 = vector.broadcast %297 : vector<1x32xf32> to vector<48x32xf32>
    %303 = arith.mulf %276, %302 : vector<48x32xf32>
    %304 = vector.broadcast %301 : vector<1x32xf32> to vector<48x32xf32>
    %305 = arith.addf %303, %304 : vector<48x32xf32>
    %306 = arith.addf %305, %188 : vector<48x32xf32>
    %cst_244 = arith.constant 0.000000e+00 : f32
    %307 = vector.broadcast %cst_244 : f32 to vector<48x32xf32>
    %308 = arith.maximumf %306, %307 : vector<48x32xf32>
    %309 = vector.shape_cast %308 : vector<48x32xf32> to vector<2x24x32xf32>
    %c0_245 = arith.constant 0 : index
    %c0_246 = arith.constant 0 : index
    %c0_247 = arith.constant 0 : index
    %310 = vector.load %arg9[%c0_245, %c0_246, %c0_247] : memref<2x24x32xf32, #tpu.memory_space<vmem>>, vector<2x24x32xf32>
    tpu.vector_store %arg9[%c0_245, %c0_246, %c0_247], %309 {strides = array<i32>} : memref<2x24x32xf32, #tpu.memory_space<vmem>>, vector<2x24x32xf32>,
    return
  }
}

</mosaic_0001>

<llo_original>
// kernel: res_encoder_forward.3
$region0: #{res_encoder_forward.3}
  #allocation0 [shape = 'u32[]', space=smem, size = 0x4, offset = 0x4, fixed_abs, tag = 'smem constant byte address 0x4 - core index']
  #allocation1 [shape = 'u32[144,128]{1,0:T(1,128)}', space=vmem, size = 0x12000, scoped, tag = 'internal scratch']
  %s0 = inlined_call_operand.vmem [shape: bf16[4,2,82,4], index: 0, kind: input, shape index: {}]
  %s1 = inlined_call_operand.vmem [shape: bf16[64,16], index: 1, kind: input, shape index: {}]
  %s2 = inlined_call_operand.vmem [shape: f32[1,16], index: 2, kind: input, shape index: {}]
  %s3 = inlined_call_operand.vmem [shape: bf16[2,72,16], index: 3, kind: output, shape index: {}]
  %s4 = sld [smem:[#allocation0]]
  $region22: #{res_encoder_forward.3} parent=0
    _
  %s6 = ssub.s32 1, %s4
  %s7 = scalar_select 0, %s6, %s4
  // Predicated region
  $region2: #{res_encoder_forward.3} parent=0 // pred_check
    _
  $region3: #{res_encoder_forward.3} parent=0 // pred_check_branch
    %9 = sbr.rel (0) target = $region5
  $region4: #{res_encoder_forward.3} parent=0 // pred_region
    _
  $region5: #{res_encoder_forward.3} parent=0 // pred_fallthru
    _
  // Predicated region
  $region6: #{res_encoder_forward.3} parent=0 // pred_check
    _
  $region7: #{res_encoder_forward.3} parent=0 // pred_check_branch
    %11 = sbr.rel (0) target = $region9
  $region8: #{res_encoder_forward.3} parent=0 // pred_region
    _
  $region9: #{res_encoder_forward.3} parent=0 // pred_fallthru
    _
  // Predicated region
  $region10: #{res_encoder_forward.3} parent=0 // pred_check
    _
  $region11: #{res_encoder_forward.3} parent=0 // pred_check_branch
    %13 = sbr.rel (0) target = $region13
  $region12: #{res_encoder_forward.3} parent=0 // pred_region
    _
  $region13: #{res_encoder_forward.3} parent=0 // pred_fallthru
    _
  %v15 = vld [vmem:[%s0] sm:$0xf]
  %v16 = vld [vmem:[%s0 + $0x4] sm:$0xf]
  %v17 = vld [vmem:[%s0 + $0x8] sm:$0xf]
  %v18 = vld [vmem:[%s0 + $0xc] sm:$0xf]
  %v19 = vld [vmem:[%s0 + $0x10] sm:$0xf]
  %v20 = vld [vmem:[%s0 + $0x14] sm:$0xf]
  %v21 = vld [vmem:[%s0 + $0x18] sm:$0xf]
  %v22 = vld [vmem:[%s0 + $0x1c] sm:$0xf]
  %v23 = vld [vmem:[%s0 + $0x20] sm:$0xf]
  %v24 = vld [vmem:[%s0 + $0x24] sm:$0x1]
  %v25 = vld [vmem:[%s0 + $0x24] sm:$0xf]
  %v26 = vld [vmem:[%s0 + $0x28] sm:$0x1]
  %v27 = vld [vmem:[%s0 + $0x4] sm:$0xe]
  %s28 = scalar_lea.vmem %s0, 88
  %v29 = vld [vmem:[%s28] sm:$0xf]
  %v30 = vld [vmem:[%s28 + $0x4] sm:$0xf]
  %v31 = vld [vmem:[%s28 + $0x8] sm:$0xf]
  %v32 = vld [vmem:[%s28 + $0xc] sm:$0xf]
  %v33 = vld [vmem:[%s28 + $0x10] sm:$0xf]
  %v34 = vld [vmem:[%s28 + $0x14] sm:$0xf]
  %v35 = vld [vmem:[%s28 + $0x18] sm:$0xf]
  %v36 = vld [vmem:[%s28 + $0x1c] sm:$0xf]
  %v37 = vld [vmem:[%s28 + $0x20] sm:$0xf]
  %v38 = vld [vmem:[%s28 + $0x24] sm:$0x1]
  %v39 = vld [vmem:[%s28 + $0x24] sm:$0xf]
  %v40 = vld [vmem:[%s28 + $0x28] sm:$0x1]
  %v41 = vld [vmem:[%s28 + $0x4] sm:$0xe]
  %s42 = scalar_lea.vmem %s0, 176
  %v43 = vld [vmem:[%s42] sm:$0xf]
  %v44 = vld [vmem:[%s42 + $0x4] sm:$0xf]
  %v45 = vld [vmem:[%s42 + $0x8] sm:$0xf]
  %v46 = vld [vmem:[%s42 + $0xc] sm:$0xf]
  %v47 = vld [vmem:[%s42 + $0x10] sm:$0xf]
  %v48 = vld [vmem:[%s42 + $0x14] sm:$0xf]
  %v49 = vld [vmem:[%s42 + $0x18] sm:$0xf]
  %v50 = vld [vmem:[%s42 + $0x1c] sm:$0xf]
  %v51 = vld [vmem:[%s42 + $0x20] sm:$0xf]
  %v52 = vld [vmem:[%s42 + $0x24] sm:$0x1]
  %v53 = vld [vmem:[%s42 + $0x24] sm:$0xf]
  %v54 = vld [vmem:[%s42 + $0x28] sm:$0x1]
  %v55 = vld [vmem:[%s42 + $0x4] sm:$0xe]
  %s56 = scalar_lea.vmem %s0, 264
  %v57 = vld [vmem:[%s56] sm:$0xf]
  %v58 = vld [vmem:[%s56 + $0x4] sm:$0xf]
  %v59 = vld [vmem:[%s56 + $0x8] sm:$0xf]
  %v60 = vld [vmem:[%s56 + $0xc] sm:$0xf]
  %v61 = vld [vmem:[%s56 + $0x10] sm:$0xf]
  %v62 = vld [vmem:[%s56 + $0x14] sm:$0xf]
  %v63 = vld [vmem:[%s56 + $0x18] sm:$0xf]
  %v64 = vld [vmem:[%s56 + $0x1c] sm:$0xf]
  %v65 = vld [vmem:[%s56 + $0x20] sm:$0xf]
  %v66 = vld [vmem:[%s56 + $0x24] sm:$0x1]
  %v67 = vld [vmem:[%s56 + $0x24] sm:$0xf]
  %v68 = vld [vmem:[%s56 + $0x28] sm:$0x1]
  %v69 = vld [vmem:[%s56 + $0x4] sm:$0xe]
  %v79 = vunpack.c.l.b16 %v15
  %v80 = vunpack.c.l.b16 %v16
  %v81 = vunpack.c.l.b16 %v17
  %v82 = vunpack.c.l.b16 %v18
  %v83 = vunpack.c.l.b16 %v19
  %v84 = vunpack.c.l.b16 %v20
  %v85 = vunpack.c.l.b16 %v21
  %v86 = vunpack.c.l.b16 %v22
  %v87 = vunpack.c.l.b16 %v23
  %v88 = vpack.c.b16 %v80, %v79
  %v89 = vpack.c.b16 %v82, %v81
  %v90 = vpack.c.b16 %v84, %v83
  %v91 = vpack.c.b16 %v86, %v85
  %v92 = vpack.c.b16 %v87, %v87
  %v94 = vunpack.c.l.b16 %v24
  %v95 = vpack.c.b16 %v94, %v87
  %vm96 = vsmask.f32 7424
  %v98 = vshrl.u32 %v88, 16
  %v100 = vshll.u32 %v88, 16
  %v102 = vrot.slane %v100, 1
  %v103 = vor.u32 %v98, %v102
  %v105 = vshll.u32 %v89, 16
  %v107 = vrot.slane %v105, 1
  %v108 = vsel %vm96, %v103, %v107
  %v109 = vshrl.u32 %v89, 16
  %v111 = vor.u32 %v109, %v107
  %v113 = vshll.u32 %v90, 16
  %v115 = vrot.slane %v113, 1
  %v116 = vsel %vm96, %v111, %v115
  %v117 = vshrl.u32 %v90, 16
  %v119 = vor.u32 %v117, %v115
  %v121 = vshll.u32 %v91, 16
  %v123 = vrot.slane %v121, 1
  %v124 = vsel %vm96, %v119, %v123
  %v125 = vshrl.u32 %v91, 16
  %v127 = vor.u32 %v125, %v123
  %v129 = vshll.u32 %v95, 16
  %v131 = vrot.slane %v129, 1
  %v132 = vsel %vm96, %v127, %v131
  %v133 = vshrl.u32 %v95, 16
  %v135 = vor.u32 %v133, %v131
  %136 = vrot.lane.b32.xlu0 %v108, 4
  %v137 = vpop.permute.xlu0 %136
  %138 = vrot.lane.b32.xlu0 %v116, 4
  %v139 = vpop.permute.xlu0 %138
  %140 = vrot.lane.b32.xlu0 %v124, 4
  %v141 = vpop.permute.xlu0 %140
  %142 = vrot.lane.b32.xlu0 %v132, 4
  %v143 = vpop.permute.xlu0 %142
  %144 = vrot.lane.b32.xlu0 %v135, 4
  %v145 = vpop.permute.xlu0 %144
  %v148 = vunpack.c.l.b16 %v25
  %v149 = vunpack.c.l.b16 %v26
  %v150 = vpack.c.b16 %v81, %v80
  %v151 = vpack.c.b16 %v83, %v82
  %v152 = vpack.c.b16 %v85, %v84
  %v153 = vpack.c.b16 %v87, %v86
  %v154 = vpack.c.b16 %v149, %v148
  %v156 = vshrl.u32 %v150, 16
  %v158 = vshll.u32 %v150, 16
  %v160 = vrot.slane %v158, 1
  %v161 = vor.u32 %v156, %v160
  %v163 = vshll.u32 %v151, 16
  %v165 = vrot.slane %v163, 1
  %v166 = vsel %vm96, %v161, %v165
  %v167 = vshrl.u32 %v151, 16
  %v169 = vor.u32 %v167, %v165
  %v171 = vshll.u32 %v152, 16
  %v173 = vrot.slane %v171, 1
  %v174 = vsel %vm96, %v169, %v173
  %v175 = vshrl.u32 %v152, 16
  %v177 = vor.u32 %v175, %v173
  %v179 = vshll.u32 %v153, 16
  %v181 = vrot.slane %v179, 1
  %v182 = vsel %vm96, %v177, %v181
  %v183 = vshrl.u32 %v153, 16
  %v185 = vor.u32 %v183, %v181
  %v187 = vshll.u32 %v154, 16
  %v189 = vrot.slane %v187, 1
  %v190 = vsel %vm96, %v185, %v189
  %v191 = vshrl.u32 %v154, 16
  %v193 = vor.u32 %v191, %v189
  %194 = vrot.lane.b32.xlu0 %v166, 8
  %v195 = vpop.permute.xlu0 %194
  %196 = vrot.lane.b32.xlu0 %v174, 8
  %v197 = vpop.permute.xlu0 %196
  %198 = vrot.lane.b32.xlu0 %v182, 8
  %v199 = vpop.permute.xlu0 %198
  %200 = vrot.lane.b32.xlu0 %v190, 8
  %v201 = vpop.permute.xlu0 %200
  %202 = vrot.lane.b32.xlu0 %v193, 8
  %v203 = vpop.permute.xlu0 %202
  %v205 = vunpack.c.l.b16 %v27
  %v206 = vpack.c.b16 %v81, %v205
  %vm207 = vcmask 1046528
  %v208 = vrot.slane %v206, 1
  %v209 = vrot.slane %v151, 1
  %v210 = vsel %vm207, %v208, %v209
  %v211 = vrot.slane %v152, 1
  %v212 = vsel %vm207, %v209, %v211
  %v213 = vrot.slane %v153, 1
  %v214 = vsel %vm207, %v211, %v213
  %v215 = vrot.slane %v154, 1
  %v216 = vsel %vm207, %v213, %v215
  %217 = vrot.lane.b32.xlu0 %v210, 12
  %v218 = vpop.permute.xlu0 %217
  %219 = vrot.lane.b32.xlu0 %v212, 12
  %v220 = vpop.permute.xlu0 %219
  %221 = vrot.lane.b32.xlu0 %v214, 12
  %v222 = vpop.permute.xlu0 %221
  %223 = vrot.lane.b32.xlu0 %v216, 12
  %v224 = vpop.permute.xlu0 %223
  %225 = vrot.lane.b32.xlu0 %v215, 12
  %v226 = vpop.permute.xlu0 %225
  %v236 = vunpack.c.l.b16 %v29
  %v237 = vunpack.c.l.b16 %v30
  %v238 = vunpack.c.l.b16 %v31
  %v239 = vunpack.c.l.b16 %v32
  %v240 = vunpack.c.l.b16 %v33
  %v241 = vunpack.c.l.b16 %v34
  %v242 = vunpack.c.l.b16 %v35
  %v243 = vunpack.c.l.b16 %v36
  %v244 = vunpack.c.l.b16 %v37
  %v245 = vpack.c.b16 %v237, %v236
  %v246 = vpack.c.b16 %v239, %v238
  %v247 = vpack.c.b16 %v241, %v240
  %v248 = vpack.c.b16 %v243, %v242
  %v249 = vpack.c.b16 %v244, %v244
  %250 = vrot.lane.b32.xlu0 %v245, 16
  %v251 = vpop.permute.xlu0 %250
  %252 = vrot.lane.b32.xlu0 %v246, 16
  %v253 = vpop.permute.xlu0 %252
  %254 = vrot.lane.b32.xlu0 %v247, 16
  %v255 = vpop.permute.xlu0 %254
  %256 = vrot.lane.b32.xlu0 %v248, 16
  %v257 = vpop.permute.xlu0 %256
  %258 = vrot.lane.b32.xlu0 %v249, 16
  %v259 = vpop.permute.xlu0 %258
  %v261 = vunpack.c.l.b16 %v38
  %v262 = vpack.c.b16 %v261, %v244
  %v264 = vshrl.u32 %v245, 16
  %v266 = vshll.u32 %v245, 16
  %v268 = vrot.slane %v266, 1
  %v269 = vor.u32 %v264, %v268
  %v271 = vshll.u32 %v246, 16
  %v273 = vrot.slane %v271, 1
  %v274 = vsel %vm96, %v269, %v273
  %v275 = vshrl.u32 %v246, 16
  %v277 = vor.u32 %v275, %v273
  %v279 = vshll.u32 %v247, 16
  %v281 = vrot.slane %v279, 1
  %v282 = vsel %vm96, %v277, %v281
  %v283 = vshrl.u32 %v247, 16
  %v285 = vor.u32 %v283, %v281
  %v287 = vshll.u32 %v248, 16
  %v289 = vrot.slane %v287, 1
  %v290 = vsel %vm96, %v285, %v289
  %v291 = vshrl.u32 %v248, 16
  %v293 = vor.u32 %v291, %v289
  %v295 = vshll.u32 %v262, 16
  %v297 = vrot.slane %v295, 1
  %v298 = vsel %vm96, %v293, %v297
  %v299 = vshrl.u32 %v262, 16
  %v301 = vor.u32 %v299, %v297
  %302 = vrot.lane.b32.xlu0 %v274, 20
  %v303 = vpop.permute.xlu0 %302
  %304 = vrot.lane.b32.xlu0 %v282, 20
  %v305 = vpop.permute.xlu0 %304
  %306 = vrot.lane.b32.xlu0 %v290, 20
  %v307 = vpop.permute.xlu0 %306
  %308 = vrot.lane.b32.xlu0 %v298, 20
  %v309 = vpop.permute.xlu0 %308
  %310 = vrot.lane.b32.xlu0 %v301, 20
  %v311 = vpop.permute.xlu0 %310
  %v314 = vunpack.c.l.b16 %v39
  %v315 = vunpack.c.l.b16 %v40
  %v316 = vpack.c.b16 %v238, %v237
  %v317 = vpack.c.b16 %v240, %v239
  %v318 = vpack.c.b16 %v242, %v241
  %v319 = vpack.c.b16 %v244, %v243
  %v320 = vpack.c.b16 %v315, %v314
  %v322 = vshrl.u32 %v316, 16
  %v324 = vshll.u32 %v316, 16
  %v326 = vrot.slane %v324, 1
  %v327 = vor.u32 %v322, %v326
  %v329 = vshll.u32 %v317, 16
  %v331 = vrot.slane %v329, 1
  %v332 = vsel %vm96, %v327, %v331
  %v333 = vshrl.u32 %v317, 16
  %v335 = vor.u32 %v333, %v331
  %v337 = vshll.u32 %v318, 16
  %v339 = vrot.slane %v337, 1
  %v340 = vsel %vm96, %v335, %v339
  %v341 = vshrl.u32 %v318, 16
  %v343 = vor.u32 %v341, %v339
  %v345 = vshll.u32 %v319, 16
  %v347 = vrot.slane %v345, 1
  %v348 = vsel %vm96, %v343, %v347
  %v349 = vshrl.u32 %v319, 16
  %v351 = vor.u32 %v349, %v347
  %v353 = vshll.u32 %v320, 16
  %v355 = vrot.slane %v353, 1
  %v356 = vsel %vm96, %v351, %v355
  %v357 = vshrl.u32 %v320, 16
  %v359 = vor.u32 %v357, %v355
  %360 = vrot.lane.b32.xlu0 %v332, 24
  %v361 = vpop.permute.xlu0 %360
  %362 = vrot.lane.b32.xlu0 %v340, 24
  %v363 = vpop.permute.xlu0 %362
  %364 = vrot.lane.b32.xlu0 %v348, 24
  %v365 = vpop.permute.xlu0 %364
  %366 = vrot.lane.b32.xlu0 %v356, 24
  %v367 = vpop.permute.xlu0 %366
  %368 = vrot.lane.b32.xlu0 %v359, 24
  %v369 = vpop.permute.xlu0 %368
  %v371 = vunpack.c.l.b16 %v41
  %v372 = vpack.c.b16 %v238, %v371
  %v373 = vrot.slane %v372, 1
  %v374 = vrot.slane %v317, 1
  %v375 = vsel %vm207, %v373, %v374
  %v376 = vrot.slane %v318, 1
  %v377 = vsel %vm207, %v374, %v376
  %v378 = vrot.slane %v319, 1
  %v379 = vsel %vm207, %v376, %v378
  %v380 = vrot.slane %v320, 1
  %v381 = vsel %vm207, %v378, %v380
  %382 = vrot.lane.b32.xlu0 %v375, 28
  %v383 = vpop.permute.xlu0 %382
  %384 = vrot.lane.b32.xlu0 %v377, 28
  %v385 = vpop.permute.xlu0 %384
  %386 = vrot.lane.b32.xlu0 %v379, 28
  %v387 = vpop.permute.xlu0 %386
  %388 = vrot.lane.b32.xlu0 %v381, 28
  %v389 = vpop.permute.xlu0 %388
  %390 = vrot.lane.b32.xlu0 %v380, 28
  %v391 = vpop.permute.xlu0 %390
  %v401 = vunpack.c.l.b16 %v43
  %v402 = vunpack.c.l.b16 %v44
  %v403 = vunpack.c.l.b16 %v45
  %v404 = vunpack.c.l.b16 %v46
  %v405 = vunpack.c.l.b16 %v47
  %v406 = vunpack.c.l.b16 %v48
  %v407 = vunpack.c.l.b16 %v49
  %v408 = vunpack.c.l.b16 %v50
  %v409 = vunpack.c.l.b16 %v51
  %v410 = vpack.c.b16 %v402, %v401
  %v411 = vpack.c.b16 %v404, %v403
  %v412 = vpack.c.b16 %v406, %v405
  %v413 = vpack.c.b16 %v408, %v407
  %v414 = vpack.c.b16 %v409, %v409
  %415 = vrot.lane.b32.xlu0 %v410, 32
  %v416 = vpop.permute.xlu0 %415
  %417 = vrot.lane.b32.xlu0 %v411, 32
  %v418 = vpop.permute.xlu0 %417
  %419 = vrot.lane.b32.xlu0 %v412, 32
  %v420 = vpop.permute.xlu0 %419
  %421 = vrot.lane.b32.xlu0 %v413, 32
  %v422 = vpop.permute.xlu0 %421
  %423 = vrot.lane.b32.xlu0 %v414, 32
  %v424 = vpop.permute.xlu0 %423
  %v426 = vunpack.c.l.b16 %v52
  %v427 = vpack.c.b16 %v426, %v409
  %v429 = vshrl.u32 %v410, 16
  %v431 = vshll.u32 %v410, 16
  %v433 = vrot.slane %v431, 1
  %v434 = vor.u32 %v429, %v433
  %v436 = vshll.u32 %v411, 16
  %v438 = vrot.slane %v436, 1
  %v439 = vsel %vm96, %v434, %v438
  %v440 = vshrl.u32 %v411, 16
  %v442 = vor.u32 %v440, %v438
  %v444 = vshll.u32 %v412, 16
  %v446 = vrot.slane %v444, 1
  %v447 = vsel %vm96, %v442, %v446
  %v448 = vshrl.u32 %v412, 16
  %v450 = vor.u32 %v448, %v446
  %v452 = vshll.u32 %v413, 16
  %v454 = vrot.slane %v452, 1
  %v455 = vsel %vm96, %v450, %v454
  %v456 = vshrl.u32 %v413, 16
  %v458 = vor.u32 %v456, %v454
  %v460 = vshll.u32 %v427, 16
  %v462 = vrot.slane %v460, 1
  %v463 = vsel %vm96, %v458, %v462
  %v464 = vshrl.u32 %v427, 16
  %v466 = vor.u32 %v464, %v462
  %467 = vrot.lane.b32.xlu0 %v439, 36
  %v468 = vpop.permute.xlu0 %467
  %469 = vrot.lane.b32.xlu0 %v447, 36
  %v470 = vpop.permute.xlu0 %469
  %471 = vrot.lane.b32.xlu0 %v455, 36
  %v472 = vpop.permute.xlu0 %471
  %473 = vrot.lane.b32.xlu0 %v463, 36
  %v474 = vpop.permute.xlu0 %473
  %475 = vrot.lane.b32.xlu0 %v466, 36
  %v476 = vpop.permute.xlu0 %475
  %v479 = vunpack.c.l.b16 %v53
  %v480 = vunpack.c.l.b16 %v54
  %v481 = vpack.c.b16 %v403, %v402
  %v482 = vpack.c.b16 %v405, %v404
  %v483 = vpack.c.b16 %v407, %v406
  %v484 = vpack.c.b16 %v409, %v408
  %v485 = vpack.c.b16 %v480, %v479
  %v487 = vshrl.u32 %v481, 16
  %v489 = vshll.u32 %v481, 16
  %v491 = vrot.slane %v489, 1
  %v492 = vor.u32 %v487, %v491
  %v494 = vshll.u32 %v482, 16
  %v496 = vrot.slane %v494, 1
  %v497 = vsel %vm96, %v492, %v496
  %v498 = vshrl.u32 %v482, 16
  %v500 = vor.u32 %v498, %v496
  %v502 = vshll.u32 %v483, 16
  %v504 = vrot.slane %v502, 1
  %v505 = vsel %vm96, %v500, %v504
  %v506 = vshrl.u32 %v483, 16
  %v508 = vor.u32 %v506, %v504
  %v510 = vshll.u32 %v484, 16
  %v512 = vrot.slane %v510, 1
  %v513 = vsel %vm96, %v508, %v512
  %v514 = vshrl.u32 %v484, 16
  %v516 = vor.u32 %v514, %v512
  %v518 = vshll.u32 %v485, 16
  %v520 = vrot.slane %v518, 1
  %v521 = vsel %vm96, %v516, %v520
  %v522 = vshrl.u32 %v485, 16
  %v524 = vor.u32 %v522, %v520
  %525 = vrot.lane.b32.xlu0 %v497, 40
  %v526 = vpop.permute.xlu0 %525
  %527 = vrot.lane.b32.xlu0 %v505, 40
  %v528 = vpop.permute.xlu0 %527
  %529 = vrot.lane.b32.xlu0 %v513, 40
  %v530 = vpop.permute.xlu0 %529
  %531 = vrot.lane.b32.xlu0 %v521, 40
  %v532 = vpop.permute.xlu0 %531
  %533 = vrot.lane.b32.xlu0 %v524, 40
  %v534 = vpop.permute.xlu0 %533
  %v536 = vunpack.c.l.b16 %v55
  %v537 = vpack.c.b16 %v403, %v536
  %v538 = vrot.slane %v537, 1
  %v539 = vrot.slane %v482, 1
  %v540 = vsel %vm207, %v538, %v539
  %v541 = vrot.slane %v483, 1
  %v542 = vsel %vm207, %v539, %v541
  %v543 = vrot.slane %v484, 1
  %v544 = vsel %vm207, %v541, %v543
  %v545 = vrot.slane %v485, 1
  %v546 = vsel %vm207, %v543, %v545
  %547 = vrot.lane.b32.xlu0 %v540, 44
  %v548 = vpop.permute.xlu0 %547
  %549 = vrot.lane.b32.xlu0 %v542, 44
  %v550 = vpop.permute.xlu0 %549
  %551 = vrot.lane.b32.xlu0 %v544, 44
  %v552 = vpop.permute.xlu0 %551
  %553 = vrot.lane.b32.xlu0 %v546, 44
  %v554 = vpop.permute.xlu0 %553
  %555 = vrot.lane.b32.xlu0 %v545, 44
  %v556 = vpop.permute.xlu0 %555
  %v566 = vunpack.c.l.b16 %v57
  %v567 = vunpack.c.l.b16 %v58
  %v568 = vunpack.c.l.b16 %v59
  %v569 = vunpack.c.l.b16 %v60
  %v570 = vunpack.c.l.b16 %v61
  %v571 = vunpack.c.l.b16 %v62
  %v572 = vunpack.c.l.b16 %v63
  %v573 = vunpack.c.l.b16 %v64
  %v574 = vunpack.c.l.b16 %v65
  %v575 = vpack.c.b16 %v567, %v566
  %v576 = vpack.c.b16 %v569, %v568
  %v577 = vpack.c.b16 %v571, %v570
  %v578 = vpack.c.b16 %v573, %v572
  %v579 = vpack.c.b16 %v574, %v574
  %580 = vrot.lane.b32.xlu0 %v575, 48
  %v581 = vpop.permute.xlu0 %580
  %582 = vrot.lane.b32.xlu0 %v576, 48
  %v583 = vpop.permute.xlu0 %582
  %584 = vrot.lane.b32.xlu0 %v577, 48
  %v585 = vpop.permute.xlu0 %584
  %586 = vrot.lane.b32.xlu0 %v578, 48
  %v587 = vpop.permute.xlu0 %586
  %588 = vrot.lane.b32.xlu0 %v579, 48
  %v589 = vpop.permute.xlu0 %588
  %v591 = vunpack.c.l.b16 %v66
  %v592 = vpack.c.b16 %v591, %v574
  %v594 = vshrl.u32 %v575, 16
  %v596 = vshll.u32 %v575, 16
  %v598 = vrot.slane %v596, 1
  %v599 = vor.u32 %v594, %v598
  %v601 = vshll.u32 %v576, 16
  %v603 = vrot.slane %v601, 1
  %v604 = vsel %vm96, %v599, %v603
  %v605 = vshrl.u32 %v576, 16
  %v607 = vor.u32 %v605, %v603
  %v609 = vshll.u32 %v577, 16
  %v611 = vrot.slane %v609, 1
  %v612 = vsel %vm96, %v607, %v611
  %v613 = vshrl.u32 %v577, 16
  %v615 = vor.u32 %v613, %v611
  %v617 = vshll.u32 %v578, 16
  %v619 = vrot.slane %v617, 1
  %v620 = vsel %vm96, %v615, %v619
  %v621 = vshrl.u32 %v578, 16
  %v623 = vor.u32 %v621, %v619
  %v625 = vshll.u32 %v592, 16
  %v627 = vrot.slane %v625, 1
  %v628 = vsel %vm96, %v623, %v627
  %v629 = vshrl.u32 %v592, 16
  %v631 = vor.u32 %v629, %v627
  %632 = vrot.lane.b32.xlu0 %v604, 52
  %v633 = vpop.permute.xlu0 %632
  %634 = vrot.lane.b32.xlu0 %v612, 52
  %v635 = vpop.permute.xlu0 %634
  %636 = vrot.lane.b32.xlu0 %v620, 52
  %v637 = vpop.permute.xlu0 %636
  %638 = vrot.lane.b32.xlu0 %v628, 52
  %v639 = vpop.permute.xlu0 %638
  %640 = vrot.lane.b32.xlu0 %v631, 52
  %v641 = vpop.permute.xlu0 %640
  %v644 = vunpack.c.l.b16 %v67
  %v645 = vunpack.c.l.b16 %v68
  %v646 = vpack.c.b16 %v568, %v567
  %v647 = vpack.c.b16 %v570, %v569
  %v648 = vpack.c.b16 %v572, %v571
  %v649 = vpack.c.b16 %v574, %v573
  %v650 = vpack.c.b16 %v645, %v644
  %v652 = vshrl.u32 %v646, 16
  %v654 = vshll.u32 %v646, 16
  %v656 = vrot.slane %v654, 1
  %v657 = vor.u32 %v652, %v656
  %v659 = vshll.u32 %v647, 16
  %v661 = vrot.slane %v659, 1
  %v662 = vsel %vm96, %v657, %v661
  %v663 = vshrl.u32 %v647, 16
  %v665 = vor.u32 %v663, %v661
  %v667 = vshll.u32 %v648, 16
  %v669 = vrot.slane %v667, 1
  %v670 = vsel %vm96, %v665, %v669
  %v671 = vshrl.u32 %v648, 16
  %v673 = vor.u32 %v671, %v669
  %v675 = vshll.u32 %v649, 16
  %v677 = vrot.slane %v675, 1
  %v678 = vsel %vm96, %v673, %v677
  %v679 = vshrl.u32 %v649, 16
  %v681 = vor.u32 %v679, %v677
  %v683 = vshll.u32 %v650, 16
  %v685 = vrot.slane %v683, 1
  %v686 = vsel %vm96, %v681, %v685
  %v687 = vshrl.u32 %v650, 16
  %v689 = vor.u32 %v687, %v685
  %690 = vrot.lane.b32.xlu0 %v662, 56
  %v691 = vpop.permute.xlu0 %690
  %692 = vrot.lane.b32.xlu0 %v670, 56
  %v693 = vpop.permute.xlu0 %692
  %694 = vrot.lane.b32.xlu0 %v678, 56
  %v695 = vpop.permute.xlu0 %694
  %696 = vrot.lane.b32.xlu0 %v686, 56
  %v697 = vpop.permute.xlu0 %696
  %698 = vrot.lane.b32.xlu0 %v689, 56
  %v699 = vpop.permute.xlu0 %698
  %v701 = vunpack.c.l.b16 %v69
  %v702 = vpack.c.b16 %v568, %v701
  %v703 = vrot.slane %v702, 1
  %v704 = vrot.slane %v647, 1
  %v705 = vsel %vm207, %v703, %v704
  %v706 = vrot.slane %v648, 1
  %v707 = vsel %vm207, %v704, %v706
  %v708 = vrot.slane %v649, 1
  %v709 = vsel %vm207, %v706, %v708
  %v710 = vrot.slane %v650, 1
  %v711 = vsel %vm207, %v708, %v710
  %712 = vrot.lane.b32.xlu0 %v705, 60
  %v713 = vpop.permute.xlu0 %712
  %714 = vrot.lane.b32.xlu0 %v707, 60
  %v715 = vpop.permute.xlu0 %714
  %716 = vrot.lane.b32.xlu0 %v709, 60
  %v717 = vpop.permute.xlu0 %716
  %718 = vrot.lane.b32.xlu0 %v711, 60
  %v719 = vpop.permute.xlu0 %718
  %720 = vrot.lane.b32.xlu0 %v710, 60
  %v721 = vpop.permute.xlu0 %720
  %vm722 = vcmask 31744
  %v724 = vsel %vm722, %v88, %v137
  %v726 = vsel %vm722, %v89, %v139
  %v728 = vsel %vm722, %v90, %v141
  %v730 = vsel %vm722, %v91, %v143
  %v733 = vsel %vm722, %v92, %v145
  %vm734 = vcmask 64512
  %v736 = vsel %vm734, %v724, %v195
  %v738 = vsel %vm734, %v726, %v197
  %v740 = vsel %vm734, %v728, %v199
  %v742 = vsel %vm734, %v730, %v201
  %v744 = vsel %vm734, %v733, %v203
  %vm745 = vcmask 97280
  %v747 = vsel %vm745, %v736, %v218
  %v749 = vsel %vm745, %v738, %v220
  %v751 = vsel %vm745, %v740, %v222
  %v753 = vsel %vm745, %v742, %v224
  %v755 = vsel %vm745, %v744, %v226
  %vm756 = vcmask 130048
  %v758 = vsel %vm756, %v747, %v251
  %v760 = vsel %vm756, %v749, %v253
  %v762 = vsel %vm756, %v751, %v255
  %v764 = vsel %vm756, %v753, %v257
  %v766 = vsel %vm756, %v755, %v259
  %vm767 = vcmask 162816
  %v769 = vsel %vm767, %v758, %v303
  %v771 = vsel %vm767, %v760, %v305
  %v773 = vsel %vm767, %v762, %v307
  %v775 = vsel %vm767, %v764, %v309
  %v777 = vsel %vm767, %v766, %v311
  %vm778 = vcmask 195584
  %v780 = vsel %vm778, %v769, %v361
  %v782 = vsel %vm778, %v771, %v363
  %v784 = vsel %vm778, %v773, %v365
  %v786 = vsel %vm778, %v775, %v367
  %v788 = vsel %vm778, %v777, %v369
  %vm789 = vcmask 228352
  %v791 = vsel %vm789, %v780, %v383
  %v793 = vsel %vm789, %v782, %v385
  %v795 = vsel %vm789, %v784, %v387
  %v797 = vsel %vm789, %v786, %v389
  %v799 = vsel %vm789, %v788, %v391
  %vm800 = vcmask 261120
  %v802 = vsel %vm800, %v791, %v416
  %v804 = vsel %vm800, %v793, %v418
  %v806 = vsel %vm800, %v795, %v420
  %v808 = vsel %vm800, %v797, %v422
  %v810 = vsel %vm800, %v799, %v424
  %vm811 = vcmask 293888
  %v813 = vsel %vm811, %v802, %v468
  %v815 = vsel %vm811, %v804, %v470
  %v817 = vsel %vm811, %v806, %v472
  %v819 = vsel %vm811, %v808, %v474
  %v821 = vsel %vm811, %v810, %v476
  %vm822 = vcmask 326656
  %v824 = vsel %vm822, %v813, %v526
  %v826 = vsel %vm822, %v815, %v528
  %v828 = vsel %vm822, %v817, %v530
  %v830 = vsel %vm822, %v819, %v532
  %v832 = vsel %vm822, %v821, %v534
  %vm833 = vcmask 359424
  %v835 = vsel %vm833, %v824, %v548
  %v837 = vsel %vm833, %v826, %v550
  %v839 = vsel %vm833, %v828, %v552
  %v841 = vsel %vm833, %v830, %v554
  %v843 = vsel %vm833, %v832, %v556
  %vm844 = vcmask 392192
  %v846 = vsel %vm844, %v835, %v581
  %v848 = vsel %vm844, %v837, %v583
  %v850 = vsel %vm844, %v839, %v585
  %v852 = vsel %vm844, %v841, %v587
  %v854 = vsel %vm844, %v843, %v589
  %vm855 = vcmask 424960
  %v857 = vsel %vm855, %v846, %v633
  %v859 = vsel %vm855, %v848, %v635
  %v861 = vsel %vm855, %v850, %v637
  %v863 = vsel %vm855, %v852, %v639
  %v865 = vsel %vm855, %v854, %v641
  %vm866 = vcmask 457728
  %v868 = vsel %vm866, %v857, %v691
  %v870 = vsel %vm866, %v859, %v693
  %v872 = vsel %vm866, %v861, %v695
  %v874 = vsel %vm866, %v863, %v697
  %v876 = vsel %vm866, %v865, %v699
  %vm877 = vcmask 490496
  %v879 = vsel %vm877, %v868, %v713
  %v881 = vsel %vm877, %v870, %v715
  %v883 = vsel %vm877, %v872, %v717
  %v885 = vsel %vm877, %v874, %v719
  %v887 = vsel %vm877, %v876, %v721
  %s888 = scalar_lea.vmem %s0, 44
  %v889 = vld [vmem:[%s888] sm:$0xf]
  %v890 = vld [vmem:[%s888 + $0x4] sm:$0xf]
  %v891 = vld [vmem:[%s888 + $0x8] sm:$0xf]
  %v892 = vld [vmem:[%s888 + $0xc] sm:$0xf]
  %v893 = vld [vmem:[%s888 + $0x10] sm:$0xf]
  %v894 = vld [vmem:[%s888 + $0x14] sm:$0xf]
  %v895 = vld [vmem:[%s888 + $0x18] sm:$0xf]
  %v896 = vld [vmem:[%s888 + $0x1c] sm:$0xf]
  %v897 = vld [vmem:[%s888 + $0x20] sm:$0xf]
  %v898 = vld [vmem:[%s888 + $0x24] sm:$0x1]
  %v899 = vld [vmem:[%s888 + $0x24] sm:$0xf]
  %v900 = vld [vmem:[%s888 + $0x28] sm:$0x1]
  %v901 = vld [vmem:[%s888 + $0x4] sm:$0xe]
  %s902 = scalar_lea.vmem %s0, 132
  %v903 = vld [vmem:[%s902] sm:$0xf]
  %v904 = vld [vmem:[%s902 + $0x4] sm:$0xf]
  %v905 = vld [vmem:[%s902 + $0x8] sm:$0xf]
  %v906 = vld [vmem:[%s902 + $0xc] sm:$0xf]
  %v907 = vld [vmem:[%s902 + $0x10] sm:$0xf]
  %v908 = vld [vmem:[%s902 + $0x14] sm:$0xf]
  %v909 = vld [vmem:[%s902 + $0x18] sm:$0xf]
  %v910 = vld [vmem:[%s902 + $0x1c] sm:$0xf]
  %v911 = vld [vmem:[%s902 + $0x20] sm:$0xf]
  %v912 = vld [vmem:[%s902 + $0x24] sm:$0x1]
  %v913 = vld [vmem:[%s902 + $0x24] sm:$0xf]
  %v914 = vld [vmem:[%s902 + $0x28] sm:$0x1]
  %v915 = vld [vmem:[%s902 + $0x4] sm:$0xe]
  %s916 = scalar_lea.vmem %s0, 220
  %v917 = vld [vmem:[%s916] sm:$0xf]
  %v918 = vld [vmem:[%s916 + $0x4] sm:$0xf]
  %v919 = vld [vmem:[%s916 + $0x8] sm:$0xf]
  %v920 = vld [vmem:[%s916 + $0xc] sm:$0xf]
  %v921 = vld [vmem:[%s916 + $0x10] sm:$0xf]
  %v922 = vld [vmem:[%s916 + $0x14] sm:$0xf]
  %v923 = vld [vmem:[%s916 + $0x18] sm:$0xf]
  %v924 = vld [vmem:[%s916 + $0x1c] sm:$0xf]
  %v925 = vld [vmem:[%s916 + $0x20] sm:$0xf]
  %v926 = vld [vmem:[%s916 + $0x24] sm:$0x1]
  %v927 = vld [vmem:[%s916 + $0x24] sm:$0xf]
  %v928 = vld [vmem:[%s916 + $0x28] sm:$0x1]
  %v929 = vld [vmem:[%s916 + $0x4] sm:$0xe]
  %s930 = scalar_lea.vmem %s0, 308
  %v931 = vld [vmem:[%s930] sm:$0xf]
  %v932 = vld [vmem:[%s930 + $0x4] sm:$0xf]
  %v933 = vld [vmem:[%s930 + $0x8] sm:$0xf]
  %v934 = vld [vmem:[%s930 + $0xc] sm:$0xf]
  %v935 = vld [vmem:[%s930 + $0x10] sm:$0xf]
  %v936 = vld [vmem:[%s930 + $0x14] sm:$0xf]
  %v937 = vld [vmem:[%s930 + $0x18] sm:$0xf]
  %v938 = vld [vmem:[%s930 + $0x1c] sm:$0xf]
  %v939 = vld [vmem:[%s930 + $0x20] sm:$0xf]
  %v940 = vld [vmem:[%s930 + $0x24] sm:$0x1]
  %v941 = vld [vmem:[%s930 + $0x24] sm:$0xf]
  %v942 = vld [vmem:[%s930 + $0x28] sm:$0x1]
  %v943 = vld [vmem:[%s930 + $0x4] sm:$0xe]
  %v953 = vunpack.c.l.b16 %v889
  %v954 = vunpack.c.l.b16 %v890
  %v955 = vunpack.c.l.b16 %v891
  %v956 = vunpack.c.l.b16 %v892
  %v957 = vunpack.c.l.b16 %v893
  %v958 = vunpack.c.l.b16 %v894
  %v959 = vunpack.c.l.b16 %v895
  %v960 = vunpack.c.l.b16 %v896
  %v961 = vunpack.c.l.b16 %v897
  %v962 = vpack.c.b16 %v954, %v953
  %v963 = vpack.c.b16 %v956, %v955
  %v964 = vpack.c.b16 %v958, %v957
  %v965 = vpack.c.b16 %v960, %v959
  %v966 = vpack.c.b16 %v961, %v961
  %v968 = vunpack.c.l.b16 %v898
  %v969 = vpack.c.b16 %v968, %v961
  %v971 = vshrl.u32 %v962, 16
  %v973 = vshll.u32 %v962, 16
  %v975 = vrot.slane %v973, 1
  %v976 = vor.u32 %v971, %v975
  %v978 = vshll.u32 %v963, 16
  %v980 = vrot.slane %v978, 1
  %v981 = vsel %vm96, %v976, %v980
  %v982 = vshrl.u32 %v963, 16
  %v984 = vor.u32 %v982, %v980
  %v986 = vshll.u32 %v964, 16
  %v988 = vrot.slane %v986, 1
  %v989 = vsel %vm96, %v984, %v988
  %v990 = vshrl.u32 %v964, 16
  %v992 = vor.u32 %v990, %v988
  %v994 = vshll.u32 %v965, 16
  %v996 = vrot.slane %v994, 1
  %v997 = vsel %vm96, %v992, %v996
  %v998 = vshrl.u32 %v965, 16
  %v1000 = vor.u32 %v998, %v996
  %v1002 = vshll.u32 %v969, 16
  %v1004 = vrot.slane %v1002, 1
  %v1005 = vsel %vm96, %v1000, %v1004
  %v1006 = vshrl.u32 %v969, 16
  %v1008 = vor.u32 %v1006, %v1004
  %1009 = vrot.lane.b32.xlu0 %v981, 4
  %v1010 = vpop.permute.xlu0 %1009
  %1011 = vrot.lane.b32.xlu0 %v989, 4
  %v1012 = vpop.permute.xlu0 %1011
  %1013 = vrot.lane.b32.xlu0 %v997, 4
  %v1014 = vpop.permute.xlu0 %1013
  %1015 = vrot.lane.b32.xlu0 %v1005, 4
  %v1016 = vpop.permute.xlu0 %1015
  %1017 = vrot.lane.b32.xlu0 %v1008, 4
  %v1018 = vpop.permute.xlu0 %1017
  %v1021 = vunpack.c.l.b16 %v899
  %v1022 = vunpack.c.l.b16 %v900
  %v1023 = vpack.c.b16 %v955, %v954
  %v1024 = vpack.c.b16 %v957, %v956
  %v1025 = vpack.c.b16 %v959, %v958
  %v1026 = vpack.c.b16 %v961, %v960
  %v1027 = vpack.c.b16 %v1022, %v1021
  %v1029 = vshrl.u32 %v1023, 16
  %v1031 = vshll.u32 %v1023, 16
  %v1033 = vrot.slane %v1031, 1
  %v1034 = vor.u32 %v1029, %v1033
  %v1036 = vshll.u32 %v1024, 16
  %v1038 = vrot.slane %v1036, 1
  %v1039 = vsel %vm96, %v1034, %v1038
  %v1040 = vshrl.u32 %v1024, 16
  %v1042 = vor.u32 %v1040, %v1038
  %v1044 = vshll.u32 %v1025, 16
  %v1046 = vrot.slane %v1044, 1
  %v1047 = vsel %vm96, %v1042, %v1046
  %v1048 = vshrl.u32 %v1025, 16
  %v1050 = vor.u32 %v1048, %v1046
  %v1052 = vshll.u32 %v1026, 16
  %v1054 = vrot.slane %v1052, 1
  %v1055 = vsel %vm96, %v1050, %v1054
  %v1056 = vshrl.u32 %v1026, 16
  %v1058 = vor.u32 %v1056, %v1054
  %v1060 = vshll.u32 %v1027, 16
  %v1062 = vrot.slane %v1060, 1
  %v1063 = vsel %vm96, %v1058, %v1062
  %v1064 = vshrl.u32 %v1027, 16
  %v1066 = vor.u32 %v1064, %v1062
  %1067 = vrot.lane.b32.xlu0 %v1039, 8
  %v1068 = vpop.permute.xlu0 %1067
  %1069 = vrot.lane.b32.xlu0 %v1047, 8
  %v1070 = vpop.permute.xlu0 %1069
  %1071 = vrot.lane.b32.xlu0 %v1055, 8
  %v1072 = vpop.permute.xlu0 %1071
  %1073 = vrot.lane.b32.xlu0 %v1063, 8
  %v1074 = vpop.permute.xlu0 %1073
  %1075 = vrot.lane.b32.xlu0 %v1066, 8
  %v1076 = vpop.permute.xlu0 %1075
  %v1078 = vunpack.c.l.b16 %v901
  %v1079 = vpack.c.b16 %v955, %v1078
  %v1080 = vrot.slane %v1079, 1
  %v1081 = vrot.slane %v1024, 1
  %v1082 = vsel %vm207, %v1080, %v1081
  %v1083 = vrot.slane %v1025, 1
  %v1084 = vsel %vm207, %v1081, %v1083
  %v1085 = vrot.slane %v1026, 1
  %v1086 = vsel %vm207, %v1083, %v1085
  %v1087 = vrot.slane %v1027, 1
  %v1088 = vsel %vm207, %v1085, %v1087
  %1089 = vrot.lane.b32.xlu0 %v1082, 12
  %v1090 = vpop.permute.xlu0 %1089
  %1091 = vrot.lane.b32.xlu0 %v1084, 12
  %v1092 = vpop.permute.xlu0 %1091
  %1093 = vrot.lane.b32.xlu0 %v1086, 12
  %v1094 = vpop.permute.xlu0 %1093
  %1095 = vrot.lane.b32.xlu0 %v1088, 12
  %v1096 = vpop.permute.xlu0 %1095
  %1097 = vrot.lane.b32.xlu0 %v1087, 12
  %v1098 = vpop.permute.xlu0 %1097
  %v1108 = vunpack.c.l.b16 %v903
  %v1109 = vunpack.c.l.b16 %v904
  %v1110 = vunpack.c.l.b16 %v905
  %v1111 = vunpack.c.l.b16 %v906
  %v1112 = vunpack.c.l.b16 %v907
  %v1113 = vunpack.c.l.b16 %v908
  %v1114 = vunpack.c.l.b16 %v909
  %v1115 = vunpack.c.l.b16 %v910
  %v1116 = vunpack.c.l.b16 %v911
  %v1117 = vpack.c.b16 %v1109, %v1108
  %v1118 = vpack.c.b16 %v1111, %v1110
  %v1119 = vpack.c.b16 %v1113, %v1112
  %v1120 = vpack.c.b16 %v1115, %v1114
  %v1121 = vpack.c.b16 %v1116, %v1116
  %1122 = vrot.lane.b32.xlu0 %v1117, 16
  %v1123 = vpop.permute.xlu0 %1122
  %1124 = vrot.lane.b32.xlu0 %v1118, 16
  %v1125 = vpop.permute.xlu0 %1124
  %1126 = vrot.lane.b32.xlu0 %v1119, 16
  %v1127 = vpop.permute.xlu0 %1126
  %1128 = vrot.lane.b32.xlu0 %v1120, 16
  %v1129 = vpop.permute.xlu0 %1128
  %1130 = vrot.lane.b32.xlu0 %v1121, 16
  %v1131 = vpop.permute.xlu0 %1130
  %v1133 = vunpack.c.l.b16 %v912
  %v1134 = vpack.c.b16 %v1133, %v1116
  %v1136 = vshrl.u32 %v1117, 16
  %v1138 = vshll.u32 %v1117, 16
  %v1140 = vrot.slane %v1138, 1
  %v1141 = vor.u32 %v1136, %v1140
  %v1143 = vshll.u32 %v1118, 16
  %v1145 = vrot.slane %v1143, 1
  %v1146 = vsel %vm96, %v1141, %v1145
  %v1147 = vshrl.u32 %v1118, 16
  %v1149 = vor.u32 %v1147, %v1145
  %v1151 = vshll.u32 %v1119, 16
  %v1153 = vrot.slane %v1151, 1
  %v1154 = vsel %vm96, %v1149, %v1153
  %v1155 = vshrl.u32 %v1119, 16
  %v1157 = vor.u32 %v1155, %v1153
  %v1159 = vshll.u32 %v1120, 16
  %v1161 = vrot.slane %v1159, 1
  %v1162 = vsel %vm96, %v1157, %v1161
  %v1163 = vshrl.u32 %v1120, 16
  %v1165 = vor.u32 %v1163, %v1161
  %v1167 = vshll.u32 %v1134, 16
  %v1169 = vrot.slane %v1167, 1
  %v1170 = vsel %vm96, %v1165, %v1169
  %v1171 = vshrl.u32 %v1134, 16
  %v1173 = vor.u32 %v1171, %v1169
  %1174 = vrot.lane.b32.xlu0 %v1146, 20
  %v1175 = vpop.permute.xlu0 %1174
  %1176 = vrot.lane.b32.xlu0 %v1154, 20
  %v1177 = vpop.permute.xlu0 %1176
  %1178 = vrot.lane.b32.xlu0 %v1162, 20
  %v1179 = vpop.permute.xlu0 %1178
  %1180 = vrot.lane.b32.xlu0 %v1170, 20
  %v1181 = vpop.permute.xlu0 %1180
  %1182 = vrot.lane.b32.xlu0 %v1173, 20
  %v1183 = vpop.permute.xlu0 %1182
  %v1186 = vunpack.c.l.b16 %v913
  %v1187 = vunpack.c.l.b16 %v914
  %v1188 = vpack.c.b16 %v1110, %v1109
  %v1189 = vpack.c.b16 %v1112, %v1111
  %v1190 = vpack.c.b16 %v1114, %v1113
  %v1191 = vpack.c.b16 %v1116, %v1115
  %v1192 = vpack.c.b16 %v1187, %v1186
  %v1194 = vshrl.u32 %v1188, 16
  %v1196 = vshll.u32 %v1188, 16
  %v1198 = vrot.slane %v1196, 1
  %v1199 = vor.u32 %v1194, %v1198
  %v1201 = vshll.u32 %v1189, 16
  %v1203 = vrot.slane %v1201, 1
  %v1204 = vsel %vm96, %v1199, %v1203
  %v1205 = vshrl.u32 %v1189, 16
  %v1207 = vor.u32 %v1205, %v1203
  %v1209 = vshll.u32 %v1190, 16
  %v1211 = vrot.slane %v1209, 1
  %v1212 = vsel %vm96, %v1207, %v1211
  %v1213 = vshrl.u32 %v1190, 16
  %v1215 = vor.u32 %v1213, %v1211
  %v1217 = vshll.u32 %v1191, 16
  %v1219 = vrot.slane %v1217, 1
  %v1220 = vsel %vm96, %v1215, %v1219
  %v1221 = vshrl.u32 %v1191, 16
  %v1223 = vor.u32 %v1221, %v1219
  %v1225 = vshll.u32 %v1192, 16
  %v1227 = vrot.slane %v1225, 1
  %v1228 = vsel %vm96, %v1223, %v1227
  %v1229 = vshrl.u32 %v1192, 16
  %v1231 = vor.u32 %v1229, %v1227
  %1232 = vrot.lane.b32.xlu0 %v1204, 24
  %v1233 = vpop.permute.xlu0 %1232
  %1234 = vrot.lane.b32.xlu0 %v1212, 24
  %v1235 = vpop.permute.xlu0 %1234
  %1236 = vrot.lane.b32.xlu0 %v1220, 24
  %v1237 = vpop.permute.xlu0 %1236
  %1238 = vrot.lane.b32.xlu0 %v1228, 24
  %v1239 = vpop.permute.xlu0 %1238
  %1240 = vrot.lane.b32.xlu0 %v1231, 24
  %v1241 = vpop.permute.xlu0 %1240
  %v1243 = vunpack.c.l.b16 %v915
  %v1244 = vpack.c.b16 %v1110, %v1243
  %v1245 = vrot.slane %v1244, 1
  %v1246 = vrot.slane %v1189, 1
  %v1247 = vsel %vm207, %v1245, %v1246
  %v1248 = vrot.slane %v1190, 1
  %v1249 = vsel %vm207, %v1246, %v1248
  %v1250 = vrot.slane %v1191, 1
  %v1251 = vsel %vm207, %v1248, %v1250
  %v1252 = vrot.slane %v1192, 1
  %v1253 = vsel %vm207, %v1250, %v1252
  %1254 = vrot.lane.b32.xlu0 %v1247, 28
  %v1255 = vpop.permute.xlu0 %1254
  %1256 = vrot.lane.b32.xlu0 %v1249, 28
  %v1257 = vpop.permute.xlu0 %1256
  %1258 = vrot.lane.b32.xlu0 %v1251, 28
  %v1259 = vpop.permute.xlu0 %1258
  %1260 = vrot.lane.b32.xlu0 %v1253, 28
  %v1261 = vpop.permute.xlu0 %1260
  %1262 = vrot.lane.b32.xlu0 %v1252, 28
  %v1263 = vpop.permute.xlu0 %1262
  %v1273 = vunpack.c.l.b16 %v917
  %v1274 = vunpack.c.l.b16 %v918
  %v1275 = vunpack.c.l.b16 %v919
  %v1276 = vunpack.c.l.b16 %v920
  %v1277 = vunpack.c.l.b16 %v921
  %v1278 = vunpack.c.l.b16 %v922
  %v1279 = vunpack.c.l.b16 %v923
  %v1280 = vunpack.c.l.b16 %v924
  %v1281 = vunpack.c.l.b16 %v925
  %v1282 = vpack.c.b16 %v1274, %v1273
  %v1283 = vpack.c.b16 %v1276, %v1275
  %v1284 = vpack.c.b16 %v1278, %v1277
  %v1285 = vpack.c.b16 %v1280, %v1279
  %v1286 = vpack.c.b16 %v1281, %v1281
  %1287 = vrot.lane.b32.xlu0 %v1282, 32
  %v1288 = vpop.permute.xlu0 %1287
  %1289 = vrot.lane.b32.xlu0 %v1283, 32
  %v1290 = vpop.permute.xlu0 %1289
  %1291 = vrot.lane.b32.xlu0 %v1284, 32
  %v1292 = vpop.permute.xlu0 %1291
  %1293 = vrot.lane.b32.xlu0 %v1285, 32
  %v1294 = vpop.permute.xlu0 %1293
  %1295 = vrot.lane.b32.xlu0 %v1286, 32
  %v1296 = vpop.permute.xlu0 %1295
  %v1298 = vunpack.c.l.b16 %v926
  %v1299 = vpack.c.b16 %v1298, %v1281
  %v1301 = vshrl.u32 %v1282, 16
  %v1303 = vshll.u32 %v1282, 16
  %v1305 = vrot.slane %v1303, 1
  %v1306 = vor.u32 %v1301, %v1305
  %v1308 = vshll.u32 %v1283, 16
  %v1310 = vrot.slane %v1308, 1
  %v1311 = vsel %vm96, %v1306, %v1310
  %v1312 = vshrl.u32 %v1283, 16
  %v1314 = vor.u32 %v1312, %v1310
  %v1316 = vshll.u32 %v1284, 16
  %v1318 = vrot.slane %v1316, 1
  %v1319 = vsel %vm96, %v1314, %v1318
  %v1320 = vshrl.u32 %v1284, 16
  %v1322 = vor.u32 %v1320, %v1318
  %v1324 = vshll.u32 %v1285, 16
  %v1326 = vrot.slane %v1324, 1
  %v1327 = vsel %vm96, %v1322, %v1326
  %v1328 = vshrl.u32 %v1285, 16
  %v1330 = vor.u32 %v1328, %v1326
  %v1332 = vshll.u32 %v1299, 16
  %v1334 = vrot.slane %v1332, 1
  %v1335 = vsel %vm96, %v1330, %v1334
  %v1336 = vshrl.u32 %v1299, 16
  %v1338 = vor.u32 %v1336, %v1334
  %1339 = vrot.lane.b32.xlu0 %v1311, 36
  %v1340 = vpop.permute.xlu0 %1339
  %1341 = vrot.lane.b32.xlu0 %v1319, 36
  %v1342 = vpop.permute.xlu0 %1341
  %1343 = vrot.lane.b32.xlu0 %v1327, 36
  %v1344 = vpop.permute.xlu0 %1343
  %1345 = vrot.lane.b32.xlu0 %v1335, 36
  %v1346 = vpop.permute.xlu0 %1345
  %1347 = vrot.lane.b32.xlu0 %v1338, 36
  %v1348 = vpop.permute.xlu0 %1347
  %v1351 = vunpack.c.l.b16 %v927
  %v1352 = vunpack.c.l.b16 %v928
  %v1353 = vpack.c.b16 %v1275, %v1274
  %v1354 = vpack.c.b16 %v1277, %v1276
  %v1355 = vpack.c.b16 %v1279, %v1278
  %v1356 = vpack.c.b16 %v1281, %v1280
  %v1357 = vpack.c.b16 %v1352, %v1351
  %v1359 = vshrl.u32 %v1353, 16
  %v1361 = vshll.u32 %v1353, 16
  %v1363 = vrot.slane %v1361, 1
  %v1364 = vor.u32 %v1359, %v1363
  %v1366 = vshll.u32 %v1354, 16
  %v1368 = vrot.slane %v1366, 1
  %v1369 = vsel %vm96, %v1364, %v1368
  %v1370 = vshrl.u32 %v1354, 16
  %v1372 = vor.u32 %v1370, %v1368
  %v1374 = vshll.u32 %v1355, 16
  %v1376 = vrot.slane %v1374, 1
  %v1377 = vsel %vm96, %v1372, %v1376
  %v1378 = vshrl.u32 %v1355, 16
  %v1380 = vor.u32 %v1378, %v1376
  %v1382 = vshll.u32 %v1356, 16
  %v1384 = vrot.slane %v1382, 1
  %v1385 = vsel %vm96, %v1380, %v1384
  %v1386 = vshrl.u32 %v1356, 16
  %v1388 = vor.u32 %v1386, %v1384
  %v1390 = vshll.u32 %v1357, 16
  %v1392 = vrot.slane %v1390, 1
  %v1393 = vsel %vm96, %v1388, %v1392
  %v1394 = vshrl.u32 %v1357, 16
  %v1396 = vor.u32 %v1394, %v1392
  %1397 = vrot.lane.b32.xlu0 %v1369, 40
  %v1398 = vpop.permute.xlu0 %1397
  %1399 = vrot.lane.b32.xlu0 %v1377, 40
  %v1400 = vpop.permute.xlu0 %1399
  %1401 = vrot.lane.b32.xlu0 %v1385, 40
  %v1402 = vpop.permute.xlu0 %1401
  %1403 = vrot.lane.b32.xlu0 %v1393, 40
  %v1404 = vpop.permute.xlu0 %1403
  %1405 = vrot.lane.b32.xlu0 %v1396, 40
  %v1406 = vpop.permute.xlu0 %1405
  %v1408 = vunpack.c.l.b16 %v929
  %v1409 = vpack.c.b16 %v1275, %v1408
  %v1410 = vrot.slane %v1409, 1
  %v1411 = vrot.slane %v1354, 1
  %v1412 = vsel %vm207, %v1410, %v1411
  %v1413 = vrot.slane %v1355, 1
  %v1414 = vsel %vm207, %v1411, %v1413
  %v1415 = vrot.slane %v1356, 1
  %v1416 = vsel %vm207, %v1413, %v1415
  %v1417 = vrot.slane %v1357, 1
  %v1418 = vsel %vm207, %v1415, %v1417
  %1419 = vrot.lane.b32.xlu0 %v1412, 44
  %v1420 = vpop.permute.xlu0 %1419
  %1421 = vrot.lane.b32.xlu0 %v1414, 44
  %v1422 = vpop.permute.xlu0 %1421
  %1423 = vrot.lane.b32.xlu0 %v1416, 44
  %v1424 = vpop.permute.xlu0 %1423
  %1425 = vrot.lane.b32.xlu0 %v1418, 44
  %v1426 = vpop.permute.xlu0 %1425
  %1427 = vrot.lane.b32.xlu0 %v1417, 44
  %v1428 = vpop.permute.xlu0 %1427
  %v1438 = vunpack.c.l.b16 %v931
  %v1439 = vunpack.c.l.b16 %v932
  %v1440 = vunpack.c.l.b16 %v933
  %v1441 = vunpack.c.l.b16 %v934
  %v1442 = vunpack.c.l.b16 %v935
  %v1443 = vunpack.c.l.b16 %v936
  %v1444 = vunpack.c.l.b16 %v937
  %v1445 = vunpack.c.l.b16 %v938
  %v1446 = vunpack.c.l.b16 %v939
  %v1447 = vpack.c.b16 %v1439, %v1438
  %v1448 = vpack.c.b16 %v1441, %v1440
  %v1449 = vpack.c.b16 %v1443, %v1442
  %v1450 = vpack.c.b16 %v1445, %v1444
  %v1451 = vpack.c.b16 %v1446, %v1446
  %1452 = vrot.lane.b32.xlu0 %v1447, 48
  %v1453 = vpop.permute.xlu0 %1452
  %1454 = vrot.lane.b32.xlu0 %v1448, 48
  %v1455 = vpop.permute.xlu0 %1454
  %1456 = vrot.lane.b32.xlu0 %v1449, 48
  %v1457 = vpop.permute.xlu0 %1456
  %1458 = vrot.lane.b32.xlu0 %v1450, 48
  %v1459 = vpop.permute.xlu0 %1458
  %1460 = vrot.lane.b32.xlu0 %v1451, 48
  %v1461 = vpop.permute.xlu0 %1460
  %v1463 = vunpack.c.l.b16 %v940
  %v1464 = vpack.c.b16 %v1463, %v1446
  %v1466 = vshrl.u32 %v1447, 16
  %v1468 = vshll.u32 %v1447, 16
  %v1470 = vrot.slane %v1468, 1
  %v1471 = vor.u32 %v1466, %v1470
  %v1473 = vshll.u32 %v1448, 16
  %v1475 = vrot.slane %v1473, 1
  %v1476 = vsel %vm96, %v1471, %v1475
  %v1477 = vshrl.u32 %v1448, 16
  %v1479 = vor.u32 %v1477, %v1475
  %v1481 = vshll.u32 %v1449, 16
  %v1483 = vrot.slane %v1481, 1
  %v1484 = vsel %vm96, %v1479, %v1483
  %v1485 = vshrl.u32 %v1449, 16
  %v1487 = vor.u32 %v1485, %v1483
  %v1489 = vshll.u32 %v1450, 16
  %v1491 = vrot.slane %v1489, 1
  %v1492 = vsel %vm96, %v1487, %v1491
  %v1493 = vshrl.u32 %v1450, 16
  %v1495 = vor.u32 %v1493, %v1491
  %v1497 = vshll.u32 %v1464, 16
  %v1499 = vrot.slane %v1497, 1
  %v1500 = vsel %vm96, %v1495, %v1499
  %v1501 = vshrl.u32 %v1464, 16
  %v1503 = vor.u32 %v1501, %v1499
  %1504 = vrot.lane.b32.xlu0 %v1476, 52
  %v1505 = vpop.permute.xlu0 %1504
  %1506 = vrot.lane.b32.xlu0 %v1484, 52
  %v1507 = vpop.permute.xlu0 %1506
  %1508 = vrot.lane.b32.xlu0 %v1492, 52
  %v1509 = vpop.permute.xlu0 %1508
  %1510 = vrot.lane.b32.xlu0 %v1500, 52
  %v1511 = vpop.permute.xlu0 %1510
  %1512 = vrot.lane.b32.xlu0 %v1503, 52
  %v1513 = vpop.permute.xlu0 %1512
  %v1516 = vunpack.c.l.b16 %v941
  %v1517 = vunpack.c.l.b16 %v942
  %v1518 = vpack.c.b16 %v1440, %v1439
  %v1519 = vpack.c.b16 %v1442, %v1441
  %v1520 = vpack.c.b16 %v1444, %v1443
  %v1521 = vpack.c.b16 %v1446, %v1445
  %v1522 = vpack.c.b16 %v1517, %v1516
  %v1524 = vshrl.u32 %v1518, 16
  %v1526 = vshll.u32 %v1518, 16
  %v1528 = vrot.slane %v1526, 1
  %v1529 = vor.u32 %v1524, %v1528
  %v1531 = vshll.u32 %v1519, 16
  %v1533 = vrot.slane %v1531, 1
  %v1534 = vsel %vm96, %v1529, %v1533
  %v1535 = vshrl.u32 %v1519, 16
  %v1537 = vor.u32 %v1535, %v1533
  %v1539 = vshll.u32 %v1520, 16
  %v1541 = vrot.slane %v1539, 1
  %v1542 = vsel %vm96, %v1537, %v1541
  %v1543 = vshrl.u32 %v1520, 16
  %v1545 = vor.u32 %v1543, %v1541
  %v1547 = vshll.u32 %v1521, 16
  %v1549 = vrot.slane %v1547, 1
  %v1550 = vsel %vm96, %v1545, %v1549
  %v1551 = vshrl.u32 %v1521, 16
  %v1553 = vor.u32 %v1551, %v1549
  %v1555 = vshll.u32 %v1522, 16
  %v1557 = vrot.slane %v1555, 1
  %v1558 = vsel %vm96, %v1553, %v1557
  %v1559 = vshrl.u32 %v1522, 16
  %v1561 = vor.u32 %v1559, %v1557
  %1562 = vrot.lane.b32.xlu0 %v1534, 56
  %v1563 = vpop.permute.xlu0 %1562
  %1564 = vrot.lane.b32.xlu0 %v1542, 56
  %v1565 = vpop.permute.xlu0 %1564
  %1566 = vrot.lane.b32.xlu0 %v1550, 56
  %v1567 = vpop.permute.xlu0 %1566
  %1568 = vrot.lane.b32.xlu0 %v1558, 56
  %v1569 = vpop.permute.xlu0 %1568
  %1570 = vrot.lane.b32.xlu0 %v1561, 56
  %v1571 = vpop.permute.xlu0 %1570
  %v1573 = vunpack.c.l.b16 %v943
  %v1574 = vpack.c.b16 %v1440, %v1573
  %v1575 = vrot.slane %v1574, 1
  %v1576 = vrot.slane %v1519, 1
  %v1577 = vsel %vm207, %v1575, %v1576
  %v1578 = vrot.slane %v1520, 1
  %v1579 = vsel %vm207, %v1576, %v1578
  %v1580 = vrot.slane %v1521, 1
  %v1581 = vsel %vm207, %v1578, %v1580
  %v1582 = vrot.slane %v1522, 1
  %v1583 = vsel %vm207, %v1580, %v1582
  %1584 = vrot.lane.b32.xlu0 %v1577, 60
  %v1585 = vpop.permute.xlu0 %1584
  %1586 = vrot.lane.b32.xlu0 %v1579, 60
  %v1587 = vpop.permute.xlu0 %1586
  %1588 = vrot.lane.b32.xlu0 %v1581, 60
  %v1589 = vpop.permute.xlu0 %1588
  %1590 = vrot.lane.b32.xlu0 %v1583, 60
  %v1591 = vpop.permute.xlu0 %1590
  %1592 = vrot.lane.b32.xlu0 %v1582, 60
  %v1593 = vpop.permute.xlu0 %1592
  %v1595 = vsel %vm722, %v962, %v1010
  %v1597 = vsel %vm722, %v963, %v1012
  %v1599 = vsel %vm722, %v964, %v1014
  %v1601 = vsel %vm722, %v965, %v1016
  %v1604 = vsel %vm722, %v966, %v1018
  %v1606 = vsel %vm734, %v1595, %v1068
  %v1608 = vsel %vm734, %v1597, %v1070
  %v1610 = vsel %vm734, %v1599, %v1072
  %v1612 = vsel %vm734, %v1601, %v1074
  %v1614 = vsel %vm734, %v1604, %v1076
  %v1616 = vsel %vm745, %v1606, %v1090
  %v1618 = vsel %vm745, %v1608, %v1092
  %v1620 = vsel %vm745, %v1610, %v1094
  %v1622 = vsel %vm745, %v1612, %v1096
  %v1624 = vsel %vm745, %v1614, %v1098
  %v1626 = vsel %vm756, %v1616, %v1123
  %v1628 = vsel %vm756, %v1618, %v1125
  %v1630 = vsel %vm756, %v1620, %v1127
  %v1632 = vsel %vm756, %v1622, %v1129
  %v1634 = vsel %vm756, %v1624, %v1131
  %v1636 = vsel %vm767, %v1626, %v1175
  %v1638 = vsel %vm767, %v1628, %v1177
  %v1640 = vsel %vm767, %v1630, %v1179
  %v1642 = vsel %vm767, %v1632, %v1181
  %v1644 = vsel %vm767, %v1634, %v1183
  %v1646 = vsel %vm778, %v1636, %v1233
  %v1648 = vsel %vm778, %v1638, %v1235
  %v1650 = vsel %vm778, %v1640, %v1237
  %v1652 = vsel %vm778, %v1642, %v1239
  %v1654 = vsel %vm778, %v1644, %v1241
  %v1656 = vsel %vm789, %v1646, %v1255
  %v1658 = vsel %vm789, %v1648, %v1257
  %v1660 = vsel %vm789, %v1650, %v1259
  %v1662 = vsel %vm789, %v1652, %v1261
  %v1664 = vsel %vm789, %v1654, %v1263
  %v1666 = vsel %vm800, %v1656, %v1288
  %v1668 = vsel %vm800, %v1658, %v1290
  %v1670 = vsel %vm800, %v1660, %v1292
  %v1672 = vsel %vm800, %v1662, %v1294
  %v1674 = vsel %vm800, %v1664, %v1296
  %v1676 = vsel %vm811, %v1666, %v1340
  %v1678 = vsel %vm811, %v1668, %v1342
  %v1680 = vsel %vm811, %v1670, %v1344
  %v1682 = vsel %vm811, %v1672, %v1346
  %v1684 = vsel %vm811, %v1674, %v1348
  %v1686 = vsel %vm822, %v1676, %v1398
  %v1688 = vsel %vm822, %v1678, %v1400
  %v1690 = vsel %vm822, %v1680, %v1402
  %v1692 = vsel %vm822, %v1682, %v1404
  %v1694 = vsel %vm822, %v1684, %v1406
  %v1696 = vsel %vm833, %v1686, %v1420
  %v1698 = vsel %vm833, %v1688, %v1422
  %v1700 = vsel %vm833, %v1690, %v1424
  %v1702 = vsel %vm833, %v1692, %v1426
  %v1704 = vsel %vm833, %v1694, %v1428
  %v1706 = vsel %vm844, %v1696, %v1453
  %v1708 = vsel %vm844, %v1698, %v1455
  %v1710 = vsel %vm844, %v1700, %v1457
  %v1712 = vsel %vm844, %v1702, %v1459
  %v1714 = vsel %vm844, %v1704, %v1461
  %v1716 = vsel %vm855, %v1706, %v1505
  %v1718 = vsel %vm855, %v1708, %v1507
  %v1720 = vsel %vm855, %v1710, %v1509
  %v1722 = vsel %vm855, %v1712, %v1511
  %v1724 = vsel %vm855, %v1714, %v1513
  %v1726 = vsel %vm866, %v1716, %v1563
  %v1728 = vsel %vm866, %v1718, %v1565
  %v1730 = vsel %vm866, %v1720, %v1567
  %v1732 = vsel %vm866, %v1722, %v1569
  %v1734 = vsel %vm866, %v1724, %v1571
  %v1736 = vsel %vm877, %v1726, %v1585
  %v1738 = vsel %vm877, %v1728, %v1587
  %v1740 = vsel %vm877, %v1730, %v1589
  %v1742 = vsel %vm877, %v1732, %v1591
  %v1744 = vsel %vm877, %v1734, %v1593
  %vm1750 = vcmask 1043456
  %v1751 = vrot.slane %v1736, 4
  %v1752 = vrot.slane %v1738, 4
  %v1753 = vsel %vm1750, %v1751, %v1752
  %v1754 = vrot.slane %v1740, 4
  %v1755 = vsel %vm1750, %v1752, %v1754
  %v1756 = vrot.slane %v1742, 4
  %v1757 = vsel %vm1750, %v1754, %v1756
  %v1758 = vrot.slane %v1744, 4
  %v1759 = vsel %vm1750, %v1756, %v1758
  %vm1760 = vcmask 1043456
  %v1762 = vsel %vm1760, %v887, %v1751
  %v1763 = vld [vmem:[%s1] sm:$0xf]
  %v1764 = vld [vmem:[%s1 + $0x4] sm:$0xf]
  %v1765 = vld [vmem:[%s1 + $0x8] sm:$0xf]
  %v1766 = vld [vmem:[%s1 + $0xc] sm:$0xf]
  %v1767 = vld [vmem:[%s1 + $0x10] sm:$0xf]
  %v1768 = vld [vmem:[%s1 + $0x14] sm:$0xf]
  %v1769 = vld [vmem:[%s1 + $0x18] sm:$0xf]
  %v1770 = vld [vmem:[%s1 + $0x1c] sm:$0xf]
  %v1771 = vld [vmem:[%s2] sm:$0x1]
  %v1773 = vlaneseq
  %v1774 = vshrl.u32 %v1773, 7
  %v1775 = vsub.s32 0, %v1774
  %v1776 = vrot.slane %v1771, %v1775
  %v1786 = vunpack.c.l.b16 %v1763
  %v1787 = vunpack.c.l.b16 %v1764
  %v1788 = vunpack.c.l.b16 %v1765
  %v1789 = vunpack.c.l.b16 %v1766
  %v1790 = vunpack.c.l.b16 %v1767
  %v1791 = vunpack.c.l.b16 %v1768
  %v1792 = vunpack.c.l.b16 %v1769
  %v1793 = vunpack.c.l.b16 %v1770
  %v1794 = vpack.c.b16 %v1787, %v1786
  %v1795 = vpack.c.b16 %v1789, %v1788
  %v1796 = vpack.c.b16 %v1791, %v1790
  %v1797 = vpack.c.b16 %v1793, %v1792
  %vm1802 = vcmask 523264
  %v1803 = vsel %vm1802, %v879, 0
  %v1805 = vsel %vm1802, %v881, 0
  %v1807 = vsel %vm1802, %v883, 0
  %v1809 = vsel %vm1802, %v885, 0
  %v1811 = vsel %vm1802, %v1762, 0
  %v1814 = vsel %vm1802, %v1753, 0
  %v1817 = vsel %vm1802, %v1755, 0
  %v1820 = vsel %vm1802, %v1757, 0
  %v1823 = vsel %vm1802, %v1759, 0
  %1825 = vmatprep.subr.bf16.mxu0 0
  %1826 = vmatpush1.bf16.msra.mxu0 %v1794
  %1827 = vmatprep.subr.bf16.mxu0 0
  %1828 = vmatpush1.bf16.msra.mxu0 %v1795
  %1829 = vmatprep.subr.bf16.mxu0 0
  %1830 = vmatpush1.bf16.msra.mxu0 %v1796
  %1831 = vmatprep.subr.bf16.mxu0 0
  %1832 = vmatpush1.bf16.msra.mxu0 %v1797
  %1833 = vmatprep.subr.bf16.mxu0 0
  %1834 = vmatpush1.bf16.msra.mxu0 0
  %1835 = vmatprep.subr.bf16.mxu0 0
  %1836 = vmatpush1.bf16.msra.mxu0 0
  %1837 = vmatprep.subr.bf16.mxu0 0
  %1838 = vmatpush1.bf16.msra.mxu0 0
  %1839 = vmatprep.subr.bf16.mxu0 0
  %1840 = vmatpush1.bf16.msra.mxu0 0
  %1841 = vmatprep.subr.bf16.mxu0 0
  %1842 = vmatpush1.bf16.msra.mxu0 0
  %1843 = vmatprep.subr.bf16.mxu0 0
  %1844 = vmatpush1.bf16.msra.mxu0 0
  %1845 = vmatprep.subr.bf16.mxu0 0
  %1846 = vmatpush1.bf16.msra.mxu0 0
  %1847 = vmatprep.subr.bf16.mxu0 0
  %1848 = vmatpush1.bf16.msra.mxu0 0
  %1849 = vmatprep.subr.bf16.mxu0 0
  %1850 = vmatpush1.bf16.msra.mxu0 0
  %1851 = vmatprep.subr.bf16.mxu0 0
  %1852 = vmatpush1.bf16.msra.mxu0 0
  %1853 = vmatprep.subr.bf16.mxu0 0
  %1854 = vmatpush1.bf16.msra.mxu0 0
  %1855 = vmatprep.subr.bf16.mxu0 0
  %1856 = vmatpush1.bf16.msra.mxu0 0
  %1857 = vmatprep.mubr.bf16.mxu0 0
  %1858 = vmatmul.mubr.bf16.gmra.mrb[0].mxu0 %v1803
  %v1859 = vpop.f32.mrb[0].mxu0
  %v1860 = vadd.f32 %v1776, %v1859
  %v1861 = vpop.f32.mrb[0].mxu0
  %v1862 = vpop.f32.mrb[0].mxu0
  %v1863 = vadd.f32 %v1776, %v1862
  %v1864 = vpop.f32.mrb[0].mxu0
  %1865 = vmatprep.mubr.bf16.mxu0 0
  %1866 = vmatmul.mubr.bf16.gmra.mrb[0].mxu0 %v1805
  %v1867 = vpop.f32.mrb[0].mxu0
  %v1868 = vadd.f32 %v1776, %v1867
  %v1869 = vpop.f32.mrb[0].mxu0
  %v1870 = vpop.f32.mrb[0].mxu0
  %v1871 = vadd.f32 %v1776, %v1870
  %v1872 = vpop.f32.mrb[0].mxu0
  %1873 = vmatprep.mubr.bf16.mxu0 0
  %1874 = vmatmul.mubr.bf16.gmra.mrb[0].mxu0 %v1807
  %v1875 = vpop.f32.mrb[0].mxu0
  %v1876 = vadd.f32 %v1776, %v1875
  %v1877 = vpop.f32.mrb[0].mxu0
  %v1878 = vpop.f32.mrb[0].mxu0
  %v1879 = vadd.f32 %v1776, %v1878
  %v1880 = vpop.f32.mrb[0].mxu0
  %1881 = vmatprep.mubr.bf16.mxu0 0
  %1882 = vmatmul.mubr.bf16.gmra.mrb[0].mxu0 %v1809
  %v1883 = vpop.f32.mrb[0].mxu0
  %v1884 = vadd.f32 %v1776, %v1883
  %v1885 = vpop.f32.mrb[0].mxu0
  %v1886 = vpop.f32.mrb[0].mxu0
  %v1887 = vadd.f32 %v1776, %v1886
  %v1888 = vpop.f32.mrb[0].mxu0
  %1889 = vmatprep.mubr.bf16.mxu0 0
  %1890 = vmatmul.mubr.bf16.gmra.mrb[0].mxu0 %v1811
  %v1891 = vpop.f32.mrb[0].mxu0
  %v1892 = vadd.f32 %v1776, %v1891
  %v1893 = vpop.f32.mrb[0].mxu0
  %v1894 = vpop.f32.mrb[0].mxu0
  %v1895 = vadd.f32 %v1776, %v1894
  %v1896 = vpop.f32.mrb[0].mxu0
  %1897 = vmatprep.mubr.bf16.mxu0 0
  %1898 = vmatmul.mubr.bf16.gmra.mrb[0].mxu0 %v1814
  %v1899 = vpop.f32.mrb[0].mxu0
  %v1900 = vadd.f32 %v1776, %v1899
  %v1901 = vpop.f32.mrb[0].mxu0
  %v1902 = vpop.f32.mrb[0].mxu0
  %v1903 = vadd.f32 %v1776, %v1902
  %v1904 = vpop.f32.mrb[0].mxu0
  %1905 = vmatprep.mubr.bf16.mxu0 0
  %1906 = vmatmul.mubr.bf16.gmra.mrb[0].mxu0 %v1817
  %v1907 = vpop.f32.mrb[0].mxu0
  %v1908 = vadd.f32 %v1776, %v1907
  %v1909 = vpop.f32.mrb[0].mxu0
  %v1910 = vpop.f32.mrb[0].mxu0
  %v1911 = vadd.f32 %v1776, %v1910
  %v1912 = vpop.f32.mrb[0].mxu0
  %1913 = vmatprep.mubr.bf16.mxu0 0
  %1914 = vmatmul.mubr.bf16.gmra.mrb[0].mxu0 %v1820
  %v1915 = vpop.f32.mrb[0].mxu0
  %v1916 = vadd.f32 %v1776, %v1915
  %v1917 = vpop.f32.mrb[0].mxu0
  %v1918 = vpop.f32.mrb[0].mxu0
  %v1919 = vadd.f32 %v1776, %v1918
  %v1920 = vpop.f32.mrb[0].mxu0
  %1921 = vmatprep.mubr.bf16.mxu0 0
  %1922 = vmatmul.mubr.bf16.gmra.mrb[0].mxu0 %v1823
  %v1923 = vpop.f32.mrb[0].mxu0
  %v1924 = vadd.f32 %v1776, %v1923
  %v1925 = vpop.f32.mrb[0].mxu0
  %v1926 = vpop.f32.mrb[0].mxu0
  %v1927 = vadd.f32 %v1776, %v1926
  %v1928 = vpop.f32.mrb[0].mxu0
  %1929 = vdwg.mxu0
  %v1930 = vmax.f32 %v1860, 0.0
  %v1931 = vmax.f32 %v1863, 0.0
  %v1932 = vmax.f32 %v1868, 0.0
  %v1933 = vmax.f32 %v1871, 0.0
  %v1934 = vmax.f32 %v1876, 0.0
  %v1935 = vmax.f32 %v1879, 0.0
  %v1936 = vmax.f32 %v1884, 0.0
  %v1937 = vmax.f32 %v1887, 0.0
  %v1938 = vmax.f32 %v1892, 0.0
  %v1939 = vmax.f32 %v1895, 0.0
  %v1940 = vmax.f32 %v1900, 0.0
  %v1941 = vmax.f32 %v1903, 0.0
  %v1942 = vmax.f32 %v1908, 0.0
  %v1943 = vmax.f32 %v1911, 0.0
  %v1944 = vmax.f32 %v1916, 0.0
  %v1945 = vmax.f32 %v1919, 0.0
  %v1946 = vmax.f32 %v1924, 0.0
  %v1947 = vmax.f32 %v1927, 0.0
  %v1948 = vpack.c.bf16 %v1931, %v1930
  %v1949 = vpack.c.bf16 %v1933, %v1932
  %v1950 = vpack.c.bf16 %v1935, %v1934
  %v1951 = vpack.c.bf16 %v1937, %v1936
  %v1952 = vpack.c.bf16 %v1939, %v1938
  %v1953 = vpack.c.bf16 %v1941, %v1940
  %v1954 = vpack.c.bf16 %v1943, %v1942
  %v1955 = vpack.c.bf16 %v1945, %v1944
  %v1956 = vpack.c.bf16 %v1947, %v1946
  %v1966 = vunpack.c.l.b16 %v1948
  %v1967 = vunpack.c.h.b16 %v1948
  %v1968 = vunpack.c.l.b16 %v1949
  %v1969 = vunpack.c.h.b16 %v1949
  %v1970 = vunpack.c.l.b16 %v1950
  %v1971 = vunpack.c.h.b16 %v1950
  %v1972 = vunpack.c.l.b16 %v1951
  %v1973 = vunpack.c.h.b16 %v1951
  %v1974 = vunpack.c.l.b16 %v1952
  %v1975 = vunpack.c.h.b16 %v1952
  %v1976 = vunpack.c.l.b16 %v1953
  %v1977 = vunpack.c.h.b16 %v1953
  %v1978 = vunpack.c.l.b16 %v1954
  %v1979 = vunpack.c.h.b16 %v1954
  %v1980 = vunpack.c.l.b16 %v1955
  %v1981 = vunpack.c.h.b16 %v1955
  %v1982 = vunpack.c.l.b16 %v1956
  %v1983 = vunpack.c.h.b16 %v1956
  %v1984 = vpack.c.b16 %v1966, %v1966
  %v1985 = vpack.c.b16 %v1967, %v1967
  %v1986 = vpack.c.b16 %v1968, %v1968
  %v1987 = vpack.c.b16 %v1969, %v1969
  %v1988 = vpack.c.b16 %v1970, %v1970
  %v1989 = vpack.c.b16 %v1971, %v1971
  %v1990 = vpack.c.b16 %v1972, %v1972
  %v1991 = vpack.c.b16 %v1973, %v1973
  %v1992 = vpack.c.b16 %v1974, %v1974
  %v1993 = vpack.c.b16 %v1975, %v1975
  %v1994 = vpack.c.b16 %v1976, %v1976
  %v1995 = vpack.c.b16 %v1977, %v1977
  %v1996 = vpack.c.b16 %v1978, %v1978
  %v1997 = vpack.c.b16 %v1979, %v1979
  %v1998 = vpack.c.b16 %v1980, %v1980
  %v1999 = vpack.c.b16 %v1981, %v1981
  %v2000 = vpack.c.b16 %v1982, %v1982
  %v2001 = vpack.c.b16 %v1983, %v1983
  %vm2020 = vcmask 125952
  %2021 = vst.msk [vmem:[%s3] sm:$0xf] %vm2020, %v1984
  %2022 = vst.msk [vmem:[%s3 + $0x4] sm:$0xf] %vm2020, %v1985
  %2023 = vst.msk [vmem:[%s3 + $0x8] sm:$0xf] %vm2020, %v1986
  %2024 = vst.msk [vmem:[%s3 + $0xc] sm:$0xf] %vm2020, %v1987
  %2025 = vst.msk [vmem:[%s3 + $0x10] sm:$0xf] %vm2020, %v1988
  %2026 = vst.msk [vmem:[%s3 + $0x14] sm:$0xf] %vm2020, %v1989
  %2027 = vst.msk [vmem:[%s3 + $0x18] sm:$0xf] %vm2020, %v1990
  %2028 = vst.msk [vmem:[%s3 + $0x1c] sm:$0xf] %vm2020, %v1991
  %2029 = vst.msk [vmem:[%s3 + $0x20] sm:$0xf] %vm2020, %v1992
  %2030 = vst.msk [vmem:[%s3 + $0x24] sm:$0xf] %vm2020, %v1993
  %2031 = vst.msk [vmem:[%s3 + $0x28] sm:$0xf] %vm2020, %v1994
  %2032 = vst.msk [vmem:[%s3 + $0x2c] sm:$0xf] %vm2020, %v1995
  %2033 = vst.msk [vmem:[%s3 + $0x30] sm:$0xf] %vm2020, %v1996
  %2034 = vst.msk [vmem:[%s3 + $0x34] sm:$0xf] %vm2020, %v1997
  %2035 = vst.msk [vmem:[%s3 + $0x38] sm:$0xf] %vm2020, %v1998
  %2036 = vst.msk [vmem:[%s3 + $0x3c] sm:$0xf] %vm2020, %v1999
  %2037 = vst.msk [vmem:[%s3 + $0x40] sm:$0xf] %vm2020, %v2000
  %2038 = vst.msk [vmem:[%s3 + $0x44] sm:$0xf] %vm2020, %v2001
  // Predicated region
  $region14: #{res_encoder_forward.3} parent=0 // pred_check
    _
  $region15: #{res_encoder_forward.3} parent=0 // pred_check_branch
    %2040 = sbr.rel (0) target = $region17
  $region16: #{res_encoder_forward.3} parent=0 // pred_region
    _
  $region17: #{res_encoder_forward.3} parent=0 // pred_fallthru
    _
  // Predicated region
  $region18: #{res_encoder_forward.3} parent=0 // pred_check
    _
  $region19: #{res_encoder_forward.3} parent=0 // pred_check_branch
    %2042 = sbr.rel (0) target = $region21
  $region20: #{res_encoder_forward.3} parent=0 // pred_region
    _
  $region21: #{res_encoder_forward.3} parent=0 // pred_fallthru
    _

// kernel: res_encoder_forward.4
$region0: #{res_encoder_forward.4}
  #allocation0 [shape = 'u32[]', space=smem, size = 0x4, offset = 0x4, fixed_abs, tag = 'smem constant byte address 0x4 - core index']
  #allocation1 [shape = 'u32[144,128]{1,0:T(1,128)}', space=vmem, size = 0x12000, scoped, tag = 'internal scratch']
  %s0 = inlined_call_operand.vmem [shape: bf16[4,2,26,16], index: 0, kind: input, shape index: {}]
  %s1 = inlined_call_operand.vmem [shape: bf16[256,32], index: 1, kind: input, shape index: {}]
  %s2 = inlined_call_operand.vmem [shape: f32[1,32], index: 2, kind: input, shape index: {}]
  %s3 = inlined_call_operand.vmem [shape: bf16[2,20,32], index: 3, kind: output, shape index: {}]
  %s4 = sld [smem:[#allocation0]]
  $region22: #{res_encoder_forward.4} parent=0
    _
  %s6 = ssub.s32 1, %s4
  %s7 = scalar_select 0, %s6, %s4
  // Predicated region
  $region2: #{res_encoder_forward.4} parent=0 // pred_check
    _
  $region3: #{res_encoder_forward.4} parent=0 // pred_check_branch
    %9 = sbr.rel (0) target = $region5
  $region4: #{res_encoder_forward.4} parent=0 // pred_region
    _
  $region5: #{res_encoder_forward.4} parent=0 // pred_fallthru
    _
  // Predicated region
  $region6: #{res_encoder_forward.4} parent=0 // pred_check
    _
  $region7: #{res_encoder_forward.4} parent=0 // pred_check_branch
    %11 = sbr.rel (0) target = $region9
  $region8: #{res_encoder_forward.4} parent=0 // pred_region
    _
  $region9: #{res_encoder_forward.4} parent=0 // pred_fallthru
    _
  // Predicated region
  $region10: #{res_encoder_forward.4} parent=0 // pred_check
    _
  $region11: #{res_encoder_forward.4} parent=0 // pred_check_branch
    %13 = sbr.rel (0) target = $region13
  $region12: #{res_encoder_forward.4} parent=0 // pred_region
    _
  $region13: #{res_encoder_forward.4} parent=0 // pred_fallthru
    _
  %v15 = vld [vmem:[%s0] sm:$0xf]
  %v16 = vld [vmem:[%s0 + $0x4] sm:$0xf]
  %v17 = vld [vmem:[%s0 + $0x8] sm:$0x3]
  %v18 = vld [vmem:[%s0 + $0x8] sm:$0x7]
  %v19 = vld [vmem:[%s0] sm:$0xc]
  %v20 = vld [vmem:[%s0 + $0x8] sm:$0xf]
  %v21 = vld [vmem:[%s0 + $0xc] sm:$0x1]
  %v22 = vld [vmem:[%s0] sm:$0x8]
  %s23 = scalar_lea.vmem %s0, 32
  %v24 = vld [vmem:[%s23] sm:$0xf]
  %v25 = vld [vmem:[%s23 + $0x4] sm:$0xf]
  %v26 = vld [vmem:[%s23 + $0x8] sm:$0x3]
  %v27 = vld [vmem:[%s23 + $0x8] sm:$0x7]
  %v28 = vld [vmem:[%s23] sm:$0xc]
  %v29 = vld [vmem:[%s23 + $0x8] sm:$0xf]
  %v30 = vld [vmem:[%s23 + $0xc] sm:$0x1]
  %v31 = vld [vmem:[%s23] sm:$0x8]
  %s32 = scalar_lea.vmem %s0, 64
  %v33 = vld [vmem:[%s32] sm:$0xf]
  %v34 = vld [vmem:[%s32 + $0x4] sm:$0xf]
  %v35 = vld [vmem:[%s32 + $0x8] sm:$0x3]
  %v36 = vld [vmem:[%s32 + $0x8] sm:$0x7]
  %v37 = vld [vmem:[%s32] sm:$0xc]
  %v38 = vld [vmem:[%s32 + $0x8] sm:$0xf]
  %v39 = vld [vmem:[%s32 + $0xc] sm:$0x1]
  %v40 = vld [vmem:[%s32] sm:$0x8]
  %s41 = scalar_lea.vmem %s0, 96
  %v42 = vld [vmem:[%s41] sm:$0xf]
  %v43 = vld [vmem:[%s41 + $0x4] sm:$0xf]
  %v44 = vld [vmem:[%s41 + $0x8] sm:$0x3]
  %v45 = vld [vmem:[%s41 + $0x8] sm:$0x7]
  %v46 = vld [vmem:[%s41] sm:$0xc]
  %v47 = vld [vmem:[%s41 + $0x8] sm:$0xf]
  %v48 = vld [vmem:[%s41 + $0xc] sm:$0x1]
  %v49 = vld [vmem:[%s41] sm:$0x8]
  %v53 = vunpack.c.l.b16 %v15
  %v54 = vunpack.c.l.b16 %v16
  %v55 = vunpack.c.l.b16 %v17
  %v56 = vpack.c.b16 %v54, %v53
  %v57 = vpack.c.b16 %v55, %v55
  %v59 = vunpack.c.l.b16 %v18
  %v60 = vpack.c.b16 %v59, %v59
  %vm61 = vsmask.f32 7424
  %v63 = vshrl.u32 %v56, 16
  %v65 = vshll.u32 %v56, 16
  %v67 = vrot.slane %v65, 1
  %v68 = vor.u32 %v63, %v67
  %v70 = vshll.u32 %v60, 16
  %v72 = vrot.slane %v70, 1
  %v73 = vsel %vm61, %v68, %v72
  %v74 = vshrl.u32 %v60, 16
  %v76 = vor.u32 %v74, %v72
  %77 = vrot.lane.b32.xlu0 %v73, 16
  %v78 = vpop.permute.xlu0 %77
  %79 = vrot.lane.b32.xlu0 %v76, 16
  %v80 = vpop.permute.xlu0 %79
  %v84 = vunpack.c.l.b16 %v19
  %v85 = vunpack.c.l.b16 %v20
  %v86 = vunpack.c.l.b16 %v21
  %v87 = vpack.c.b16 %v54, %v84
  %v88 = vpack.c.b16 %v86, %v85
  %vm89 = vsmask.f32 5376
  %v91 = vshrl.u32 %v87, 16
  %v93 = vrot.slane %v91, 2
  %v94 = vshll.u32 %v87, 16
  %v96 = vrot.slane %v94, 3
  %v97 = vor.u32 %v93, %v96
  %v99 = vshrl.u32 %v88, 16
  %v101 = vrot.slane %v99, 2
  %v102 = vshll.u32 %v88, 16
  %v104 = vrot.slane %v102, 3
  %v105 = vor.u32 %v101, %v104
  %v106 = vsel %vm89, %v97, %v105
  %107 = vrot.lane.b32.xlu0 %v106, 32
  %v108 = vpop.permute.xlu0 %107
  %109 = vrot.lane.b32.xlu0 %v105, 32
  %v110 = vpop.permute.xlu0 %109
  %v112 = vunpack.c.l.b16 %v22
  %v113 = vpack.c.b16 %v54, %v112
  %vm114 = vcmask 1044480
  %v115 = vrot.slane %v113, 3
  %v116 = vrot.slane %v88, 3
  %v117 = vsel %vm114, %v115, %v116
  %118 = vrot.lane.b32.xlu0 %v117, 48
  %v119 = vpop.permute.xlu0 %118
  %120 = vrot.lane.b32.xlu0 %v116, 48
  %v121 = vpop.permute.xlu0 %120
  %v125 = vunpack.c.l.b16 %v24
  %v126 = vunpack.c.l.b16 %v25
  %v127 = vunpack.c.l.b16 %v26
  %v128 = vpack.c.b16 %v126, %v125
  %v129 = vpack.c.b16 %v127, %v127
  %130 = vrot.lane.b32.xlu0 %v128, 64
  %v131 = vpop.permute.xlu0 %130
  %132 = vrot.lane.b32.xlu0 %v129, 64
  %v133 = vpop.permute.xlu0 %132
  %v135 = vunpack.c.l.b16 %v27
  %v136 = vpack.c.b16 %v135, %v135
  %v138 = vshrl.u32 %v128, 16
  %v140 = vshll.u32 %v128, 16
  %v142 = vrot.slane %v140, 1
  %v143 = vor.u32 %v138, %v142
  %v145 = vshll.u32 %v136, 16
  %v147 = vrot.slane %v145, 1
  %v148 = vsel %vm61, %v143, %v147
  %v149 = vshrl.u32 %v136, 16
  %v151 = vor.u32 %v149, %v147
  %152 = vrot.lane.b32.xlu0 %v148, 80
  %v153 = vpop.permute.xlu0 %152
  %154 = vrot.lane.b32.xlu0 %v151, 80
  %v155 = vpop.permute.xlu0 %154
  %v159 = vunpack.c.l.b16 %v28
  %v160 = vunpack.c.l.b16 %v29
  %v161 = vunpack.c.l.b16 %v30
  %v162 = vpack.c.b16 %v126, %v159
  %v163 = vpack.c.b16 %v161, %v160
  %v165 = vshrl.u32 %v162, 16
  %v167 = vrot.slane %v165, 2
  %v168 = vshll.u32 %v162, 16
  %v170 = vrot.slane %v168, 3
  %v171 = vor.u32 %v167, %v170
  %v173 = vshrl.u32 %v163, 16
  %v175 = vrot.slane %v173, 2
  %v176 = vshll.u32 %v163, 16
  %v178 = vrot.slane %v176, 3
  %v179 = vor.u32 %v175, %v178
  %v180 = vsel %vm89, %v171, %v179
  %181 = vrot.lane.b32.xlu0 %v180, 96
  %v182 = vpop.permute.xlu0 %181
  %183 = vrot.lane.b32.xlu0 %v179, 96
  %v184 = vpop.permute.xlu0 %183
  %v186 = vunpack.c.l.b16 %v31
  %v187 = vpack.c.b16 %v126, %v186
  %v188 = vrot.slane %v187, 3
  %v189 = vrot.slane %v163, 3
  %v190 = vsel %vm114, %v188, %v189
  %191 = vrot.lane.b32.xlu0 %v190, 112
  %v192 = vpop.permute.xlu0 %191
  %193 = vrot.lane.b32.xlu0 %v189, 112
  %v194 = vpop.permute.xlu0 %193
  %v198 = vunpack.c.l.b16 %v33
  %v199 = vunpack.c.l.b16 %v34
  %v200 = vunpack.c.l.b16 %v35
  %v201 = vpack.c.b16 %v199, %v198
  %v202 = vpack.c.b16 %v200, %v200
  %v204 = vunpack.c.l.b16 %v36
  %v205 = vpack.c.b16 %v204, %v204
  %v207 = vshrl.u32 %v201, 16
  %v209 = vshll.u32 %v201, 16
  %v211 = vrot.slane %v209, 1
  %v212 = vor.u32 %v207, %v211
  %v214 = vshll.u32 %v205, 16
  %v216 = vrot.slane %v214, 1
  %v217 = vsel %vm61, %v212, %v216
  %v218 = vshrl.u32 %v205, 16
  %v220 = vor.u32 %v218, %v216
  %221 = vrot.lane.b32.xlu0 %v217, 16
  %v222 = vpop.permute.xlu0 %221
  %223 = vrot.lane.b32.xlu0 %v220, 16
  %v224 = vpop.permute.xlu0 %223
  %v228 = vunpack.c.l.b16 %v37
  %v229 = vunpack.c.l.b16 %v38
  %v230 = vunpack.c.l.b16 %v39
  %v231 = vpack.c.b16 %v199, %v228
  %v232 = vpack.c.b16 %v230, %v229
  %v234 = vshrl.u32 %v231, 16
  %v236 = vrot.slane %v234, 2
  %v237 = vshll.u32 %v231, 16
  %v239 = vrot.slane %v237, 3
  %v240 = vor.u32 %v236, %v239
  %v242 = vshrl.u32 %v232, 16
  %v244 = vrot.slane %v242, 2
  %v245 = vshll.u32 %v232, 16
  %v247 = vrot.slane %v245, 3
  %v248 = vor.u32 %v244, %v247
  %v249 = vsel %vm89, %v240, %v248
  %250 = vrot.lane.b32.xlu0 %v249, 32
  %v251 = vpop.permute.xlu0 %250
  %252 = vrot.lane.b32.xlu0 %v248, 32
  %v253 = vpop.permute.xlu0 %252
  %v255 = vunpack.c.l.b16 %v40
  %v256 = vpack.c.b16 %v199, %v255
  %v257 = vrot.slane %v256, 3
  %v258 = vrot.slane %v232, 3
  %v259 = vsel %vm114, %v257, %v258
  %260 = vrot.lane.b32.xlu0 %v259, 48
  %v261 = vpop.permute.xlu0 %260
  %262 = vrot.lane.b32.xlu0 %v258, 48
  %v263 = vpop.permute.xlu0 %262
  %v267 = vunpack.c.l.b16 %v42
  %v268 = vunpack.c.l.b16 %v43
  %v269 = vunpack.c.l.b16 %v44
  %v270 = vpack.c.b16 %v268, %v267
  %v271 = vpack.c.b16 %v269, %v269
  %272 = vrot.lane.b32.xlu0 %v270, 64
  %v273 = vpop.permute.xlu0 %272
  %274 = vrot.lane.b32.xlu0 %v271, 64
  %v275 = vpop.permute.xlu0 %274
  %v277 = vunpack.c.l.b16 %v45
  %v278 = vpack.c.b16 %v277, %v277
  %v280 = vshrl.u32 %v270, 16
  %v282 = vshll.u32 %v270, 16
  %v284 = vrot.slane %v282, 1
  %v285 = vor.u32 %v280, %v284
  %v287 = vshll.u32 %v278, 16
  %v289 = vrot.slane %v287, 1
  %v290 = vsel %vm61, %v285, %v289
  %v291 = vshrl.u32 %v278, 16
  %v293 = vor.u32 %v291, %v289
  %294 = vrot.lane.b32.xlu0 %v290, 80
  %v295 = vpop.permute.xlu0 %294
  %296 = vrot.lane.b32.xlu0 %v293, 80
  %v297 = vpop.permute.xlu0 %296
  %v301 = vunpack.c.l.b16 %v46
  %v302 = vunpack.c.l.b16 %v47
  %v303 = vunpack.c.l.b16 %v48
  %v304 = vpack.c.b16 %v268, %v301
  %v305 = vpack.c.b16 %v303, %v302
  %v307 = vshrl.u32 %v304, 16
  %v309 = vrot.slane %v307, 2
  %v310 = vshll.u32 %v304, 16
  %v312 = vrot.slane %v310, 3
  %v313 = vor.u32 %v309, %v312
  %v315 = vshrl.u32 %v305, 16
  %v317 = vrot.slane %v315, 2
  %v318 = vshll.u32 %v305, 16
  %v320 = vrot.slane %v318, 3
  %v321 = vor.u32 %v317, %v320
  %v322 = vsel %vm89, %v313, %v321
  %323 = vrot.lane.b32.xlu0 %v322, 96
  %v324 = vpop.permute.xlu0 %323
  %325 = vrot.lane.b32.xlu0 %v321, 96
  %v326 = vpop.permute.xlu0 %325
  %v328 = vunpack.c.l.b16 %v49
  %v329 = vpack.c.b16 %v268, %v328
  %v330 = vrot.slane %v329, 3
  %v331 = vrot.slane %v305, 3
  %v332 = vsel %vm114, %v330, %v331
  %333 = vrot.lane.b32.xlu0 %v332, 112
  %v334 = vpop.permute.xlu0 %333
  %335 = vrot.lane.b32.xlu0 %v331, 112
  %v336 = vpop.permute.xlu0 %335
  %vm337 = vcmask 130048
  %v339 = vsel %vm337, %v56, %v78
  %v342 = vsel %vm337, %v57, %v80
  %vm343 = vcmask 261120
  %v345 = vsel %vm343, %v339, %v108
  %v347 = vsel %vm343, %v342, %v110
  %vm348 = vcmask 392192
  %v350 = vsel %vm348, %v345, %v119
  %v352 = vsel %vm348, %v347, %v121
  %vm353 = vcmask 523264
  %v355 = vsel %vm353, %v350, %v131
  %v357 = vsel %vm353, %v352, %v133
  %vm358 = vcmask 654336
  %v360 = vsel %vm358, %v355, %v153
  %v362 = vsel %vm358, %v357, %v155
  %vm363 = vcmask 785408
  %v365 = vsel %vm363, %v360, %v182
  %v367 = vsel %vm363, %v362, %v184
  %vm368 = vcmask 916480
  %v370 = vsel %vm368, %v365, %v192
  %v373 = vsel %vm368, %v367, %v194
  %v375 = vsel %vm337, %v201, %v222
  %v378 = vsel %vm337, %v202, %v224
  %v380 = vsel %vm343, %v375, %v251
  %v382 = vsel %vm343, %v378, %v253
  %v384 = vsel %vm348, %v380, %v261
  %v386 = vsel %vm348, %v382, %v263
  %v388 = vsel %vm353, %v384, %v273
  %v390 = vsel %vm353, %v386, %v275
  %v392 = vsel %vm358, %v388, %v295
  %v394 = vsel %vm358, %v390, %v297
  %v396 = vsel %vm363, %v392, %v324
  %v398 = vsel %vm363, %v394, %v326
  %v400 = vsel %vm368, %v396, %v334
  %v403 = vsel %vm368, %v398, %v336
  %s404 = scalar_lea.vmem %s0, 16
  %v405 = vld [vmem:[%s404] sm:$0xf]
  %v406 = vld [vmem:[%s404 + $0x4] sm:$0xf]
  %v407 = vld [vmem:[%s404 + $0x8] sm:$0x3]
  %v408 = vld [vmem:[%s404 + $0x8] sm:$0x7]
  %v409 = vld [vmem:[%s404] sm:$0xc]
  %v410 = vld [vmem:[%s404 + $0x8] sm:$0xf]
  %v411 = vld [vmem:[%s404 + $0xc] sm:$0x1]
  %v412 = vld [vmem:[%s404] sm:$0x8]
  %s413 = scalar_lea.vmem %s0, 48
  %v414 = vld [vmem:[%s413] sm:$0xf]
  %v415 = vld [vmem:[%s413 + $0x4] sm:$0xf]
  %v416 = vld [vmem:[%s413 + $0x8] sm:$0x3]
  %v417 = vld [vmem:[%s413 + $0x8] sm:$0x7]
  %v418 = vld [vmem:[%s413] sm:$0xc]
  %v419 = vld [vmem:[%s413 + $0x8] sm:$0xf]
  %v420 = vld [vmem:[%s413 + $0xc] sm:$0x1]
  %v421 = vld [vmem:[%s413] sm:$0x8]
  %s422 = scalar_lea.vmem %s0, 80
  %v423 = vld [vmem:[%s422] sm:$0xf]
  %v424 = vld [vmem:[%s422 + $0x4] sm:$0xf]
  %v425 = vld [vmem:[%s422 + $0x8] sm:$0x3]
  %v426 = vld [vmem:[%s422 + $0x8] sm:$0x7]
  %v427 = vld [vmem:[%s422] sm:$0xc]
  %v428 = vld [vmem:[%s422 + $0x8] sm:$0xf]
  %v429 = vld [vmem:[%s422 + $0xc] sm:$0x1]
  %v430 = vld [vmem:[%s422] sm:$0x8]
  %s431 = scalar_lea.vmem %s0, 112
  %v432 = vld [vmem:[%s431] sm:$0xf]
  %v433 = vld [vmem:[%s431 + $0x4] sm:$0xf]
  %v434 = vld [vmem:[%s431 + $0x8] sm:$0x3]
  %v435 = vld [vmem:[%s431 + $0x8] sm:$0x7]
  %v436 = vld [vmem:[%s431] sm:$0xc]
  %v437 = vld [vmem:[%s431 + $0x8] sm:$0xf]
  %v438 = vld [vmem:[%s431 + $0xc] sm:$0x1]
  %v439 = vld [vmem:[%s431] sm:$0x8]
  %v443 = vunpack.c.l.b16 %v405
  %v444 = vunpack.c.l.b16 %v406
  %v445 = vunpack.c.l.b16 %v407
  %v446 = vpack.c.b16 %v444, %v443
  %v447 = vpack.c.b16 %v445, %v445
  %v449 = vunpack.c.l.b16 %v408
  %v450 = vpack.c.b16 %v449, %v449
  %v452 = vshrl.u32 %v446, 16
  %v454 = vshll.u32 %v446, 16
  %v456 = vrot.slane %v454, 1
  %v457 = vor.u32 %v452, %v456
  %v459 = vshll.u32 %v450, 16
  %v461 = vrot.slane %v459, 1
  %v462 = vsel %vm61, %v457, %v461
  %v463 = vshrl.u32 %v450, 16
  %v465 = vor.u32 %v463, %v461
  %466 = vrot.lane.b32.xlu0 %v462, 16
  %v467 = vpop.permute.xlu0 %466
  %468 = vrot.lane.b32.xlu0 %v465, 16
  %v469 = vpop.permute.xlu0 %468
  %v473 = vunpack.c.l.b16 %v409
  %v474 = vunpack.c.l.b16 %v410
  %v475 = vunpack.c.l.b16 %v411
  %v476 = vpack.c.b16 %v444, %v473
  %v477 = vpack.c.b16 %v475, %v474
  %v479 = vshrl.u32 %v476, 16
  %v481 = vrot.slane %v479, 2
  %v482 = vshll.u32 %v476, 16
  %v484 = vrot.slane %v482, 3
  %v485 = vor.u32 %v481, %v484
  %v487 = vshrl.u32 %v477, 16
  %v489 = vrot.slane %v487, 2
  %v490 = vshll.u32 %v477, 16
  %v492 = vrot.slane %v490, 3
  %v493 = vor.u32 %v489, %v492
  %v494 = vsel %vm89, %v485, %v493
  %495 = vrot.lane.b32.xlu0 %v494, 32
  %v496 = vpop.permute.xlu0 %495
  %497 = vrot.lane.b32.xlu0 %v493, 32
  %v498 = vpop.permute.xlu0 %497
  %v500 = vunpack.c.l.b16 %v412
  %v501 = vpack.c.b16 %v444, %v500
  %v502 = vrot.slane %v501, 3
  %v503 = vrot.slane %v477, 3
  %v504 = vsel %vm114, %v502, %v503
  %505 = vrot.lane.b32.xlu0 %v504, 48
  %v506 = vpop.permute.xlu0 %505
  %507 = vrot.lane.b32.xlu0 %v503, 48
  %v508 = vpop.permute.xlu0 %507
  %v512 = vunpack.c.l.b16 %v414
  %v513 = vunpack.c.l.b16 %v415
  %v514 = vunpack.c.l.b16 %v416
  %v515 = vpack.c.b16 %v513, %v512
  %v516 = vpack.c.b16 %v514, %v514
  %517 = vrot.lane.b32.xlu0 %v515, 64
  %v518 = vpop.permute.xlu0 %517
  %519 = vrot.lane.b32.xlu0 %v516, 64
  %v520 = vpop.permute.xlu0 %519
  %v522 = vunpack.c.l.b16 %v417
  %v523 = vpack.c.b16 %v522, %v522
  %v525 = vshrl.u32 %v515, 16
  %v527 = vshll.u32 %v515, 16
  %v529 = vrot.slane %v527, 1
  %v530 = vor.u32 %v525, %v529
  %v532 = vshll.u32 %v523, 16
  %v534 = vrot.slane %v532, 1
  %v535 = vsel %vm61, %v530, %v534
  %v536 = vshrl.u32 %v523, 16
  %v538 = vor.u32 %v536, %v534
  %539 = vrot.lane.b32.xlu0 %v535, 80
  %v540 = vpop.permute.xlu0 %539
  %541 = vrot.lane.b32.xlu0 %v538, 80
  %v542 = vpop.permute.xlu0 %541
  %v546 = vunpack.c.l.b16 %v418
  %v547 = vunpack.c.l.b16 %v419
  %v548 = vunpack.c.l.b16 %v420
  %v549 = vpack.c.b16 %v513, %v546
  %v550 = vpack.c.b16 %v548, %v547
  %v552 = vshrl.u32 %v549, 16
  %v554 = vrot.slane %v552, 2
  %v555 = vshll.u32 %v549, 16
  %v557 = vrot.slane %v555, 3
  %v558 = vor.u32 %v554, %v557
  %v560 = vshrl.u32 %v550, 16
  %v562 = vrot.slane %v560, 2
  %v563 = vshll.u32 %v550, 16
  %v565 = vrot.slane %v563, 3
  %v566 = vor.u32 %v562, %v565
  %v567 = vsel %vm89, %v558, %v566
  %568 = vrot.lane.b32.xlu0 %v567, 96
  %v569 = vpop.permute.xlu0 %568
  %570 = vrot.lane.b32.xlu0 %v566, 96
  %v571 = vpop.permute.xlu0 %570
  %v573 = vunpack.c.l.b16 %v421
  %v574 = vpack.c.b16 %v513, %v573
  %v575 = vrot.slane %v574, 3
  %v576 = vrot.slane %v550, 3
  %v577 = vsel %vm114, %v575, %v576
  %578 = vrot.lane.b32.xlu0 %v577, 112
  %v579 = vpop.permute.xlu0 %578
  %580 = vrot.lane.b32.xlu0 %v576, 112
  %v581 = vpop.permute.xlu0 %580
  %v585 = vunpack.c.l.b16 %v423
  %v586 = vunpack.c.l.b16 %v424
  %v587 = vunpack.c.l.b16 %v425
  %v588 = vpack.c.b16 %v586, %v585
  %v589 = vpack.c.b16 %v587, %v587
  %v591 = vunpack.c.l.b16 %v426
  %v592 = vpack.c.b16 %v591, %v591
  %v594 = vshrl.u32 %v588, 16
  %v596 = vshll.u32 %v588, 16
  %v598 = vrot.slane %v596, 1
  %v599 = vor.u32 %v594, %v598
  %v601 = vshll.u32 %v592, 16
  %v603 = vrot.slane %v601, 1
  %v604 = vsel %vm61, %v599, %v603
  %v605 = vshrl.u32 %v592, 16
  %v607 = vor.u32 %v605, %v603
  %608 = vrot.lane.b32.xlu0 %v604, 16
  %v609 = vpop.permute.xlu0 %608
  %610 = vrot.lane.b32.xlu0 %v607, 16
  %v611 = vpop.permute.xlu0 %610
  %v615 = vunpack.c.l.b16 %v427
  %v616 = vunpack.c.l.b16 %v428
  %v617 = vunpack.c.l.b16 %v429
  %v618 = vpack.c.b16 %v586, %v615
  %v619 = vpack.c.b16 %v617, %v616
  %v621 = vshrl.u32 %v618, 16
  %v623 = vrot.slane %v621, 2
  %v624 = vshll.u32 %v618, 16
  %v626 = vrot.slane %v624, 3
  %v627 = vor.u32 %v623, %v626
  %v629 = vshrl.u32 %v619, 16
  %v631 = vrot.slane %v629, 2
  %v632 = vshll.u32 %v619, 16
  %v634 = vrot.slane %v632, 3
  %v635 = vor.u32 %v631, %v634
  %v636 = vsel %vm89, %v627, %v635
  %637 = vrot.lane.b32.xlu0 %v636, 32
  %v638 = vpop.permute.xlu0 %637
  %639 = vrot.lane.b32.xlu0 %v635, 32
  %v640 = vpop.permute.xlu0 %639
  %v642 = vunpack.c.l.b16 %v430
  %v643 = vpack.c.b16 %v586, %v642
  %v644 = vrot.slane %v643, 3
  %v645 = vrot.slane %v619, 3
  %v646 = vsel %vm114, %v644, %v645
  %647 = vrot.lane.b32.xlu0 %v646, 48
  %v648 = vpop.permute.xlu0 %647
  %649 = vrot.lane.b32.xlu0 %v645, 48
  %v650 = vpop.permute.xlu0 %649
  %v654 = vunpack.c.l.b16 %v432
  %v655 = vunpack.c.l.b16 %v433
  %v656 = vunpack.c.l.b16 %v434
  %v657 = vpack.c.b16 %v655, %v654
  %v658 = vpack.c.b16 %v656, %v656
  %659 = vrot.lane.b32.xlu0 %v657, 64
  %v660 = vpop.permute.xlu0 %659
  %661 = vrot.lane.b32.xlu0 %v658, 64
  %v662 = vpop.permute.xlu0 %661
  %v664 = vunpack.c.l.b16 %v435
  %v665 = vpack.c.b16 %v664, %v664
  %v667 = vshrl.u32 %v657, 16
  %v669 = vshll.u32 %v657, 16
  %v671 = vrot.slane %v669, 1
  %v672 = vor.u32 %v667, %v671
  %v674 = vshll.u32 %v665, 16
  %v676 = vrot.slane %v674, 1
  %v677 = vsel %vm61, %v672, %v676
  %v678 = vshrl.u32 %v665, 16
  %v680 = vor.u32 %v678, %v676
  %681 = vrot.lane.b32.xlu0 %v677, 80
  %v682 = vpop.permute.xlu0 %681
  %683 = vrot.lane.b32.xlu0 %v680, 80
  %v684 = vpop.permute.xlu0 %683
  %v688 = vunpack.c.l.b16 %v436
  %v689 = vunpack.c.l.b16 %v437
  %v690 = vunpack.c.l.b16 %v438
  %v691 = vpack.c.b16 %v655, %v688
  %v692 = vpack.c.b16 %v690, %v689
  %v694 = vshrl.u32 %v691, 16
  %v696 = vrot.slane %v694, 2
  %v697 = vshll.u32 %v691, 16
  %v699 = vrot.slane %v697, 3
  %v700 = vor.u32 %v696, %v699
  %v702 = vshrl.u32 %v692, 16
  %v704 = vrot.slane %v702, 2
  %v705 = vshll.u32 %v692, 16
  %v707 = vrot.slane %v705, 3
  %v708 = vor.u32 %v704, %v707
  %v709 = vsel %vm89, %v700, %v708
  %710 = vrot.lane.b32.xlu0 %v709, 96
  %v711 = vpop.permute.xlu0 %710
  %712 = vrot.lane.b32.xlu0 %v708, 96
  %v713 = vpop.permute.xlu0 %712
  %v715 = vunpack.c.l.b16 %v439
  %v716 = vpack.c.b16 %v655, %v715
  %v717 = vrot.slane %v716, 3
  %v718 = vrot.slane %v692, 3
  %v719 = vsel %vm114, %v717, %v718
  %720 = vrot.lane.b32.xlu0 %v719, 112
  %v721 = vpop.permute.xlu0 %720
  %722 = vrot.lane.b32.xlu0 %v718, 112
  %v723 = vpop.permute.xlu0 %722
  %v725 = vsel %vm337, %v446, %v467
  %v728 = vsel %vm337, %v447, %v469
  %v730 = vsel %vm343, %v725, %v496
  %v732 = vsel %vm343, %v728, %v498
  %v734 = vsel %vm348, %v730, %v506
  %v736 = vsel %vm348, %v732, %v508
  %v738 = vsel %vm353, %v734, %v518
  %v740 = vsel %vm353, %v736, %v520
  %v742 = vsel %vm358, %v738, %v540
  %v744 = vsel %vm358, %v740, %v542
  %v746 = vsel %vm363, %v742, %v569
  %v748 = vsel %vm363, %v744, %v571
  %v750 = vsel %vm368, %v746, %v579
  %v752 = vsel %vm368, %v748, %v581
  %v754 = vsel %vm337, %v588, %v609
  %v757 = vsel %vm337, %v589, %v611
  %v759 = vsel %vm343, %v754, %v638
  %v761 = vsel %vm343, %v757, %v640
  %v763 = vsel %vm348, %v759, %v648
  %v765 = vsel %vm348, %v761, %v650
  %v767 = vsel %vm353, %v763, %v660
  %v769 = vsel %vm353, %v765, %v662
  %v771 = vsel %vm358, %v767, %v682
  %v773 = vsel %vm358, %v769, %v684
  %v775 = vsel %vm363, %v771, %v711
  %v777 = vsel %vm363, %v773, %v713
  %v779 = vsel %vm368, %v775, %v721
  %v781 = vsel %vm368, %v777, %v723
  %vm786 = vcmask 1041408
  %v787 = vrot.slane %v750, 6
  %v788 = vrot.slane %v779, 6
  %v789 = vrot.slane %v752, 6
  %v790 = vsel %vm786, %v787, %v789
  %v791 = vrot.slane %v781, 6
  %v792 = vsel %vm786, %v788, %v791
  %vm795 = vcmask 1041408
  %v797 = vsel %vm795, %v373, %v787
  %v800 = vsel %vm795, %v403, %v788
  %v802 = vld [vmem:[%s1] sm:$0xf]
  %v803 = vld [vmem:[%s1 + $0x4] sm:$0xf]
  %v804 = vld [vmem:[%s1 + $0x8] sm:$0xf]
  %v805 = vld [vmem:[%s1 + $0xc] sm:$0xf]
  %v806 = vld [vmem:[%s1 + $0x10] sm:$0xf]
  %v807 = vld [vmem:[%s1 + $0x14] sm:$0xf]
  %v808 = vld [vmem:[%s1 + $0x18] sm:$0xf]
  %v809 = vld [vmem:[%s1 + $0x1c] sm:$0xf]
  %v810 = vld [vmem:[%s1 + $0x20] sm:$0xf]
  %v811 = vld [vmem:[%s1 + $0x24] sm:$0xf]
  %v812 = vld [vmem:[%s1 + $0x28] sm:$0xf]
  %v813 = vld [vmem:[%s1 + $0x2c] sm:$0xf]
  %v814 = vld [vmem:[%s1 + $0x30] sm:$0xf]
  %v815 = vld [vmem:[%s1 + $0x34] sm:$0xf]
  %v816 = vld [vmem:[%s1 + $0x38] sm:$0xf]
  %v817 = vld [vmem:[%s1 + $0x3c] sm:$0xf]
  %v818 = vld [vmem:[%s1 + $0x40] sm:$0xf]
  %v819 = vld [vmem:[%s1 + $0x44] sm:$0xf]
  %v820 = vld [vmem:[%s1 + $0x48] sm:$0xf]
  %v821 = vld [vmem:[%s1 + $0x4c] sm:$0xf]
  %v822 = vld [vmem:[%s1 + $0x50] sm:$0xf]
  %v823 = vld [vmem:[%s1 + $0x54] sm:$0xf]
  %v824 = vld [vmem:[%s1 + $0x58] sm:$0xf]
  %v825 = vld [vmem:[%s1 + $0x5c] sm:$0xf]
  %v826 = vld [vmem:[%s1 + $0x60] sm:$0xf]
  %v827 = vld [vmem:[%s1 + $0x64] sm:$0xf]
  %v828 = vld [vmem:[%s1 + $0x68] sm:$0xf]
  %v829 = vld [vmem:[%s1 + $0x6c] sm:$0xf]
  %v830 = vld [vmem:[%s1 + $0x70] sm:$0xf]
  %v831 = vld [vmem:[%s1 + $0x74] sm:$0xf]
  %v832 = vld [vmem:[%s1 + $0x78] sm:$0xf]
  %v833 = vld [vmem:[%s1 + $0x7c] sm:$0xf]
  %v834 = vld [vmem:[%s2] sm:$0x1]
  %v836 = vlaneseq
  %v837 = vshrl.u32 %v836, 7
  %v838 = vsub.s32 0, %v837
  %v839 = vrot.slane %v834, %v838
  %v873 = vunpack.c.l.b16 %v802
  %v874 = vunpack.c.l.b16 %v803
  %v875 = vunpack.c.l.b16 %v804
  %v876 = vunpack.c.l.b16 %v805
  %v877 = vunpack.c.l.b16 %v806
  %v878 = vunpack.c.l.b16 %v807
  %v879 = vunpack.c.l.b16 %v808
  %v880 = vunpack.c.l.b16 %v809
  %v881 = vunpack.c.l.b16 %v810
  %v882 = vunpack.c.l.b16 %v811
  %v883 = vunpack.c.l.b16 %v812
  %v884 = vunpack.c.l.b16 %v813
  %v885 = vunpack.c.l.b16 %v814
  %v886 = vunpack.c.l.b16 %v815
  %v887 = vunpack.c.l.b16 %v816
  %v888 = vunpack.c.l.b16 %v817
  %v889 = vunpack.c.l.b16 %v818
  %v890 = vunpack.c.l.b16 %v819
  %v891 = vunpack.c.l.b16 %v820
  %v892 = vunpack.c.l.b16 %v821
  %v893 = vunpack.c.l.b16 %v822
  %v894 = vunpack.c.l.b16 %v823
  %v895 = vunpack.c.l.b16 %v824
  %v896 = vunpack.c.l.b16 %v825
  %v897 = vunpack.c.l.b16 %v826
  %v898 = vunpack.c.l.b16 %v827
  %v899 = vunpack.c.l.b16 %v828
  %v900 = vunpack.c.l.b16 %v829
  %v901 = vunpack.c.l.b16 %v830
  %v902 = vunpack.c.l.b16 %v831
  %v903 = vunpack.c.l.b16 %v832
  %v904 = vunpack.c.l.b16 %v833
  %v905 = vpack.c.b16 %v874, %v873
  %v906 = vpack.c.b16 %v876, %v875
  %v907 = vpack.c.b16 %v878, %v877
  %v908 = vpack.c.b16 %v880, %v879
  %v909 = vpack.c.b16 %v882, %v881
  %v910 = vpack.c.b16 %v884, %v883
  %v911 = vpack.c.b16 %v886, %v885
  %v912 = vpack.c.b16 %v888, %v887
  %v913 = vpack.c.b16 %v890, %v889
  %v914 = vpack.c.b16 %v892, %v891
  %v915 = vpack.c.b16 %v894, %v893
  %v916 = vpack.c.b16 %v896, %v895
  %v917 = vpack.c.b16 %v898, %v897
  %v918 = vpack.c.b16 %v900, %v899
  %v919 = vpack.c.b16 %v902, %v901
  %v920 = vpack.c.b16 %v904, %v903
  %937 = vmatprep.subr.bf16.mxu0 0
  %938 = vmatpush1.bf16.msra.mxu0 %v905
  %939 = vmatprep.subr.bf16.mxu0 0
  %940 = vmatpush1.bf16.msra.mxu0 %v906
  %941 = vmatprep.subr.bf16.mxu0 0
  %942 = vmatpush1.bf16.msra.mxu0 %v907
  %943 = vmatprep.subr.bf16.mxu0 0
  %944 = vmatpush1.bf16.msra.mxu0 %v908
  %945 = vmatprep.subr.bf16.mxu0 0
  %946 = vmatpush1.bf16.msra.mxu0 %v909
  %947 = vmatprep.subr.bf16.mxu0 0
  %948 = vmatpush1.bf16.msra.mxu0 %v910
  %949 = vmatprep.subr.bf16.mxu0 0
  %950 = vmatpush1.bf16.msra.mxu0 %v911
  %951 = vmatprep.subr.bf16.mxu0 0
  %952 = vmatpush1.bf16.msra.mxu0 %v912
  %953 = vmatprep.subr.bf16.mxu0 0
  %954 = vmatpush1.bf16.msra.mxu0 %v913
  %955 = vmatprep.subr.bf16.mxu0 0
  %956 = vmatpush1.bf16.msra.mxu0 %v914
  %957 = vmatprep.subr.bf16.mxu0 0
  %958 = vmatpush1.bf16.msra.mxu0 %v915
  %959 = vmatprep.subr.bf16.mxu0 0
  %960 = vmatpush1.bf16.msra.mxu0 %v916
  %961 = vmatprep.subr.bf16.mxu0 0
  %962 = vmatpush1.bf16.msra.mxu0 %v917
  %963 = vmatprep.subr.bf16.mxu0 0
  %964 = vmatpush1.bf16.msra.mxu0 %v918
  %965 = vmatprep.subr.bf16.mxu0 0
  %966 = vmatpush1.bf16.msra.mxu0 %v919
  %967 = vmatprep.subr.bf16.mxu0 0
  %968 = vmatpush1.bf16.msra.mxu0 %v920
  %969 = vmatprep.mubr.bf16.mxu0 %v400
  %970 = vmatmul.mubr.bf16.gmra.mrb[0].mxu0 %v370
  %v971 = vpop.f32.mrb[0].mxu0
  %v972 = vadd.f32 %v839, %v971
  %v973 = vpop.f32.mrb[0].mxu0
  %v974 = vpop.f32.mrb[0].mxu0
  %v975 = vadd.f32 %v839, %v974
  %v976 = vpop.f32.mrb[0].mxu0
  %977 = vmatprep.mubr.bf16.mxu0 %v800
  %978 = vmatmul.mubr.bf16.gmra.mrb[0].mxu0 %v797
  %v979 = vpop.f32.mrb[0].mxu0
  %v980 = vadd.f32 %v839, %v979
  %v981 = vpop.f32.mrb[0].mxu0
  %v982 = vpop.f32.mrb[0].mxu0
  %v983 = vadd.f32 %v839, %v982
  %v984 = vpop.f32.mrb[0].mxu0
  %985 = vmatprep.mubr.bf16.mxu0 %v792
  %986 = vmatmul.mubr.bf16.gmra.mrb[0].mxu0 %v790
  %v987 = vpop.f32.mrb[0].mxu0
  %v988 = vadd.f32 %v839, %v987
  %v989 = vpop.f32.mrb[0].mxu0
  %v990 = vpop.f32.mrb[0].mxu0
  %v991 = vpop.f32.mrb[0].mxu0
  %992 = vdwg.mxu0
  %v993 = vmax.f32 %v972, 0.0
  %v994 = vmax.f32 %v975, 0.0
  %v995 = vmax.f32 %v980, 0.0
  %v996 = vmax.f32 %v983, 0.0
  %v997 = vmax.f32 %v988, 0.0
  %v998 = vpack.c.bf16 %v994, %v993
  %v999 = vpack.c.bf16 %v996, %v995
  %v1000 = vpack.c.bf16 %v997, %v997
  %v1004 = vcombine.high %v998, %v998
  %v1006 = vunpack.c.l.s4 1983009808
  %v1007 = vunpack.c.0.s8 %v1006
  %v1008 = vlaneseq
  %v1009 = vshrl.u32 %v1008, 7
  %v1010 = vsub.s32 %v1007, %v1009
  %v1011 = vrot.slane %v998, %v1010
  %v1013 = vunpack.c.l.s4 1983009808
  %v1014 = vunpack.c.0.s8 %v1013
  %v1015 = vlaneseq
  %v1016 = vshrl.u32 %v1015, 7
  %v1017 = vsub.s32 %v1014, %v1016
  %v1018 = vrot.slane %v1004, %v1017
  %v1019 = vcombine.high %v1011, %v1011
  %v1020 = vcombine.high %v1018, %v1018
  %v1021 = vcombine.high %v999, %v999
  %v1023 = vunpack.c.l.s4 1983009808
  %v1024 = vunpack.c.0.s8 %v1023
  %v1025 = vlaneseq
  %v1026 = vshrl.u32 %v1025, 7
  %v1027 = vsub.s32 %v1024, %v1026
  %v1028 = vrot.slane %v999, %v1027
  %v1030 = vunpack.c.l.s4 1983009808
  %v1031 = vunpack.c.0.s8 %v1030
  %v1032 = vlaneseq
  %v1033 = vshrl.u32 %v1032, 7
  %v1034 = vsub.s32 %v1031, %v1033
  %v1035 = vrot.slane %v1021, %v1034
  %v1036 = vcombine.high %v1028, %v1028
  %v1037 = vcombine.high %v1035, %v1035
  %v1039 = vunpack.c.l.s4 1983009808
  %v1040 = vunpack.c.0.s8 %v1039
  %v1041 = vlaneseq
  %v1042 = vshrl.u32 %v1041, 7
  %v1043 = vsub.s32 %v1040, %v1042
  %v1044 = vrot.slane %v1000, %v1043
  %v1045 = vcombine.high %v1044, %v1044
  %v1046 = vcombine.low %v1011, %v1019
  %v1048 = vunpack.c.l.s4 1983009808
  %v1049 = vunpack.c.0.s8 %v1048
  %v1050 = vlaneseq
  %v1051 = vshrl.u32 %v1050, 7
  %v1052 = vsub.s32 %v1049, %v1051
  %v1053 = vrot.slane %v1046, %v1052
  %v1054 = vcombine.low %v1018, %v1020
  %v1056 = vunpack.c.l.s4 1983009808
  %v1057 = vunpack.c.0.s8 %v1056
  %v1058 = vlaneseq
  %v1059 = vshrl.u32 %v1058, 7
  %v1060 = vsub.s32 %v1057, %v1059
  %v1061 = vrot.slane %v1054, %v1060
  %v1063 = vunpack.c.l.s4 1983009808
  %v1064 = vunpack.c.0.s8 %v1063
  %v1065 = vlaneseq
  %v1066 = vshrl.u32 %v1065, 7
  %v1067 = vsub.s32 %v1064, %v1066
  %v1068 = vrot.slane %v1028, %v1067
  %v1069 = vcombine.low %v1036, %v1035
  %v1071 = vunpack.c.l.s4 1983009808
  %v1072 = vunpack.c.0.s8 %v1071
  %v1073 = vlaneseq
  %v1074 = vshrl.u32 %v1073, 7
  %v1075 = vsub.s32 %v1072, %v1074
  %v1076 = vrot.slane %v1069, %v1075
  %v1077 = vcombine.low %v1037, %v1044
  %v1079 = vunpack.c.l.s4 1983009808
  %v1080 = vunpack.c.0.s8 %v1079
  %v1081 = vlaneseq
  %v1082 = vshrl.u32 %v1081, 7
  %v1083 = vsub.s32 %v1080, %v1082
  %v1084 = vrot.slane %v1077, %v1083
  %v1086 = vunpack.c.l.s4 1983009808
  %v1087 = vunpack.c.0.s8 %v1086
  %v1088 = vlaneseq
  %v1089 = vshrl.u32 %v1088, 7
  %v1090 = vsub.s32 %v1087, %v1089
  %v1091 = vrot.slane %v1045, %v1090
  %vm1098 = vcmask 257024
  %1099 = vst.msk [vmem:[%s3] sm:$0xf] %vm1098, %v1053
  %1100 = vst.msk [vmem:[%s3 + $0x4] sm:$0xf] %vm1098, %v1061
  %vm1101 = vcmask 254976
  %1102 = vst.msk [vmem:[%s3 + $0x8] sm:$0x3] %vm1101, %v1068
  %1103 = vst.msk [vmem:[%s3 + $0xc] sm:$0xf] %vm1098, %v1076
  %1104 = vst.msk [vmem:[%s3 + $0x10] sm:$0xf] %vm1098, %v1084
  %1105 = vst.msk [vmem:[%s3 + $0x14] sm:$0x3] %vm1101, %v1091
  // Predicated region
  $region14: #{res_encoder_forward.4} parent=0 // pred_check
    _
  $region15: #{res_encoder_forward.4} parent=0 // pred_check_branch
    %1107 = sbr.rel (0) target = $region17
  $region16: #{res_encoder_forward.4} parent=0 // pred_region
    _
  $region17: #{res_encoder_forward.4} parent=0 // pred_fallthru
    _
  // Predicated region
  $region18: #{res_encoder_forward.4} parent=0 // pred_check
    _
  $region19: #{res_encoder_forward.4} parent=0 // pred_check_branch
    %1109 = sbr.rel (0) target = $region21
  $region20: #{res_encoder_forward.4} parent=0 // pred_region
    _
  $region21: #{res_encoder_forward.4} parent=0 // pred_fallthru
    _

// kernel: res_encoder_forward.5
$region0: #{res_encoder_forward.5}
  #allocation0 [shape = 'u32[]', space=smem, size = 0x4, offset = 0x4, fixed_abs, tag = 'smem constant byte address 0x4 - core index']
  #allocation1 [shape = 'u32[144,128]{1,0:T(1,128)}', space=vmem, size = 0x12000, scoped, tag = 'internal scratch']
  #allocation2 [shape = 'bf16[2,38,32]{2,1,0:T(8,128)(2,1)}', space=vmem, size = 0x5000, scoped, tag = 'scratch operand']
  %s0 = inlined_call_operand.vmem [shape: bf16[2,38,32], index: 0, kind: input, shape index: {}]
  %s1 = inlined_call_operand.vmem [shape: bf16[288,32], index: 1, kind: input, shape index: {}]
  %s2 = inlined_call_operand.vmem [shape: f32[1,32], index: 2, kind: input, shape index: {}]
  %s3 = inlined_call_operand.vmem [shape: bf16[2,288,16], index: 3, kind: input, shape index: {}]
  %s4 = inlined_call_operand.vmem [shape: f32[2,1,16], index: 4, kind: input, shape index: {}]
  %s5 = inlined_call_operand.vmem [shape: f32[2,1,16], index: 5, kind: input, shape index: {}]
  %s6 = inlined_call_operand.vmem [shape: bf16[2,16,32], index: 6, kind: input, shape index: {}]
  %s7 = inlined_call_operand.vmem [shape: f32[2,1,32], index: 7, kind: input, shape index: {}]
  %s8 = inlined_call_operand.vmem [shape: f32[2,1,32], index: 8, kind: input, shape index: {}]
  %s9 = inlined_call_operand.vmem [shape: f32[2,24,32], index: 9, kind: output, shape index: {}]
  %s10 = sld [smem:[#allocation0]]
  $region46: #{res_encoder_forward.5} parent=0
    _
  %s12 = ssub.s32 1, %s10
  %s13 = scalar_select 0, %s12, %s10
  // Predicated region
  $region2: #{res_encoder_forward.5} parent=0 // pred_check
    _
  $region3: #{res_encoder_forward.5} parent=0 // pred_check_branch
    %15 = sbr.rel (0) target = $region5
  $region4: #{res_encoder_forward.5} parent=0 // pred_region
    _
  $region5: #{res_encoder_forward.5} parent=0 // pred_fallthru
    _
  // Predicated region
  $region6: #{res_encoder_forward.5} parent=0 // pred_check
    _
  $region7: #{res_encoder_forward.5} parent=0 // pred_check_branch
    %17 = sbr.rel (0) target = $region9
  $region8: #{res_encoder_forward.5} parent=0 // pred_region
    _
  $region9: #{res_encoder_forward.5} parent=0 // pred_fallthru
    _
  // Predicated region
  $region10: #{res_encoder_forward.5} parent=0 // pred_check
    _
  $region11: #{res_encoder_forward.5} parent=0 // pred_check_branch
    %19 = sbr.rel (0) target = $region13
  $region12: #{res_encoder_forward.5} parent=0 // pred_region
    _
  $region13: #{res_encoder_forward.5} parent=0 // pred_fallthru
    _
  // Predicated region
  $region14: #{res_encoder_forward.5} parent=0 // pred_check
    _
  $region15: #{res_encoder_forward.5} parent=0 // pred_check_branch
    %21 = sbr.rel (0) target = $region17
  $region16: #{res_encoder_forward.5} parent=0 // pred_region
    _
  $region17: #{res_encoder_forward.5} parent=0 // pred_fallthru
    _
  // Predicated region
  $region18: #{res_encoder_forward.5} parent=0 // pred_check
    _
  $region19: #{res_encoder_forward.5} parent=0 // pred_check_branch
    %23 = sbr.rel (0) target = $region21
  $region20: #{res_encoder_forward.5} parent=0 // pred_region
    _
  $region21: #{res_encoder_forward.5} parent=0 // pred_fallthru
    _
  // Predicated region
  $region22: #{res_encoder_forward.5} parent=0 // pred_check
    _
  $region23: #{res_encoder_forward.5} parent=0 // pred_check_branch
    %25 = sbr.rel (0) target = $region25
  $region24: #{res_encoder_forward.5} parent=0 // pred_region
    _
  $region25: #{res_encoder_forward.5} parent=0 // pred_fallthru
    _
  // Predicated region
  $region26: #{res_encoder_forward.5} parent=0 // pred_check
    _
  $region27: #{res_encoder_forward.5} parent=0 // pred_check_branch
    %27 = sbr.rel (0) target = $region29
  $region28: #{res_encoder_forward.5} parent=0 // pred_region
    _
  $region29: #{res_encoder_forward.5} parent=0 // pred_fallthru
    _
  // Predicated region
  $region30: #{res_encoder_forward.5} parent=0 // pred_check
    _
  $region31: #{res_encoder_forward.5} parent=0 // pred_check_branch
    %29 = sbr.rel (0) target = $region33
  $region32: #{res_encoder_forward.5} parent=0 // pred_region
    _
  $region33: #{res_encoder_forward.5} parent=0 // pred_fallthru
    _
  // Predicated region
  $region34: #{res_encoder_forward.5} parent=0 // pred_check
    _
  $region35: #{res_encoder_forward.5} parent=0 // pred_check_branch
    %31 = sbr.rel (0) target = $region37
  $region36: #{res_encoder_forward.5} parent=0 // pred_region
    _
  $region37: #{res_encoder_forward.5} parent=0 // pred_fallthru
    _
  %v33 = vlaneseq
  %v34 = vshrl.u32 %v33, 7
  %v35 = vadd.s32 %v34, 8
  %v36 = vadd.s32 %v34, 16
  %v37 = vadd.s32 %v34, 24
  %v38 = vadd.s32 %v34, 32
  %v39 = vadd.s32 %v34, 40
  %vm40 = vcmp.lt.s32.totalorder %v34, 0
  %v41 = vsub.s32 0, %v34
  %v42 = vsel %vm40, %v41, %v34
  %v43 = vmul.u32.u64.compose %v42, 2863311531
  %v44 = vextract.low.u32 %v43
  %v45 = vextract.high.u32 %v43
  %v46 = vshrl.u32 %v45, 2
  %v47 = vmul.u32 %v46, 6
  %v48 = vsub.s32 %v42, %v47
  %v49 = vsub.s32 0, %v48
  %v50 = vsel %vm40, %v49, %v48
  %vm51 = vcmp.lt.s32.totalorder %v35, 0
  %v52 = vsub.s32 0, %v35
  %v53 = vsel %vm51, %v52, %v35
  %v54 = vmul.u32.u64.compose %v53, 2863311531
  %v55 = vextract.low.u32 %v54
  %v56 = vextract.high.u32 %v54
  %v57 = vshrl.u32 %v56, 2
  %v58 = vmul.u32 %v57, 6
  %v59 = vsub.s32 %v53, %v58
  %v60 = vsub.s32 0, %v59
  %v61 = vsel %vm51, %v60, %v59
  %vm62 = vcmp.lt.s32.totalorder %v36, 0
  %v63 = vsub.s32 0, %v36
  %v64 = vsel %vm62, %v63, %v36
  %v65 = vmul.u32.u64.compose %v64, 2863311531
  %v66 = vextract.low.u32 %v65
  %v67 = vextract.high.u32 %v65
  %v68 = vshrl.u32 %v67, 2
  %v69 = vmul.u32 %v68, 6
  %v70 = vsub.s32 %v64, %v69
  %v71 = vsub.s32 0, %v70
  %v72 = vsel %vm62, %v71, %v70
  %vm73 = vcmp.lt.s32.totalorder %v37, 0
  %v74 = vsub.s32 0, %v37
  %v75 = vsel %vm73, %v74, %v37
  %v76 = vmul.u32.u64.compose %v75, 2863311531
  %v77 = vextract.low.u32 %v76
  %v78 = vextract.high.u32 %v76
  %v79 = vshrl.u32 %v78, 2
  %v80 = vmul.u32 %v79, 6
  %v81 = vsub.s32 %v75, %v80
  %v82 = vsub.s32 0, %v81
  %v83 = vsel %vm73, %v82, %v81
  %vm84 = vcmp.lt.s32.totalorder %v38, 0
  %v85 = vsub.s32 0, %v38
  %v86 = vsel %vm84, %v85, %v38
  %v87 = vmul.u32.u64.compose %v86, 2863311531
  %v88 = vextract.low.u32 %v87
  %v89 = vextract.high.u32 %v87
  %v90 = vshrl.u32 %v89, 2
  %v91 = vmul.u32 %v90, 6
  %v92 = vsub.s32 %v86, %v91
  %v93 = vsub.s32 0, %v92
  %v94 = vsel %vm84, %v93, %v92
  %vm95 = vcmp.lt.s32.totalorder %v39, 0
  %v96 = vsub.s32 0, %v39
  %v97 = vsel %vm95, %v96, %v39
  %v98 = vmul.u32.u64.compose %v97, 2863311531
  %v99 = vextract.low.u32 %v98
  %v100 = vextract.high.u32 %v98
  %v101 = vshrl.u32 %v100, 2
  %v102 = vmul.u32 %v101, 6
  %v103 = vsub.s32 %v97, %v102
  %v104 = vsub.s32 0, %v103
  %v105 = vsel %vm95, %v104, %v103
  %vm106 = vcmp.ne.s32.totalorder %v50, 0
  %vm107 = vcmp.ne.s32.totalorder %v61, 0
  %vm108 = vcmp.ne.s32.totalorder %v72, 0
  %vm109 = vcmp.ne.s32.totalorder %v83, 0
  %vm110 = vcmp.ne.s32.totalorder %v94, 0
  %vm111 = vcmp.ne.s32.totalorder %v105, 0
  %vm112 = vcmp.lt.s32.totalorder %v50, 0
  %vm113 = vcmp.lt.s32.totalorder %v61, 0
  %vm114 = vcmp.lt.s32.totalorder %v72, 0
  %vm115 = vcmp.lt.s32.totalorder %v83, 0
  %vm116 = vcmp.lt.s32.totalorder %v94, 0
  %vm117 = vcmp.lt.s32.totalorder %v105, 0
  %vm118 = vmand %vm112, %vm106
  %vm119 = vmand %vm113, %vm107
  %vm120 = vmand %vm114, %vm108
  %vm121 = vmand %vm115, %vm109
  %vm122 = vmand %vm116, %vm110
  %vm123 = vmand %vm117, %vm111
  %v124 = vadd.s32 %v50, 6
  %v125 = vadd.s32 %v61, 6
  %v126 = vadd.s32 %v72, 6
  %v127 = vadd.s32 %v83, 6
  %v128 = vadd.s32 %v94, 6
  %v129 = vadd.s32 %v105, 6
  %v130 = vsel %vm118, %v124, %v50
  %v131 = vsel %vm119, %v125, %v61
  %v132 = vsel %vm120, %v126, %v72
  %v133 = vsel %vm121, %v127, %v83
  %v134 = vsel %vm122, %v128, %v94
  %v135 = vsel %vm123, %v129, %v105
  %vm136 = vcmp.lt.s32.totalorder %v130, 4
  %vm137 = vcmp.lt.s32.totalorder %v131, 4
  %vm138 = vcmp.lt.s32.totalorder %v132, 4
  %vm139 = vcmp.lt.s32.totalorder %v133, 4
  %vm140 = vcmp.lt.s32.totalorder %v134, 4
  %vm141 = vcmp.lt.s32.totalorder %v135, 4
  %v142 = vsel %vm136, 1, 0
  %v143 = vsel %vm137, 1, 0
  %v144 = vsel %vm138, 1, 0
  %v145 = vsel %vm139, 1, 0
  %v146 = vsel %vm140, 1, 0
  %v147 = vsel %vm141, 1, 0
  %v148 = vcvt.s32.f32 %v142
  %v149 = vcvt.s32.f32 %v143
  %v150 = vcvt.s32.f32 %v144
  %v151 = vcvt.s32.f32 %v145
  %v152 = vcvt.s32.f32 %v146
  %v153 = vcvt.s32.f32 %v147
  %vm154 = vcmask 257024
  %155 = vst.msk [vmem:[#allocation2] sm:$0xf] %vm154, 0
  %156 = vst.msk [vmem:[#allocation2 + $0x4] sm:$0xf] %vm154, 0
  %157 = vst.msk [vmem:[#allocation2 + $0x8] sm:$0xf] %vm154, 0
  %158 = vst.msk [vmem:[#allocation2 + $0xc] sm:$0xf] %vm154, 0
  %vm159 = vcmask 256000
  %160 = vst.msk [vmem:[#allocation2 + $0x10] sm:$0x7] %vm159, 0
  %161 = vst.msk [vmem:[#allocation2 + $0x14] sm:$0xf] %vm154, 0
  %162 = vst.msk [vmem:[#allocation2 + $0x18] sm:$0xf] %vm154, 0
  %163 = vst.msk [vmem:[#allocation2 + $0x1c] sm:$0xf] %vm154, 0
  %164 = vst.msk [vmem:[#allocation2 + $0x20] sm:$0xf] %vm154, 0
  %165 = vst.msk [vmem:[#allocation2 + $0x24] sm:$0x7] %vm159, 0
  %v166 = vld [vmem:[%s0] sm:$0xf]
  %v167 = vld [vmem:[%s0 + $0x4] sm:$0xf]
  %v168 = vld [vmem:[%s0 + $0x8] sm:$0xf]
  %v169 = vld [vmem:[%s0 + $0xc] sm:$0x1]
  %v170 = vld [vmem:[%s0] sm:$0xe]
  %v171 = vld [vmem:[%s0] sm:$0x8]
  %v172 = vld [vmem:[%s0 + $0xc] sm:$0x7]
  %v173 = vld [vmem:[%s0 + $0xc] sm:$0xf]
  %v174 = vld [vmem:[%s0 + $0x4] sm:$0xc]
  %v175 = vld [vmem:[%s0 + $0x10] sm:$0x3]
  %v176 = vld [vmem:[%s0 + $0x10] sm:$0x7]
  %v177 = vld [vmem:[%s0 + $0x4] sm:$0x8]
  %v181 = vunpack.c.l.b16 %v166
  %v182 = vunpack.c.l.b16 %v167
  %v183 = vunpack.c.l.b16 %v168
  %v184 = vpack.c.b16 %v182, %v181
  %v185 = vpack.c.b16 %v183, %v183
  %v187 = vunpack.c.l.b16 %v169
  %v188 = vpack.c.b16 %v187, %v183
  %vm189 = vsmask.f32 7424
  %v191 = vshrl.u32 %v184, 16
  %v193 = vshll.u32 %v184, 16
  %v195 = vrot.slane %v193, 1
  %v196 = vor.u32 %v191, %v195
  %v198 = vshll.u32 %v188, 16
  %v200 = vrot.slane %v198, 1
  %v201 = vsel %vm189, %v196, %v200
  %v202 = vshrl.u32 %v188, 16
  %v204 = vor.u32 %v202, %v200
  %205 = vrot.lane.b32.xlu0 %v201, 32
  %v206 = vpop.permute.xlu0 %205
  %207 = vrot.lane.b32.xlu0 %v204, 32
  %v208 = vpop.permute.xlu0 %207
  %v210 = vunpack.c.l.b16 %v170
  %v211 = vpack.c.b16 %v182, %v210
  %vm212 = vcmask 1046528
  %v213 = vrot.slane %v211, 1
  %v214 = vrot.slane %v188, 1
  %v215 = vsel %vm212, %v213, %v214
  %216 = vrot.lane.b32.xlu0 %v215, 64
  %v217 = vpop.permute.xlu0 %216
  %218 = vrot.lane.b32.xlu0 %v214, 64
  %v219 = vpop.permute.xlu0 %218
  %v222 = vunpack.c.l.b16 %v171
  %v223 = vunpack.c.l.b16 %v172
  %v224 = vpack.c.b16 %v182, %v222
  %v225 = vpack.c.b16 %v223, %v183
  %vm226 = vcmask 1044480
  %v227 = vrot.slane %v224, 3
  %v228 = vrot.slane %v225, 3
  %v229 = vsel %vm226, %v227, %v228
  %230 = vrot.lane.b32.xlu0 %v229, 96
  %v231 = vpop.permute.xlu0 %230
  %232 = vrot.lane.b32.xlu0 %v228, 96
  %v233 = vpop.permute.xlu0 %232
  %v235 = vunpack.c.l.b16 %v173
  %v236 = vpack.c.b16 %v235, %v183
  %vm237 = vsmask.f32 4352
  %v239 = vshrl.u32 %v224, 16
  %v241 = vrot.slane %v239, 3
  %v242 = vshll.u32 %v224, 16
  %v244 = vrot.slane %v242, 4
  %v245 = vor.u32 %v241, %v244
  %v247 = vshrl.u32 %v236, 16
  %v249 = vrot.slane %v247, 3
  %v250 = vshll.u32 %v236, 16
  %v252 = vrot.slane %v250, 4
  %v253 = vor.u32 %v249, %v252
  %v254 = vsel %vm237, %v245, %v253
  %v255 = vpack.c.b16 %v183, %v182
  %v256 = vpack.c.b16 %v235, %v235
  %257 = vrot.lane.b32.xlu0 %v255, 32
  %v258 = vpop.permute.xlu0 %257
  %259 = vrot.lane.b32.xlu0 %v256, 32
  %v260 = vpop.permute.xlu0 %259
  %v263 = vunpack.c.l.b16 %v174
  %v264 = vunpack.c.l.b16 %v175
  %v265 = vpack.c.b16 %v183, %v263
  %v266 = vpack.c.b16 %v264, %v235
  %vm267 = vcmask 1045504
  %v268 = vrot.slane %v265, 2
  %v269 = vrot.slane %v266, 2
  %v270 = vsel %vm267, %v268, %v269
  %271 = vrot.lane.b32.xlu0 %v270, 64
  %v272 = vpop.permute.xlu0 %271
  %273 = vrot.lane.b32.xlu0 %v269, 64
  %v274 = vpop.permute.xlu0 %273
  %v276 = vunpack.c.l.b16 %v176
  %v277 = vpack.c.b16 %v276, %v235
  %vm278 = vsmask.f32 5376
  %v280 = vshrl.u32 %v265, 16
  %v282 = vrot.slane %v280, 2
  %v283 = vshll.u32 %v265, 16
  %v285 = vrot.slane %v283, 3
  %v286 = vor.u32 %v282, %v285
  %v288 = vshrl.u32 %v277, 16
  %v290 = vrot.slane %v288, 2
  %v291 = vshll.u32 %v277, 16
  %v293 = vrot.slane %v291, 3
  %v294 = vor.u32 %v290, %v293
  %v295 = vsel %vm278, %v286, %v294
  %296 = vrot.lane.b32.xlu0 %v295, 96
  %v297 = vpop.permute.xlu0 %296
  %298 = vrot.lane.b32.xlu0 %v294, 96
  %v299 = vpop.permute.xlu0 %298
  %v301 = vunpack.c.l.b16 %v177
  %v302 = vpack.c.b16 %v183, %v301
  %v303 = vrot.slane %v302, 3
  %v304 = vrot.slane %v277, 3
  %v305 = vsel %vm226, %v303, %v304
  %vm306 = vcmask 261120
  %v308 = vsel %vm306, %v184, %v206
  %v311 = vsel %vm306, %v185, %v208
  %vm312 = vcmask 523264
  %v314 = vsel %vm312, %v308, %v217
  %v316 = vsel %vm312, %v311, %v219
  %vm317 = vcmask 785408
  %v319 = vsel %vm317, %v314, %v231
  %v322 = vsel %vm317, %v316, %v233
  %v325 = vsel %vm306, %v254, %v258
  %v328 = vsel %vm306, %v253, %v260
  %v330 = vsel %vm312, %v325, %v272
  %v332 = vsel %vm312, %v328, %v274
  %v334 = vsel %vm317, %v330, %v297
  %v337 = vsel %vm317, %v332, %v299
  %s338 = scalar_lea.vmem %s0, 20
  %v339 = vld [vmem:[%s338] sm:$0xf]
  %v340 = vld [vmem:[%s338 + $0x4] sm:$0xf]
  %v341 = vld [vmem:[%s338 + $0x8] sm:$0xf]
  %v342 = vld [vmem:[%s338 + $0xc] sm:$0x1]
  %v343 = vld [vmem:[%s338] sm:$0xe]
  %v344 = vld [vmem:[%s338] sm:$0x8]
  %v345 = vld [vmem:[%s338 + $0xc] sm:$0x7]
  %v346 = vld [vmem:[%s338 + $0xc] sm:$0xf]
  %v347 = vld [vmem:[%s338 + $0x4] sm:$0xc]
  %v348 = vld [vmem:[%s338 + $0x10] sm:$0x3]
  %v349 = vld [vmem:[%s338 + $0x10] sm:$0x7]
  %v350 = vld [vmem:[%s338 + $0x4] sm:$0x8]
  %v354 = vunpack.c.l.b16 %v339
  %v355 = vunpack.c.l.b16 %v340
  %v356 = vunpack.c.l.b16 %v341
  %v357 = vpack.c.b16 %v355, %v354
  %v358 = vpack.c.b16 %v356, %v356
  %v360 = vunpack.c.l.b16 %v342
  %v361 = vpack.c.b16 %v360, %v356
  %v363 = vshrl.u32 %v357, 16
  %v365 = vshll.u32 %v357, 16
  %v367 = vrot.slane %v365, 1
  %v368 = vor.u32 %v363, %v367
  %v370 = vshll.u32 %v361, 16
  %v372 = vrot.slane %v370, 1
  %v373 = vsel %vm189, %v368, %v372
  %v374 = vshrl.u32 %v361, 16
  %v376 = vor.u32 %v374, %v372
  %377 = vrot.lane.b32.xlu0 %v373, 32
  %v378 = vpop.permute.xlu0 %377
  %379 = vrot.lane.b32.xlu0 %v376, 32
  %v380 = vpop.permute.xlu0 %379
  %v382 = vunpack.c.l.b16 %v343
  %v383 = vpack.c.b16 %v355, %v382
  %v384 = vrot.slane %v383, 1
  %v385 = vrot.slane %v361, 1
  %v386 = vsel %vm212, %v384, %v385
  %387 = vrot.lane.b32.xlu0 %v386, 64
  %v388 = vpop.permute.xlu0 %387
  %389 = vrot.lane.b32.xlu0 %v385, 64
  %v390 = vpop.permute.xlu0 %389
  %v393 = vunpack.c.l.b16 %v344
  %v394 = vunpack.c.l.b16 %v345
  %v395 = vpack.c.b16 %v355, %v393
  %v396 = vpack.c.b16 %v394, %v356
  %v397 = vrot.slane %v395, 3
  %v398 = vrot.slane %v396, 3
  %v399 = vsel %vm226, %v397, %v398
  %400 = vrot.lane.b32.xlu0 %v399, 96
  %v401 = vpop.permute.xlu0 %400
  %402 = vrot.lane.b32.xlu0 %v398, 96
  %v403 = vpop.permute.xlu0 %402
  %v405 = vunpack.c.l.b16 %v346
  %v406 = vpack.c.b16 %v405, %v356
  %v408 = vshrl.u32 %v395, 16
  %v410 = vrot.slane %v408, 3
  %v411 = vshll.u32 %v395, 16
  %v413 = vrot.slane %v411, 4
  %v414 = vor.u32 %v410, %v413
  %v416 = vshrl.u32 %v406, 16
  %v418 = vrot.slane %v416, 3
  %v419 = vshll.u32 %v406, 16
  %v421 = vrot.slane %v419, 4
  %v422 = vor.u32 %v418, %v421
  %v423 = vsel %vm237, %v414, %v422
  %v424 = vpack.c.b16 %v356, %v355
  %v425 = vpack.c.b16 %v405, %v405
  %426 = vrot.lane.b32.xlu0 %v424, 32
  %v427 = vpop.permute.xlu0 %426
  %428 = vrot.lane.b32.xlu0 %v425, 32
  %v429 = vpop.permute.xlu0 %428
  %v432 = vunpack.c.l.b16 %v347
  %v433 = vunpack.c.l.b16 %v348
  %v434 = vpack.c.b16 %v356, %v432
  %v435 = vpack.c.b16 %v433, %v405
  %v436 = vrot.slane %v434, 2
  %v437 = vrot.slane %v435, 2
  %v438 = vsel %vm267, %v436, %v437
  %439 = vrot.lane.b32.xlu0 %v438, 64
  %v440 = vpop.permute.xlu0 %439
  %441 = vrot.lane.b32.xlu0 %v437, 64
  %v442 = vpop.permute.xlu0 %441
  %v444 = vunpack.c.l.b16 %v349
  %v445 = vpack.c.b16 %v444, %v405
  %v447 = vshrl.u32 %v434, 16
  %v449 = vrot.slane %v447, 2
  %v450 = vshll.u32 %v434, 16
  %v452 = vrot.slane %v450, 3
  %v453 = vor.u32 %v449, %v452
  %v455 = vshrl.u32 %v445, 16
  %v457 = vrot.slane %v455, 2
  %v458 = vshll.u32 %v445, 16
  %v460 = vrot.slane %v458, 3
  %v461 = vor.u32 %v457, %v460
  %v462 = vsel %vm278, %v453, %v461
  %463 = vrot.lane.b32.xlu0 %v462, 96
  %v464 = vpop.permute.xlu0 %463
  %465 = vrot.lane.b32.xlu0 %v461, 96
  %v466 = vpop.permute.xlu0 %465
  %v468 = vunpack.c.l.b16 %v350
  %v469 = vpack.c.b16 %v356, %v468
  %v470 = vrot.slane %v469, 3
  %v471 = vrot.slane %v445, 3
  %v472 = vsel %vm226, %v470, %v471
  %v474 = vsel %vm306, %v357, %v378
  %v477 = vsel %vm306, %v358, %v380
  %v479 = vsel %vm312, %v474, %v388
  %v481 = vsel %vm312, %v477, %v390
  %v483 = vsel %vm317, %v479, %v401
  %v485 = vsel %vm317, %v481, %v403
  %v488 = vsel %vm306, %v423, %v427
  %v491 = vsel %vm306, %v422, %v429
  %v493 = vsel %vm312, %v488, %v440
  %v495 = vsel %vm312, %v491, %v442
  %v497 = vsel %vm317, %v493, %v464
  %v499 = vsel %vm317, %v495, %v466
  %vm504 = vcmask 1043456
  %v505 = vrot.slane %v483, 4
  %v506 = vrot.slane %v497, 4
  %v507 = vrot.slane %v472, 4
  %v508 = vrot.slane %v485, 4
  %v509 = vsel %vm504, %v505, %v508
  %v510 = vrot.slane %v499, 4
  %v511 = vsel %vm504, %v506, %v510
  %v512 = vrot.slane %v471, 4
  %v513 = vsel %vm504, %v507, %v512
  %vm516 = vcmask 1043456
  %v518 = vsel %vm516, %v322, %v505
  %v521 = vsel %vm516, %v337, %v506
  %v525 = vsel %vm516, %v304, %v507
  %v526 = vld [vmem:[%s1] sm:$0xf]
  %v527 = vld [vmem:[%s1 + $0x4] sm:$0xf]
  %v528 = vld [vmem:[%s1 + $0x8] sm:$0xf]
  %v529 = vld [vmem:[%s1 + $0xc] sm:$0xf]
  %v530 = vld [vmem:[%s1 + $0x10] sm:$0xf]
  %v531 = vld [vmem:[%s1 + $0x14] sm:$0xf]
  %v532 = vld [vmem:[%s1 + $0x18] sm:$0xf]
  %v533 = vld [vmem:[%s1 + $0x1c] sm:$0xf]
  %v534 = vld [vmem:[%s1 + $0x20] sm:$0xf]
  %v535 = vld [vmem:[%s1 + $0x24] sm:$0xf]
  %v536 = vld [vmem:[%s1 + $0x28] sm:$0xf]
  %v537 = vld [vmem:[%s1 + $0x2c] sm:$0xf]
  %v538 = vld [vmem:[%s1 + $0x30] sm:$0xf]
  %v539 = vld [vmem:[%s1 + $0x34] sm:$0xf]
  %v540 = vld [vmem:[%s1 + $0x38] sm:$0xf]
  %v541 = vld [vmem:[%s1 + $0x3c] sm:$0xf]
  %v542 = vld [vmem:[%s1 + $0x40] sm:$0xf]
  %v543 = vld [vmem:[%s1 + $0x44] sm:$0xf]
  %v544 = vld [vmem:[%s1 + $0x48] sm:$0xf]
  %v545 = vld [vmem:[%s1 + $0x4c] sm:$0xf]
  %v546 = vld [vmem:[%s1 + $0x50] sm:$0xf]
  %v547 = vld [vmem:[%s1 + $0x54] sm:$0xf]
  %v548 = vld [vmem:[%s1 + $0x58] sm:$0xf]
  %v549 = vld [vmem:[%s1 + $0x5c] sm:$0xf]
  %v550 = vld [vmem:[%s1 + $0x60] sm:$0xf]
  %v551 = vld [vmem:[%s1 + $0x64] sm:$0xf]
  %v552 = vld [vmem:[%s1 + $0x68] sm:$0xf]
  %v553 = vld [vmem:[%s1 + $0x6c] sm:$0xf]
  %v554 = vld [vmem:[%s1 + $0x70] sm:$0xf]
  %v555 = vld [vmem:[%s1 + $0x74] sm:$0xf]
  %v556 = vld [vmem:[%s1 + $0x78] sm:$0xf]
  %v557 = vld [vmem:[%s1 + $0x7c] sm:$0xf]
  %v558 = vld [vmem:[%s1 + $0x80] sm:$0xf]
  %v559 = vld [vmem:[%s1 + $0x84] sm:$0xf]
  %v560 = vld [vmem:[%s1 + $0x88] sm:$0xf]
  %v561 = vld [vmem:[%s1 + $0x8c] sm:$0xf]
  %v562 = vld [vmem:[%s2] sm:$0x1]
  %v564 = vlaneseq
  %v565 = vshrl.u32 %v564, 7
  %v566 = vsub.s32 0, %v565
  %v567 = vrot.slane %v562, %v566
  %v605 = vunpack.c.l.b16 %v526
  %v606 = vunpack.c.l.b16 %v527
  %v607 = vunpack.c.l.b16 %v528
  %v608 = vunpack.c.l.b16 %v529
  %v609 = vunpack.c.l.b16 %v530
  %v610 = vunpack.c.l.b16 %v531
  %v611 = vunpack.c.l.b16 %v532
  %v612 = vunpack.c.l.b16 %v533
  %v613 = vunpack.c.l.b16 %v534
  %v614 = vunpack.c.l.b16 %v535
  %v615 = vunpack.c.l.b16 %v536
  %v616 = vunpack.c.l.b16 %v537
  %v617 = vunpack.c.l.b16 %v538
  %v618 = vunpack.c.l.b16 %v539
  %v619 = vunpack.c.l.b16 %v540
  %v620 = vunpack.c.l.b16 %v541
  %v621 = vunpack.c.l.b16 %v542
  %v622 = vunpack.c.l.b16 %v543
  %v623 = vunpack.c.l.b16 %v544
  %v624 = vunpack.c.l.b16 %v545
  %v625 = vunpack.c.l.b16 %v546
  %v626 = vunpack.c.l.b16 %v547
  %v627 = vunpack.c.l.b16 %v548
  %v628 = vunpack.c.l.b16 %v549
  %v629 = vunpack.c.l.b16 %v550
  %v630 = vunpack.c.l.b16 %v551
  %v631 = vunpack.c.l.b16 %v552
  %v632 = vunpack.c.l.b16 %v553
  %v633 = vunpack.c.l.b16 %v554
  %v634 = vunpack.c.l.b16 %v555
  %v635 = vunpack.c.l.b16 %v556
  %v636 = vunpack.c.l.b16 %v557
  %v637 = vunpack.c.l.b16 %v558
  %v638 = vunpack.c.l.b16 %v559
  %v639 = vunpack.c.l.b16 %v560
  %v640 = vunpack.c.l.b16 %v561
  %v641 = vpack.c.b16 %v606, %v605
  %v642 = vpack.c.b16 %v608, %v607
  %v643 = vpack.c.b16 %v610, %v609
  %v644 = vpack.c.b16 %v612, %v611
  %v645 = vpack.c.b16 %v614, %v613
  %v646 = vpack.c.b16 %v616, %v615
  %v647 = vpack.c.b16 %v618, %v617
  %v648 = vpack.c.b16 %v620, %v619
  %v649 = vpack.c.b16 %v622, %v621
  %v650 = vpack.c.b16 %v624, %v623
  %v651 = vpack.c.b16 %v626, %v625
  %v652 = vpack.c.b16 %v628, %v627
  %v653 = vpack.c.b16 %v630, %v629
  %v654 = vpack.c.b16 %v632, %v631
  %v655 = vpack.c.b16 %v634, %v633
  %v656 = vpack.c.b16 %v636, %v635
  %v657 = vpack.c.b16 %v638, %v637
  %v658 = vpack.c.b16 %v640, %v639
  %v678 = vsel %vm306, %v305, 0
  %v680 = vsel %vm306, %v525, 0
  %v683 = vsel %vm306, %v513, 0
  %685 = vmatprep.subr.bf16.mxu0 0
  %686 = vmatpush1.bf16.msra.mxu0 %v641
  %687 = vmatprep.subr.bf16.mxu0 0
  %688 = vmatpush1.bf16.msra.mxu0 %v642
  %689 = vmatprep.subr.bf16.mxu0 0
  %690 = vmatpush1.bf16.msra.mxu0 %v643
  %691 = vmatprep.subr.bf16.mxu0 0
  %692 = vmatpush1.bf16.msra.mxu0 %v644
  %693 = vmatprep.subr.bf16.mxu0 0
  %694 = vmatpush1.bf16.msra.mxu0 %v645
  %695 = vmatprep.subr.bf16.mxu0 0
  %696 = vmatpush1.bf16.msra.mxu0 %v646
  %697 = vmatprep.subr.bf16.mxu0 0
  %698 = vmatpush1.bf16.msra.mxu0 %v647
  %699 = vmatprep.subr.bf16.mxu0 0
  %700 = vmatpush1.bf16.msra.mxu0 %v648
  %701 = vmatprep.subr.bf16.mxu0 0
  %702 = vmatpush1.bf16.msra.mxu0 %v649
  %703 = vmatprep.subr.bf16.mxu0 0
  %704 = vmatpush1.bf16.msra.mxu0 %v650
  %705 = vmatprep.subr.bf16.mxu0 0
  %706 = vmatpush1.bf16.msra.mxu0 %v651
  %707 = vmatprep.subr.bf16.mxu0 0
  %708 = vmatpush1.bf16.msra.mxu0 %v652
  %709 = vmatprep.subr.bf16.mxu0 0
  %710 = vmatpush1.bf16.msra.mxu0 %v653
  %711 = vmatprep.subr.bf16.mxu0 0
  %712 = vmatpush1.bf16.msra.mxu0 %v654
  %713 = vmatprep.subr.bf16.mxu0 0
  %714 = vmatpush1.bf16.msra.mxu0 %v655
  %715 = vmatprep.subr.bf16.mxu0 0
  %716 = vmatpush1.bf16.msra.mxu0 %v656
  %717 = vmatprep.mubr.bf16.mxu0 %v334
  %718 = vmatmul.mubr.bf16.gmra.mrb[0].mxu0 %v319
  %v719 = vpop.f32.mrb[0].mxu0
  %v720 = vadd.f32 %v567, %v719
  %v721 = vpop.f32.mrb[0].mxu0
  %v722 = vpop.f32.mrb[0].mxu0
  %v723 = vadd.f32 %v567, %v722
  %v724 = vpop.f32.mrb[0].mxu0
  %725 = vmatprep.mubr.bf16.mxu0 %v521
  %726 = vmatmul.mubr.bf16.gmra.mrb[0].mxu0 %v518
  %v727 = vpop.f32.mrb[0].mxu0
  %v728 = vadd.f32 %v567, %v727
  %v729 = vpop.f32.mrb[0].mxu0
  %v730 = vpop.f32.mrb[0].mxu0
  %v731 = vadd.f32 %v567, %v730
  %v732 = vpop.f32.mrb[0].mxu0
  %733 = vmatprep.mubr.bf16.mxu0 %v511
  %734 = vmatmul.mubr.bf16.gmra.mrb[0].mxu0 %v509
  %v735 = vpop.f32.mrb[0].mxu0
  %v736 = vadd.f32 %v567, %v735
  %v737 = vpop.f32.mrb[0].mxu0
  %v738 = vpop.f32.mrb[0].mxu0
  %v739 = vadd.f32 %v567, %v738
  %v740 = vpop.f32.mrb[0].mxu0
  %741 = vdwg.mxu0
  %742 = vmatprep.subr.bf16.mxu0 0
  %743 = vmatpush1.bf16.msra.mxu0 %v657
  %744 = vmatprep.subr.bf16.mxu0 0
  %745 = vmatpush1.bf16.msra.mxu0 %v658
  %746 = vmatprep.subr.bf16.mxu0 0
  %747 = vmatpush1.bf16.msra.mxu0 0
  %748 = vmatprep.subr.bf16.mxu0 0
  %749 = vmatpush1.bf16.msra.mxu0 0
  %750 = vmatprep.subr.bf16.mxu0 0
  %751 = vmatpush1.bf16.msra.mxu0 0
  %752 = vmatprep.subr.bf16.mxu0 0
  %753 = vmatpush1.bf16.msra.mxu0 0
  %754 = vmatprep.subr.bf16.mxu0 0
  %755 = vmatpush1.bf16.msra.mxu0 0
  %756 = vmatprep.subr.bf16.mxu0 0
  %757 = vmatpush1.bf16.msra.mxu0 0
  %758 = vmatprep.subr.bf16.mxu0 0
  %759 = vmatpush1.bf16.msra.mxu0 0
  %760 = vmatprep.subr.bf16.mxu0 0
  %761 = vmatpush1.bf16.msra.mxu0 0
  %762 = vmatprep.subr.bf16.mxu0 0
  %763 = vmatpush1.bf16.msra.mxu0 0
  %764 = vmatprep.subr.bf16.mxu0 0
  %765 = vmatpush1.bf16.msra.mxu0 0
  %766 = vmatprep.subr.bf16.mxu0 0
  %767 = vmatpush1.bf16.msra.mxu0 0
  %768 = vmatprep.subr.bf16.mxu0 0
  %769 = vmatpush1.bf16.msra.mxu0 0
  %770 = vmatprep.subr.bf16.mxu0 0
  %771 = vmatpush1.bf16.msra.mxu0 0
  %772 = vmatprep.subr.bf16.mxu0 0
  %773 = vmatpush1.bf16.msra.mxu0 0
  %774 = vmatprep.mubr.bf16.mxu0 0
  %775 = vmatmul.mubr.bf16.gmra.mrb[0].mxu0 %v678
  %v776 = vpop.f32.mrb[0].mxu0
  %v777 = vadd.f32 %v720, %v776
  %v778 = vpop.f32.mrb[0].mxu0
  %v779 = vpop.f32.mrb[0].mxu0
  %v780 = vadd.f32 %v723, %v779
  %v781 = vpop.f32.mrb[0].mxu0
  %782 = vmatprep.mubr.bf16.mxu0 0
  %783 = vmatmul.mubr.bf16.gmra.mrb[0].mxu0 %v680
  %v784 = vpop.f32.mrb[0].mxu0
  %v785 = vadd.f32 %v728, %v784
  %v786 = vpop.f32.mrb[0].mxu0
  %v787 = vpop.f32.mrb[0].mxu0
  %v788 = vadd.f32 %v731, %v787
  %v789 = vpop.f32.mrb[0].mxu0
  %790 = vmatprep.mubr.bf16.mxu0 0
  %791 = vmatmul.mubr.bf16.gmra.mrb[0].mxu0 %v683
  %v792 = vpop.f32.mrb[0].mxu0
  %v793 = vadd.f32 %v736, %v792
  %v794 = vpop.f32.mrb[0].mxu0
  %v795 = vpop.f32.mrb[0].mxu0
  %v796 = vadd.f32 %v739, %v795
  %v797 = vpop.f32.mrb[0].mxu0
  %798 = vdwg.mxu0
  %v799 = vmax.f32 %v777, 0.0
  %v800 = vmax.f32 %v780, 0.0
  %v801 = vmax.f32 %v785, 0.0
  %v802 = vmax.f32 %v788, 0.0
  %v803 = vmax.f32 %v793, 0.0
  %v804 = vmax.f32 %v796, 0.0
  %v805 = vmul.f32 %v799, %v148
  %v806 = vmul.f32 %v800, %v149
  %v807 = vmul.f32 %v801, %v150
  %v808 = vmul.f32 %v802, %v151
  %v809 = vmul.f32 %v803, %v152
  %v810 = vmul.f32 %v804, %v153
  %v811 = vpack.c.bf16 %v806, %v805
  %v812 = vpack.c.bf16 %v808, %v807
  %v813 = vpack.c.bf16 %v810, %v809
  %v816 = vunpack.c.l.b16 %v811
  %v817 = vunpack.c.h.b16 %v811
  %v818 = vunpack.c.l.b16 %v812
  %v819 = vpack.c.b16 %v816, %v816
  %v820 = vpack.c.b16 %v817, %v817
  %v821 = vpack.c.b16 %v818, %v818
  %vm822 = vsmask.f32 3328
  %vm823 = vsmask.f32 7440
  %vm824 = vmor %vm822, %vm823
  %v826 = vshll.u32 %v819, 16
  %v828 = vrot.slane %v826, 5
  %v829 = vshrl.u32 %v819, 16
  %v831 = vrot.slane %v829, 4
  %v832 = vor.u32 %v831, %v828
  %v833 = vrot.slane %v832, 4
  %v835 = vshll.u32 %v820, 16
  %v837 = vrot.slane %v835, 5
  %v838 = vsel %vm824, %v833, %v837
  %v839 = vshrl.u32 %v820, 16
  %v841 = vrot.slane %v839, 4
  %v842 = vor.u32 %v841, %v837
  %v843 = vrot.slane %v842, 4
  %v845 = vshll.u32 %v821, 16
  %v847 = vrot.slane %v845, 5
  %v848 = vsel %vm824, %v843, %v847
  %v849 = vshrl.u32 %v821, 16
  %v851 = vrot.slane %v849, 4
  %v852 = vor.u32 %v851, %v847
  %v853 = vrot.slane %v852, 4
  %vm858 = vcmask 257027
  %vm859 = vsmask.f32 7950
  %vm860 = vmand %vm858, %vm859
  %v861 = vld [vmem:[#allocation2] sm:$0x8]
  %v862 = vsel %vm860, %v828, %v861
  %863 = vst [vmem:[#allocation2] sm:$0x8] %v862
  %864 = vst.msk [vmem:[#allocation2 + $0x4] sm:$0xf] %vm154, %v838
  %865 = vst.msk [vmem:[#allocation2 + $0x8] sm:$0xf] %vm154, %v848
  %vm866 = vcmask 257024
  %vm867 = vmand %vm866, %vm822
  %v868 = vld [vmem:[#allocation2 + $0xc] sm:$0xf]
  %v869 = vsel %vm867, %v853, %v868
  %870 = vst [vmem:[#allocation2 + $0xc] sm:$0xf] %v869
  %v872 = vunpack.c.h.b16 %v812
  %v873 = vunpack.c.l.b16 %v813
  %v874 = vunpack.c.h.b16 %v813
  %v875 = vpack.c.b16 %v872, %v872
  %v876 = vpack.c.b16 %v873, %v873
  %v877 = vpack.c.b16 %v874, %v874
  %v879 = vshll.u32 %v875, 16
  %v881 = vrot.slane %v879, 5
  %v882 = vshrl.u32 %v875, 16
  %v884 = vrot.slane %v882, 4
  %v885 = vor.u32 %v884, %v881
  %v886 = vrot.slane %v885, 4
  %v888 = vshll.u32 %v876, 16
  %v890 = vrot.slane %v888, 5
  %v891 = vsel %vm824, %v886, %v890
  %v892 = vshrl.u32 %v876, 16
  %v894 = vrot.slane %v892, 4
  %v895 = vor.u32 %v894, %v890
  %v896 = vrot.slane %v895, 4
  %v898 = vshll.u32 %v877, 16
  %v900 = vrot.slane %v898, 5
  %v901 = vsel %vm824, %v896, %v900
  %v902 = vshrl.u32 %v877, 16
  %v904 = vrot.slane %v902, 4
  %v905 = vor.u32 %v904, %v900
  %v906 = vrot.slane %v905, 4
  %s911 = scalar_lea.vmem [#allocation2], 20
  %v912 = vld [vmem:[%s911] sm:$0x8]
  %v913 = vsel %vm860, %v881, %v912
  %914 = vst [vmem:[%s911] sm:$0x8] %v913
  %915 = vst.msk [vmem:[%s911 + $0x4] sm:$0xf] %vm154, %v891
  %916 = vst.msk [vmem:[%s911 + $0x8] sm:$0xf] %vm154, %v901
  %v917 = vld [vmem:[%s911 + $0xc] sm:$0xf]
  %v918 = vsel %vm867, %v906, %v917
  %919 = vst [vmem:[%s911 + $0xc] sm:$0xf] %v918
  %v920 = vld [vmem:[#allocation2] sm:$0xf]
  %v921 = vld [vmem:[#allocation2 + $0x4] sm:$0xf]
  %v922 = vld [vmem:[#allocation2 + $0x8] sm:$0xf]
  %v923 = vld [vmem:[#allocation2 + $0xc] sm:$0x1]
  %v924 = vld [vmem:[#allocation2] sm:$0xe]
  %v925 = vld [vmem:[#allocation2] sm:$0x8]
  %v926 = vld [vmem:[#allocation2 + $0xc] sm:$0x7]
  %v927 = vld [vmem:[#allocation2 + $0xc] sm:$0xf]
  %v928 = vld [vmem:[#allocation2 + $0x4] sm:$0xc]
  %v929 = vld [vmem:[#allocation2 + $0x10] sm:$0x3]
  %v930 = vld [vmem:[#allocation2 + $0x10] sm:$0x7]
  %v931 = vld [vmem:[#allocation2 + $0x4] sm:$0x8]
  %v935 = vunpack.c.l.b16 %v920
  %v936 = vunpack.c.l.b16 %v921
  %v937 = vunpack.c.l.b16 %v922
  %v938 = vpack.c.b16 %v936, %v935
  %v939 = vpack.c.b16 %v937, %v937
  %v941 = vunpack.c.l.b16 %v923
  %v942 = vpack.c.b16 %v941, %v937
  %v944 = vshrl.u32 %v938, 16
  %v946 = vshll.u32 %v938, 16
  %v948 = vrot.slane %v946, 1
  %v949 = vor.u32 %v944, %v948
  %v951 = vshll.u32 %v942, 16
  %v953 = vrot.slane %v951, 1
  %v954 = vsel %vm189, %v949, %v953
  %v955 = vshrl.u32 %v942, 16
  %v957 = vor.u32 %v955, %v953
  %958 = vrot.lane.b32.xlu0 %v954, 32
  %v959 = vpop.permute.xlu0 %958
  %960 = vrot.lane.b32.xlu0 %v957, 32
  %v961 = vpop.permute.xlu0 %960
  %v963 = vunpack.c.l.b16 %v924
  %v964 = vpack.c.b16 %v936, %v963
  %v965 = vrot.slane %v964, 1
  %v966 = vrot.slane %v942, 1
  %v967 = vsel %vm212, %v965, %v966
  %968 = vrot.lane.b32.xlu0 %v967, 64
  %v969 = vpop.permute.xlu0 %968
  %970 = vrot.lane.b32.xlu0 %v966, 64
  %v971 = vpop.permute.xlu0 %970
  %v974 = vunpack.c.l.b16 %v925
  %v975 = vunpack.c.l.b16 %v926
  %v976 = vpack.c.b16 %v936, %v974
  %v977 = vpack.c.b16 %v975, %v937
  %v978 = vrot.slane %v976, 3
  %v979 = vrot.slane %v977, 3
  %v980 = vsel %vm226, %v978, %v979
  %981 = vrot.lane.b32.xlu0 %v980, 96
  %v982 = vpop.permute.xlu0 %981
  %983 = vrot.lane.b32.xlu0 %v979, 96
  %v984 = vpop.permute.xlu0 %983
  %v986 = vunpack.c.l.b16 %v927
  %v987 = vpack.c.b16 %v986, %v937
  %v989 = vshrl.u32 %v976, 16
  %v991 = vrot.slane %v989, 3
  %v992 = vshll.u32 %v976, 16
  %v994 = vrot.slane %v992, 4
  %v995 = vor.u32 %v991, %v994
  %v997 = vshrl.u32 %v987, 16
  %v999 = vrot.slane %v997, 3
  %v1000 = vshll.u32 %v987, 16
  %v1002 = vrot.slane %v1000, 4
  %v1003 = vor.u32 %v999, %v1002
  %v1004 = vsel %vm237, %v995, %v1003
  %v1005 = vpack.c.b16 %v937, %v936
  %v1006 = vpack.c.b16 %v986, %v986
  %1007 = vrot.lane.b32.xlu0 %v1005, 32
  %v1008 = vpop.permute.xlu0 %1007
  %1009 = vrot.lane.b32.xlu0 %v1006, 32
  %v1010 = vpop.permute.xlu0 %1009
  %v1013 = vunpack.c.l.b16 %v928
  %v1014 = vunpack.c.l.b16 %v929
  %v1015 = vpack.c.b16 %v937, %v1013
  %v1016 = vpack.c.b16 %v1014, %v986
  %v1017 = vrot.slane %v1015, 2
  %v1018 = vrot.slane %v1016, 2
  %v1019 = vsel %vm267, %v1017, %v1018
  %1020 = vrot.lane.b32.xlu0 %v1019, 64
  %v1021 = vpop.permute.xlu0 %1020
  %1022 = vrot.lane.b32.xlu0 %v1018, 64
  %v1023 = vpop.permute.xlu0 %1022
  %v1025 = vunpack.c.l.b16 %v930
  %v1026 = vpack.c.b16 %v1025, %v986
  %v1028 = vshrl.u32 %v1015, 16
  %v1030 = vrot.slane %v1028, 2
  %v1031 = vshll.u32 %v1015, 16
  %v1033 = vrot.slane %v1031, 3
  %v1034 = vor.u32 %v1030, %v1033
  %v1036 = vshrl.u32 %v1026, 16
  %v1038 = vrot.slane %v1036, 2
  %v1039 = vshll.u32 %v1026, 16
  %v1041 = vrot.slane %v1039, 3
  %v1042 = vor.u32 %v1038, %v1041
  %v1043 = vsel %vm278, %v1034, %v1042
  %1044 = vrot.lane.b32.xlu0 %v1043, 96
  %v1045 = vpop.permute.xlu0 %1044
  %1046 = vrot.lane.b32.xlu0 %v1042, 96
  %v1047 = vpop.permute.xlu0 %1046
  %v1049 = vunpack.c.l.b16 %v931
  %v1050 = vpack.c.b16 %v937, %v1049
  %v1051 = vrot.slane %v1050, 3
  %v1052 = vrot.slane %v1026, 3
  %v1053 = vsel %vm226, %v1051, %v1052
  %v1055 = vsel %vm306, %v938, %v959
  %v1058 = vsel %vm306, %v939, %v961
  %v1060 = vsel %vm312, %v1055, %v969
  %v1062 = vsel %vm312, %v1058, %v971
  %v1064 = vsel %vm317, %v1060, %v982
  %v1067 = vsel %vm317, %v1062, %v984
  %v1070 = vsel %vm306, %v1004, %v1008
  %v1073 = vsel %vm306, %v1003, %v1010
  %v1075 = vsel %vm312, %v1070, %v1021
  %v1077 = vsel %vm312, %v1073, %v1023
  %v1079 = vsel %vm317, %v1075, %v1045
  %v1082 = vsel %vm317, %v1077, %v1047
  %v1083 = vld [vmem:[%s911] sm:$0xf]
  %v1084 = vld [vmem:[%s911 + $0x4] sm:$0xf]
  %v1085 = vld [vmem:[%s911 + $0x8] sm:$0xf]
  %v1086 = vld [vmem:[%s911 + $0xc] sm:$0x1]
  %v1087 = vld [vmem:[%s911] sm:$0xe]
  %v1088 = vld [vmem:[%s911] sm:$0x8]
  %v1089 = vld [vmem:[%s911 + $0xc] sm:$0x7]
  %v1090 = vld [vmem:[%s911 + $0xc] sm:$0xf]
  %v1091 = vld [vmem:[%s911 + $0x4] sm:$0xc]
  %v1092 = vld [vmem:[%s911 + $0x10] sm:$0x3]
  %v1093 = vld [vmem:[%s911 + $0x10] sm:$0x7]
  %v1094 = vld [vmem:[%s911 + $0x4] sm:$0x8]
  %v1098 = vunpack.c.l.b16 %v1083
  %v1099 = vunpack.c.l.b16 %v1084
  %v1100 = vunpack.c.l.b16 %v1085
  %v1101 = vpack.c.b16 %v1099, %v1098
  %v1102 = vpack.c.b16 %v1100, %v1100
  %v1104 = vunpack.c.l.b16 %v1086
  %v1105 = vpack.c.b16 %v1104, %v1100
  %v1107 = vshrl.u32 %v1101, 16
  %v1109 = vshll.u32 %v1101, 16
  %v1111 = vrot.slane %v1109, 1
  %v1112 = vor.u32 %v1107, %v1111
  %v1114 = vshll.u32 %v1105, 16
  %v1116 = vrot.slane %v1114, 1
  %v1117 = vsel %vm189, %v1112, %v1116
  %v1118 = vshrl.u32 %v1105, 16
  %v1120 = vor.u32 %v1118, %v1116
  %1121 = vrot.lane.b32.xlu0 %v1117, 32
  %v1122 = vpop.permute.xlu0 %1121
  %1123 = vrot.lane.b32.xlu0 %v1120, 32
  %v1124 = vpop.permute.xlu0 %1123
  %v1126 = vunpack.c.l.b16 %v1087
  %v1127 = vpack.c.b16 %v1099, %v1126
  %v1128 = vrot.slane %v1127, 1
  %v1129 = vrot.slane %v1105, 1
  %v1130 = vsel %vm212, %v1128, %v1129
  %1131 = vrot.lane.b32.xlu0 %v1130, 64
  %v1132 = vpop.permute.xlu0 %1131
  %1133 = vrot.lane.b32.xlu0 %v1129, 64
  %v1134 = vpop.permute.xlu0 %1133
  %v1137 = vunpack.c.l.b16 %v1088
  %v1138 = vunpack.c.l.b16 %v1089
  %v1139 = vpack.c.b16 %v1099, %v1137
  %v1140 = vpack.c.b16 %v1138, %v1100
  %v1141 = vrot.slane %v1139, 3
  %v1142 = vrot.slane %v1140, 3
  %v1143 = vsel %vm226, %v1141, %v1142
  %1144 = vrot.lane.b32.xlu0 %v1143, 96
  %v1145 = vpop.permute.xlu0 %1144
  %1146 = vrot.lane.b32.xlu0 %v1142, 96
  %v1147 = vpop.permute.xlu0 %1146
  %v1149 = vunpack.c.l.b16 %v1090
  %v1150 = vpack.c.b16 %v1149, %v1100
  %v1152 = vshrl.u32 %v1139, 16
  %v1154 = vrot.slane %v1152, 3
  %v1155 = vshll.u32 %v1139, 16
  %v1157 = vrot.slane %v1155, 4
  %v1158 = vor.u32 %v1154, %v1157
  %v1160 = vshrl.u32 %v1150, 16
  %v1162 = vrot.slane %v1160, 3
  %v1163 = vshll.u32 %v1150, 16
  %v1165 = vrot.slane %v1163, 4
  %v1166 = vor.u32 %v1162, %v1165
  %v1167 = vsel %vm237, %v1158, %v1166
  %v1168 = vpack.c.b16 %v1100, %v1099
  %v1169 = vpack.c.b16 %v1149, %v1149
  %1170 = vrot.lane.b32.xlu0 %v1168, 32
  %v1171 = vpop.permute.xlu0 %1170
  %1172 = vrot.lane.b32.xlu0 %v1169, 32
  %v1173 = vpop.permute.xlu0 %1172
  %v1176 = vunpack.c.l.b16 %v1091
  %v1177 = vunpack.c.l.b16 %v1092
  %v1178 = vpack.c.b16 %v1100, %v1176
  %v1179 = vpack.c.b16 %v1177, %v1149
  %v1180 = vrot.slane %v1178, 2
  %v1181 = vrot.slane %v1179, 2
  %v1182 = vsel %vm267, %v1180, %v1181
  %1183 = vrot.lane.b32.xlu0 %v1182, 64
  %v1184 = vpop.permute.xlu0 %1183
  %1185 = vrot.lane.b32.xlu0 %v1181, 64
  %v1186 = vpop.permute.xlu0 %1185
  %v1188 = vunpack.c.l.b16 %v1093
  %v1189 = vpack.c.b16 %v1188, %v1149
  %v1191 = vshrl.u32 %v1178, 16
  %v1193 = vrot.slane %v1191, 2
  %v1194 = vshll.u32 %v1178, 16
  %v1196 = vrot.slane %v1194, 3
  %v1197 = vor.u32 %v1193, %v1196
  %v1199 = vshrl.u32 %v1189, 16
  %v1201 = vrot.slane %v1199, 2
  %v1202 = vshll.u32 %v1189, 16
  %v1204 = vrot.slane %v1202, 3
  %v1205 = vor.u32 %v1201, %v1204
  %v1206 = vsel %vm278, %v1197, %v1205
  %1207 = vrot.lane.b32.xlu0 %v1206, 96
  %v1208 = vpop.permute.xlu0 %1207
  %1209 = vrot.lane.b32.xlu0 %v1205, 96
  %v1210 = vpop.permute.xlu0 %1209
  %v1212 = vunpack.c.l.b16 %v1094
  %v1213 = vpack.c.b16 %v1100, %v1212
  %v1214 = vrot.slane %v1213, 3
  %v1215 = vrot.slane %v1189, 3
  %v1216 = vsel %vm226, %v1214, %v1215
  %v1218 = vsel %vm306, %v1101, %v1122
  %v1221 = vsel %vm306, %v1102, %v1124
  %v1223 = vsel %vm312, %v1218, %v1132
  %v1225 = vsel %vm312, %v1221, %v1134
  %v1227 = vsel %vm317, %v1223, %v1145
  %v1229 = vsel %vm317, %v1225, %v1147
  %v1232 = vsel %vm306, %v1167, %v1171
  %v1235 = vsel %vm306, %v1166, %v1173
  %v1237 = vsel %vm312, %v1232, %v1184
  %v1239 = vsel %vm312, %v1235, %v1186
  %v1241 = vsel %vm317, %v1237, %v1208
  %v1243 = vsel %vm317, %v1239, %v1210
  %v1248 = vrot.slane %v1227, 4
  %v1249 = vrot.slane %v1241, 4
  %v1250 = vrot.slane %v1216, 4
  %v1251 = vrot.slane %v1229, 4
  %v1252 = vsel %vm504, %v1248, %v1251
  %v1253 = vrot.slane %v1243, 4
  %v1254 = vsel %vm504, %v1249, %v1253
  %v1255 = vrot.slane %v1215, 4
  %v1256 = vsel %vm504, %v1250, %v1255
  %v1260 = vsel %vm516, %v1067, %v1248
  %v1263 = vsel %vm516, %v1082, %v1249
  %v1267 = vsel %vm516, %v1052, %v1250
  %v1268 = vld [vmem:[%s3] sm:$0xf]
  %v1269 = vld [vmem:[%s3 + $0x4] sm:$0xf]
  %v1270 = vld [vmem:[%s3 + $0x8] sm:$0xf]
  %v1271 = vld [vmem:[%s3 + $0xc] sm:$0xf]
  %v1272 = vld [vmem:[%s3 + $0x10] sm:$0xf]
  %v1273 = vld [vmem:[%s3 + $0x14] sm:$0xf]
  %v1274 = vld [vmem:[%s3 + $0x18] sm:$0xf]
  %v1275 = vld [vmem:[%s3 + $0x1c] sm:$0xf]
  %v1276 = vld [vmem:[%s3 + $0x20] sm:$0xf]
  %v1277 = vld [vmem:[%s3 + $0x24] sm:$0xf]
  %v1278 = vld [vmem:[%s3 + $0x28] sm:$0xf]
  %v1279 = vld [vmem:[%s3 + $0x2c] sm:$0xf]
  %v1280 = vld [vmem:[%s3 + $0x30] sm:$0xf]
  %v1281 = vld [vmem:[%s3 + $0x34] sm:$0xf]
  %v1282 = vld [vmem:[%s3 + $0x38] sm:$0xf]
  %v1283 = vld [vmem:[%s3 + $0x3c] sm:$0xf]
  %v1284 = vld [vmem:[%s3 + $0x40] sm:$0xf]
  %v1285 = vld [vmem:[%s3 + $0x44] sm:$0xf]
  %v1286 = vld [vmem:[%s3 + $0x48] sm:$0xf]
  %v1287 = vld [vmem:[%s3 + $0x4c] sm:$0xf]
  %v1288 = vld [vmem:[%s3 + $0x50] sm:$0xf]
  %v1289 = vld [vmem:[%s3 + $0x54] sm:$0xf]
  %v1290 = vld [vmem:[%s3 + $0x58] sm:$0xf]
  %v1291 = vld [vmem:[%s3 + $0x5c] sm:$0xf]
  %v1292 = vld [vmem:[%s3 + $0x60] sm:$0xf]
  %v1293 = vld [vmem:[%s3 + $0x64] sm:$0xf]
  %v1294 = vld [vmem:[%s3 + $0x68] sm:$0xf]
  %v1295 = vld [vmem:[%s3 + $0x6c] sm:$0xf]
  %v1296 = vld [vmem:[%s3 + $0x70] sm:$0xf]
  %v1297 = vld [vmem:[%s3 + $0x74] sm:$0xf]
  %v1298 = vld [vmem:[%s3 + $0x78] sm:$0xf]
  %v1299 = vld [vmem:[%s3 + $0x7c] sm:$0xf]
  %v1300 = vld [vmem:[%s3 + $0x80] sm:$0xf]
  %v1301 = vld [vmem:[%s3 + $0x84] sm:$0xf]
  %v1302 = vld [vmem:[%s3 + $0x88] sm:$0xf]
  %v1303 = vld [vmem:[%s3 + $0x8c] sm:$0xf]
  %v1340 = vunpack.c.l.b16 %v1268
  %v1341 = vunpack.c.l.b16 %v1269
  %v1342 = vunpack.c.l.b16 %v1270
  %v1343 = vunpack.c.l.b16 %v1271
  %v1344 = vunpack.c.l.b16 %v1272
  %v1345 = vunpack.c.l.b16 %v1273
  %v1346 = vunpack.c.l.b16 %v1274
  %v1347 = vunpack.c.l.b16 %v1275
  %v1348 = vunpack.c.l.b16 %v1276
  %v1349 = vunpack.c.l.b16 %v1277
  %v1350 = vunpack.c.l.b16 %v1278
  %v1351 = vunpack.c.l.b16 %v1279
  %v1352 = vunpack.c.l.b16 %v1280
  %v1353 = vunpack.c.l.b16 %v1281
  %v1354 = vunpack.c.l.b16 %v1282
  %v1355 = vunpack.c.l.b16 %v1283
  %v1356 = vunpack.c.l.b16 %v1284
  %v1357 = vunpack.c.l.b16 %v1285
  %v1358 = vunpack.c.l.b16 %v1286
  %v1359 = vunpack.c.l.b16 %v1287
  %v1360 = vunpack.c.l.b16 %v1288
  %v1361 = vunpack.c.l.b16 %v1289
  %v1362 = vunpack.c.l.b16 %v1290
  %v1363 = vunpack.c.l.b16 %v1291
  %v1364 = vunpack.c.l.b16 %v1292
  %v1365 = vunpack.c.l.b16 %v1293
  %v1366 = vunpack.c.l.b16 %v1294
  %v1367 = vunpack.c.l.b16 %v1295
  %v1368 = vunpack.c.l.b16 %v1296
  %v1369 = vunpack.c.l.b16 %v1297
  %v1370 = vunpack.c.l.b16 %v1298
  %v1371 = vunpack.c.l.b16 %v1299
  %v1372 = vunpack.c.l.b16 %v1300
  %v1373 = vunpack.c.l.b16 %v1301
  %v1374 = vunpack.c.l.b16 %v1302
  %v1375 = vunpack.c.l.b16 %v1303
  %v1376 = vpack.c.b16 %v1341, %v1340
  %v1377 = vpack.c.b16 %v1343, %v1342
  %v1378 = vpack.c.b16 %v1345, %v1344
  %v1379 = vpack.c.b16 %v1347, %v1346
  %v1380 = vpack.c.b16 %v1349, %v1348
  %v1381 = vpack.c.b16 %v1351, %v1350
  %v1382 = vpack.c.b16 %v1353, %v1352
  %v1383 = vpack.c.b16 %v1355, %v1354
  %v1384 = vpack.c.b16 %v1357, %v1356
  %v1385 = vpack.c.b16 %v1359, %v1358
  %v1386 = vpack.c.b16 %v1361, %v1360
  %v1387 = vpack.c.b16 %v1363, %v1362
  %v1388 = vpack.c.b16 %v1365, %v1364
  %v1389 = vpack.c.b16 %v1367, %v1366
  %v1390 = vpack.c.b16 %v1369, %v1368
  %v1391 = vpack.c.b16 %v1371, %v1370
  %v1392 = vpack.c.b16 %v1373, %v1372
  %v1393 = vpack.c.b16 %v1375, %v1374
  %v1413 = vsel %vm306, %v1053, 0
  %v1415 = vsel %vm306, %v1267, 0
  %v1418 = vsel %vm306, %v1256, 0
  %1420 = vmatprep.subr.bf16.mxu0 0
  %1421 = vmatpush1.bf16.msra.mxu0 %v1376
  %1422 = vmatprep.subr.bf16.mxu0 0
  %1423 = vmatpush1.bf16.msra.mxu0 %v1377
  %1424 = vmatprep.subr.bf16.mxu0 0
  %1425 = vmatpush1.bf16.msra.mxu0 %v1378
  %1426 = vmatprep.subr.bf16.mxu0 0
  %1427 = vmatpush1.bf16.msra.mxu0 %v1379
  %1428 = vmatprep.subr.bf16.mxu0 0
  %1429 = vmatpush1.bf16.msra.mxu0 %v1380
  %1430 = vmatprep.subr.bf16.mxu0 0
  %1431 = vmatpush1.bf16.msra.mxu0 %v1381
  %1432 = vmatprep.subr.bf16.mxu0 0
  %1433 = vmatpush1.bf16.msra.mxu0 %v1382
  %1434 = vmatprep.subr.bf16.mxu0 0
  %1435 = vmatpush1.bf16.msra.mxu0 %v1383
  %1436 = vmatprep.subr.bf16.mxu0 0
  %1437 = vmatpush1.bf16.msra.mxu0 %v1384
  %1438 = vmatprep.subr.bf16.mxu0 0
  %1439 = vmatpush1.bf16.msra.mxu0 %v1385
  %1440 = vmatprep.subr.bf16.mxu0 0
  %1441 = vmatpush1.bf16.msra.mxu0 %v1386
  %1442 = vmatprep.subr.bf16.mxu0 0
  %1443 = vmatpush1.bf16.msra.mxu0 %v1387
  %1444 = vmatprep.subr.bf16.mxu0 0
  %1445 = vmatpush1.bf16.msra.mxu0 %v1388
  %1446 = vmatprep.subr.bf16.mxu0 0
  %1447 = vmatpush1.bf16.msra.mxu0 %v1389
  %1448 = vmatprep.subr.bf16.mxu0 0
  %1449 = vmatpush1.bf16.msra.mxu0 %v1390
  %1450 = vmatprep.subr.bf16.mxu0 0
  %1451 = vmatpush1.bf16.msra.mxu0 %v1391
  %1452 = vmatprep.mubr.bf16.mxu0 %v1079
  %1453 = vmatmul.mubr.bf16.gmra.mrb[0].mxu0 %v1064
  %v1454 = vpop.f32.mrb[0].mxu0
  %v1455 = vadd.f32 0.0, %v1454
  %v1456 = vpop.f32.mrb[0].mxu0
  %v1457 = vpop.f32.mrb[0].mxu0
  %v1458 = vadd.f32 0.0, %v1457
  %v1459 = vpop.f32.mrb[0].mxu0
  %1460 = vmatprep.mubr.bf16.mxu0 %v1263
  %1461 = vmatmul.mubr.bf16.gmra.mrb[0].mxu0 %v1260
  %v1462 = vpop.f32.mrb[0].mxu0
  %v1463 = vadd.f32 0.0, %v1462
  %v1464 = vpop.f32.mrb[0].mxu0
  %v1465 = vpop.f32.mrb[0].mxu0
  %v1466 = vadd.f32 0.0, %v1465
  %v1467 = vpop.f32.mrb[0].mxu0
  %1468 = vmatprep.mubr.bf16.mxu0 %v1254
  %1469 = vmatmul.mubr.bf16.gmra.mrb[0].mxu0 %v1252
  %v1470 = vpop.f32.mrb[0].mxu0
  %v1471 = vadd.f32 0.0, %v1470
  %v1472 = vpop.f32.mrb[0].mxu0
  %v1473 = vpop.f32.mrb[0].mxu0
  %v1474 = vadd.f32 0.0, %v1473
  %v1475 = vpop.f32.mrb[0].mxu0
  %1476 = vdwg.mxu0
  %1477 = vmatprep.subr.bf16.mxu0 0
  %1478 = vmatpush1.bf16.msra.mxu0 %v1392
  %1479 = vmatprep.subr.bf16.mxu0 0
  %1480 = vmatpush1.bf16.msra.mxu0 %v1393
  %1481 = vmatprep.subr.bf16.mxu0 0
  %1482 = vmatpush1.bf16.msra.mxu0 0
  %1483 = vmatprep.subr.bf16.mxu0 0
  %1484 = vmatpush1.bf16.msra.mxu0 0
  %1485 = vmatprep.subr.bf16.mxu0 0
  %1486 = vmatpush1.bf16.msra.mxu0 0
  %1487 = vmatprep.subr.bf16.mxu0 0
  %1488 = vmatpush1.bf16.msra.mxu0 0
  %1489 = vmatprep.subr.bf16.mxu0 0
  %1490 = vmatpush1.bf16.msra.mxu0 0
  %1491 = vmatprep.subr.bf16.mxu0 0
  %1492 = vmatpush1.bf16.msra.mxu0 0
  %1493 = vmatprep.subr.bf16.mxu0 0
  %1494 = vmatpush1.bf16.msra.mxu0 0
  %1495 = vmatprep.subr.bf16.mxu0 0
  %1496 = vmatpush1.bf16.msra.mxu0 0
  %1497 = vmatprep.subr.bf16.mxu0 0
  %1498 = vmatpush1.bf16.msra.mxu0 0
  %1499 = vmatprep.subr.bf16.mxu0 0
  %1500 = vmatpush1.bf16.msra.mxu0 0
  %1501 = vmatprep.subr.bf16.mxu0 0
  %1502 = vmatpush1.bf16.msra.mxu0 0
  %1503 = vmatprep.subr.bf16.mxu0 0
  %1504 = vmatpush1.bf16.msra.mxu0 0
  %1505 = vmatprep.subr.bf16.mxu0 0
  %1506 = vmatpush1.bf16.msra.mxu0 0
  %1507 = vmatprep.subr.bf16.mxu0 0
  %1508 = vmatpush1.bf16.msra.mxu0 0
  %1509 = vmatprep.mubr.bf16.mxu0 0
  %1510 = vmatmul.mubr.bf16.gmra.mrb[0].mxu0 %v1413
  %v1511 = vpop.f32.mrb[0].mxu0
  %v1512 = vadd.f32 %v1455, %v1511
  %v1513 = vpop.f32.mrb[0].mxu0
  %v1514 = vpop.f32.mrb[0].mxu0
  %v1515 = vadd.f32 %v1458, %v1514
  %v1516 = vpop.f32.mrb[0].mxu0
  %1517 = vmatprep.mubr.bf16.mxu0 0
  %1518 = vmatmul.mubr.bf16.gmra.mrb[0].mxu0 %v1415
  %v1519 = vpop.f32.mrb[0].mxu0
  %v1520 = vadd.f32 %v1463, %v1519
  %v1521 = vpop.f32.mrb[0].mxu0
  %v1522 = vpop.f32.mrb[0].mxu0
  %v1523 = vadd.f32 %v1466, %v1522
  %v1524 = vpop.f32.mrb[0].mxu0
  %1525 = vmatprep.mubr.bf16.mxu0 0
  %1526 = vmatmul.mubr.bf16.gmra.mrb[0].mxu0 %v1418
  %v1527 = vpop.f32.mrb[0].mxu0
  %v1528 = vadd.f32 %v1471, %v1527
  %v1529 = vpop.f32.mrb[0].mxu0
  %v1530 = vpop.f32.mrb[0].mxu0
  %v1531 = vadd.f32 %v1474, %v1530
  %v1532 = vpop.f32.mrb[0].mxu0
  %1533 = vdwg.mxu0
  %v1534 = vmul.f32 %v1512, %v148
  %v1535 = vmul.f32 %v1515, %v149
  %v1536 = vmul.f32 %v1520, %v150
  %v1537 = vmul.f32 %v1523, %v151
  %v1538 = vmul.f32 %v1528, %v152
  %v1539 = vmul.f32 %v1531, %v153
  %vm1540 = vcmask 130048
  %v1541 = vsel %vm1540, %v1534, 0.0
  %v1542 = vsel %vm1540, %v1535, 0.0
  %v1543 = vadd.f32 %v1541, %v1542
  %v1544 = vsel %vm1540, %v1536, 0.0
  %v1545 = vadd.f32 %v1543, %v1544
  %v1546 = vsel %vm1540, %v1537, 0.0
  %v1547 = vadd.f32 %v1545, %v1546
  %v1548 = vsel %vm1540, %v1538, 0.0
  %v1549 = vadd.f32 %v1547, %v1548
  %v1550 = vsel %vm1540, %v1539, 0.0
  %v1551 = vadd.f32 %v1549, %v1550
  %v1552 = vrot.slane %v1551, 4
  %v1553 = vadd.f32 %v1551, %v1552
  %v1554 = vrot.slane %v1553, 2
  %v1555 = vadd.f32 %v1553, %v1554
  %v1556 = vrot.slane %v1555, 1
  %v1557 = vadd.f32 %v1555, %v1556
  %v1558 = vrcp.pop 32.0
  %v1559 = vmul.f32 %v1557, %v1558
  %v1560 = vmul.f32 %v1534, %v1512
  %v1561 = vmul.f32 %v1535, %v1515
  %v1562 = vmul.f32 %v1536, %v1520
  %v1563 = vmul.f32 %v1537, %v1523
  %v1564 = vmul.f32 %v1538, %v1528
  %v1565 = vmul.f32 %v1539, %v1531
  %v1566 = vsel %vm1540, %v1560, 0.0
  %v1567 = vsel %vm1540, %v1561, 0.0
  %v1568 = vadd.f32 %v1566, %v1567
  %v1569 = vsel %vm1540, %v1562, 0.0
  %v1570 = vadd.f32 %v1568, %v1569
  %v1571 = vsel %vm1540, %v1563, 0.0
  %v1572 = vadd.f32 %v1570, %v1571
  %v1573 = vsel %vm1540, %v1564, 0.0
  %v1574 = vadd.f32 %v1572, %v1573
  %v1575 = vsel %vm1540, %v1565, 0.0
  %v1576 = vadd.f32 %v1574, %v1575
  %v1577 = vrot.slane %v1576, 4
  %v1578 = vadd.f32 %v1576, %v1577
  %v1579 = vrot.slane %v1578, 2
  %v1580 = vadd.f32 %v1578, %v1579
  %v1581 = vrot.slane %v1580, 1
  %v1582 = vadd.f32 %v1580, %v1581
  %v1583 = vmul.f32 %v1582, %v1558
  %v1584 = vmul.f32 %v1559, %v1559
  %v1585 = vsub.f32 %v1583, %v1584
  %v1586 = vmax.f32 %v1585, 0.0
  %v1587 = vld [vmem:[%s4] sm:$0x1]
  %v1588 = vadd.f32 %v1586, 1e-05
  %v1589 = vrsqrt.pop %v1588
  %v1590 = vmul.f32 %v1587, %v1589
  %v1591 = vld [vmem:[%s5] sm:$0x1]
  %v1592 = vmul.f32 %v1559, %v1590
  %v1593 = vsub.f32 %v1591, %v1592
  %v1595 = vlaneseq
  %v1596 = vshrl.u32 %v1595, 7
  %v1597 = vsub.s32 0, %v1596
  %v1598 = vrot.slane %v1590, %v1597
  %v1600 = vmul.f32 %v1512, %v1598
  %v1601 = vmul.f32 %v1515, %v1598
  %v1602 = vmul.f32 %v1520, %v1598
  %v1603 = vmul.f32 %v1523, %v1598
  %v1604 = vmul.f32 %v1528, %v1598
  %v1605 = vmul.f32 %v1531, %v1598
  %v1607 = vlaneseq
  %v1608 = vshrl.u32 %v1607, 7
  %v1609 = vsub.s32 0, %v1608
  %v1610 = vrot.slane %v1593, %v1609
  %v1612 = vadd.f32 %v1600, %v1610
  %v1613 = vadd.f32 %v1601, %v1610
  %v1614 = vadd.f32 %v1602, %v1610
  %v1615 = vadd.f32 %v1603, %v1610
  %v1616 = vadd.f32 %v1604, %v1610
  %v1617 = vadd.f32 %v1605, %v1610
  %v1618 = vmax.f32 %v1612, 0.0
  %v1619 = vmax.f32 %v1613, 0.0
  %v1620 = vmax.f32 %v1614, 0.0
  %v1621 = vmax.f32 %v1615, 0.0
  %v1622 = vmax.f32 %v1616, 0.0
  %v1623 = vmax.f32 %v1617, 0.0
  %v1624 = vpack.c.bf16 %v1619, %v1618
  %v1625 = vpack.c.bf16 %v1621, %v1620
  %v1626 = vpack.c.bf16 %v1623, %v1622
  %v1627 = vld [vmem:[%s6] sm:$0xf]
  %v1628 = vld [vmem:[%s6 + $0x4] sm:$0xf]
  %v1631 = vunpack.c.l.b16 %v1627
  %v1632 = vunpack.c.l.b16 %v1628
  %v1633 = vpack.c.b16 %v1632, %v1631
  %v1636 = vsel %vm1540, %v1624, 0
  %v1639 = vsel %vm1540, %v1625, 0
  %v1642 = vsel %vm1540, %v1626, 0
  %1644 = vmatprep.subr.bf16.mxu0 0
  %1645 = vmatpush1.bf16.msra.mxu0 %v1633
  %1646 = vmatprep.subr.bf16.mxu0 0
  %1647 = vmatpush1.bf16.msra.mxu0 0
  %1648 = vmatprep.subr.bf16.mxu0 0
  %1649 = vmatpush1.bf16.msra.mxu0 0
  %1650 = vmatprep.subr.bf16.mxu0 0
  %1651 = vmatpush1.bf16.msra.mxu0 0
  %1652 = vmatprep.subr.bf16.mxu0 0
  %1653 = vmatpush1.bf16.msra.mxu0 0
  %1654 = vmatprep.subr.bf16.mxu0 0
  %1655 = vmatpush1.bf16.msra.mxu0 0
  %1656 = vmatprep.subr.bf16.mxu0 0
  %1657 = vmatpush1.bf16.msra.mxu0 0
  %1658 = vmatprep.subr.bf16.mxu0 0
  %1659 = vmatpush1.bf16.msra.mxu0 0
  %1660 = vmatprep.subr.bf16.mxu0 0
  %1661 = vmatpush1.bf16.msra.mxu0 0
  %1662 = vmatprep.subr.bf16.mxu0 0
  %1663 = vmatpush1.bf16.msra.mxu0 0
  %1664 = vmatprep.subr.bf16.mxu0 0
  %1665 = vmatpush1.bf16.msra.mxu0 0
  %1666 = vmatprep.subr.bf16.mxu0 0
  %1667 = vmatpush1.bf16.msra.mxu0 0
  %1668 = vmatprep.subr.bf16.mxu0 0
  %1669 = vmatpush1.bf16.msra.mxu0 0
  %1670 = vmatprep.subr.bf16.mxu0 0
  %1671 = vmatpush1.bf16.msra.mxu0 0
  %1672 = vmatprep.subr.bf16.mxu0 0
  %1673 = vmatpush1.bf16.msra.mxu0 0
  %1674 = vmatprep.subr.bf16.mxu0 0
  %1675 = vmatpush1.bf16.msra.mxu0 0
  %1676 = vmatprep.mubr.bf16.mxu0 0
  %1677 = vmatmul.mubr.bf16.gmra.mrb[0].mxu0 %v1636
  %v1678 = vpop.f32.mrb[0].mxu0
  %v1679 = vadd.f32 0.0, %v1678
  %v1680 = vpop.f32.mrb[0].mxu0
  %v1681 = vpop.f32.mrb[0].mxu0
  %v1682 = vadd.f32 0.0, %v1681
  %v1683 = vpop.f32.mrb[0].mxu0
  %1684 = vmatprep.mubr.bf16.mxu0 0
  %1685 = vmatmul.mubr.bf16.gmra.mrb[0].mxu0 %v1639
  %v1686 = vpop.f32.mrb[0].mxu0
  %v1687 = vadd.f32 0.0, %v1686
  %v1688 = vpop.f32.mrb[0].mxu0
  %v1689 = vpop.f32.mrb[0].mxu0
  %v1690 = vadd.f32 0.0, %v1689
  %v1691 = vpop.f32.mrb[0].mxu0
  %1692 = vmatprep.mubr.bf16.mxu0 0
  %1693 = vmatmul.mubr.bf16.gmra.mrb[0].mxu0 %v1642
  %v1694 = vpop.f32.mrb[0].mxu0
  %v1695 = vadd.f32 0.0, %v1694
  %v1696 = vpop.f32.mrb[0].mxu0
  %v1697 = vpop.f32.mrb[0].mxu0
  %v1698 = vadd.f32 0.0, %v1697
  %v1699 = vpop.f32.mrb[0].mxu0
  %1700 = vdwg.mxu0
  %v1701 = vmul.f32 %v1679, %v148
  %v1702 = vmul.f32 %v1682, %v149
  %v1703 = vmul.f32 %v1687, %v150
  %v1704 = vmul.f32 %v1690, %v151
  %v1705 = vmul.f32 %v1695, %v152
  %v1706 = vmul.f32 %v1698, %v153
  %v1707 = vsel %vm306, %v1701, 0.0
  %v1708 = vsel %vm306, %v1702, 0.0
  %v1709 = vadd.f32 %v1707, %v1708
  %v1710 = vsel %vm306, %v1703, 0.0
  %v1711 = vadd.f32 %v1709, %v1710
  %v1712 = vsel %vm306, %v1704, 0.0
  %v1713 = vadd.f32 %v1711, %v1712
  %v1714 = vsel %vm306, %v1705, 0.0
  %v1715 = vadd.f32 %v1713, %v1714
  %v1716 = vsel %vm306, %v1706, 0.0
  %v1717 = vadd.f32 %v1715, %v1716
  %v1718 = vrot.slane %v1717, 4
  %v1719 = vadd.f32 %v1717, %v1718
  %v1720 = vrot.slane %v1719, 2
  %v1721 = vadd.f32 %v1719, %v1720
  %v1722 = vrot.slane %v1721, 1
  %v1723 = vadd.f32 %v1721, %v1722
  %v1724 = vmul.f32 %v1723, %v1558
  %v1725 = vmul.f32 %v1701, %v1679
  %v1726 = vmul.f32 %v1702, %v1682
  %v1727 = vmul.f32 %v1703, %v1687
  %v1728 = vmul.f32 %v1704, %v1690
  %v1729 = vmul.f32 %v1705, %v1695
  %v1730 = vmul.f32 %v1706, %v1698
  %v1731 = vsel %vm306, %v1725, 0.0
  %v1732 = vsel %vm306, %v1726, 0.0
  %v1733 = vadd.f32 %v1731, %v1732
  %v1734 = vsel %vm306, %v1727, 0.0
  %v1735 = vadd.f32 %v1733, %v1734
  %v1736 = vsel %vm306, %v1728, 0.0
  %v1737 = vadd.f32 %v1735, %v1736
  %v1738 = vsel %vm306, %v1729, 0.0
  %v1739 = vadd.f32 %v1737, %v1738
  %v1740 = vsel %vm306, %v1730, 0.0
  %v1741 = vadd.f32 %v1739, %v1740
  %v1742 = vrot.slane %v1741, 4
  %v1743 = vadd.f32 %v1741, %v1742
  %v1744 = vrot.slane %v1743, 2
  %v1745 = vadd.f32 %v1743, %v1744
  %v1746 = vrot.slane %v1745, 1
  %v1747 = vadd.f32 %v1745, %v1746
  %v1748 = vmul.f32 %v1747, %v1558
  %v1749 = vmul.f32 %v1724, %v1724
  %v1750 = vsub.f32 %v1748, %v1749
  %v1751 = vmax.f32 %v1750, 0.0
  %v1752 = vld [vmem:[%s7] sm:$0x1]
  %v1753 = vadd.f32 %v1751, 1e-05
  %v1754 = vrsqrt.pop %v1753
  %v1755 = vmul.f32 %v1752, %v1754
  %v1756 = vld [vmem:[%s8] sm:$0x1]
  %v1757 = vmul.f32 %v1724, %v1755
  %v1758 = vsub.f32 %v1756, %v1757
  %v1760 = vlaneseq
  %v1761 = vshrl.u32 %v1760, 7
  %v1762 = vsub.s32 0, %v1761
  %v1763 = vrot.slane %v1755, %v1762
  %v1765 = vmul.f32 %v1679, %v1763
  %v1766 = vmul.f32 %v1682, %v1763
  %v1767 = vmul.f32 %v1687, %v1763
  %v1768 = vmul.f32 %v1690, %v1763
  %v1769 = vmul.f32 %v1695, %v1763
  %v1770 = vmul.f32 %v1698, %v1763
  %v1772 = vlaneseq
  %v1773 = vshrl.u32 %v1772, 7
  %v1774 = vsub.s32 0, %v1773
  %v1775 = vrot.slane %v1758, %v1774
  %v1777 = vadd.f32 %v1765, %v1775
  %v1778 = vadd.f32 %v1766, %v1775
  %v1779 = vadd.f32 %v1767, %v1775
  %v1780 = vadd.f32 %v1768, %v1775
  %v1781 = vadd.f32 %v1769, %v1775
  %v1782 = vadd.f32 %v1770, %v1775
  %v1783 = vadd.f32 %v1777, %v799
  %v1784 = vadd.f32 %v1778, %v800
  %v1785 = vadd.f32 %v1779, %v801
  %v1786 = vadd.f32 %v1780, %v802
  %v1787 = vadd.f32 %v1781, %v803
  %v1788 = vadd.f32 %v1782, %v804
  %v1789 = vmax.f32 %v1783, 0.0
  %v1790 = vmax.f32 %v1784, 0.0
  %v1791 = vmax.f32 %v1785, 0.0
  %v1792 = vmax.f32 %v1786, 0.0
  %v1793 = vmax.f32 %v1787, 0.0
  %v1794 = vmax.f32 %v1788, 0.0
  %v1795 = vmul.f32 %v1789, %v148
  %v1796 = vmul.f32 %v1790, %v149
  %v1797 = vmul.f32 %v1791, %v150
  %v1798 = vmul.f32 %v1792, %v151
  %v1799 = vmul.f32 %v1793, %v152
  %v1800 = vmul.f32 %v1794, %v153
  %v1801 = vpack.c.bf16 %v1796, %v1795
  %v1802 = vpack.c.bf16 %v1798, %v1797
  %v1803 = vpack.c.bf16 %v1800, %v1799
  %v1806 = vunpack.c.l.b16 %v1801
  %v1807 = vunpack.c.h.b16 %v1801
  %v1808 = vunpack.c.l.b16 %v1802
  %v1809 = vpack.c.b16 %v1806, %v1806
  %v1810 = vpack.c.b16 %v1807, %v1807
  %v1811 = vpack.c.b16 %v1808, %v1808
  %v1813 = vshll.u32 %v1809, 16
  %v1815 = vrot.slane %v1813, 5
  %v1816 = vshrl.u32 %v1809, 16
  %v1818 = vrot.slane %v1816, 4
  %v1819 = vor.u32 %v1818, %v1815
  %v1820 = vrot.slane %v1819, 4
  %v1822 = vshll.u32 %v1810, 16
  %v1824 = vrot.slane %v1822, 5
  %v1825 = vsel %vm824, %v1820, %v1824
  %v1826 = vshrl.u32 %v1810, 16
  %v1828 = vrot.slane %v1826, 4
  %v1829 = vor.u32 %v1828, %v1824
  %v1830 = vrot.slane %v1829, 4
  %v1832 = vshll.u32 %v1811, 16
  %v1834 = vrot.slane %v1832, 5
  %v1835 = vsel %vm824, %v1830, %v1834
  %v1836 = vshrl.u32 %v1811, 16
  %v1838 = vrot.slane %v1836, 4
  %v1839 = vor.u32 %v1838, %v1834
  %v1840 = vrot.slane %v1839, 4
  %v1845 = vsel %vm860, %v1815, %v925
  %1846 = vst [vmem:[#allocation2] sm:$0x8] %v1845
  %1847 = vst.msk [vmem:[#allocation2 + $0x4] sm:$0xf] %vm154, %v1825
  %1848 = vst.msk [vmem:[#allocation2 + $0x8] sm:$0xf] %vm154, %v1835
  %v1849 = vld [vmem:[#allocation2 + $0xc] sm:$0xf]
  %v1850 = vsel %vm867, %v1840, %v1849
  %1851 = vst [vmem:[#allocation2 + $0xc] sm:$0xf] %v1850
  %v1853 = vunpack.c.h.b16 %v1802
  %v1854 = vunpack.c.l.b16 %v1803
  %v1855 = vunpack.c.h.b16 %v1803
  %v1856 = vpack.c.b16 %v1853, %v1853
  %v1857 = vpack.c.b16 %v1854, %v1854
  %v1858 = vpack.c.b16 %v1855, %v1855
  %v1860 = vshll.u32 %v1856, 16
  %v1862 = vrot.slane %v1860, 5
  %v1863 = vshrl.u32 %v1856, 16
  %v1865 = vrot.slane %v1863, 4
  %v1866 = vor.u32 %v1865, %v1862
  %v1867 = vrot.slane %v1866, 4
  %v1869 = vshll.u32 %v1857, 16
  %v1871 = vrot.slane %v1869, 5
  %v1872 = vsel %vm824, %v1867, %v1871
  %v1873 = vshrl.u32 %v1857, 16
  %v1875 = vrot.slane %v1873, 4
  %v1876 = vor.u32 %v1875, %v1871
  %v1877 = vrot.slane %v1876, 4
  %v1879 = vshll.u32 %v1858, 16
  %v1881 = vrot.slane %v1879, 5
  %v1882 = vsel %vm824, %v1877, %v1881
  %v1883 = vshrl.u32 %v1858, 16
  %v1885 = vrot.slane %v1883, 4
  %v1886 = vor.u32 %v1885, %v1881
  %v1887 = vrot.slane %v1886, 4
  %v1892 = vld [vmem:[%s911] sm:$0x8]
  %v1893 = vsel %vm860, %v1862, %v1892
  %1894 = vst [vmem:[%s911] sm:$0x8] %v1893
  %1895 = vst.msk [vmem:[%s911 + $0x4] sm:$0xf] %vm154, %v1872
  %1896 = vst.msk [vmem:[%s911 + $0x8] sm:$0xf] %vm154, %v1882
  %v1897 = vld [vmem:[%s911 + $0xc] sm:$0xf]
  %v1898 = vsel %vm867, %v1887, %v1897
  %1899 = vst [vmem:[%s911 + $0xc] sm:$0xf] %v1898
  %v1900 = vld [vmem:[#allocation2] sm:$0xf]
  %v1901 = vld [vmem:[#allocation2 + $0x4] sm:$0xf]
  %v1902 = vld [vmem:[#allocation2 + $0x8] sm:$0xf]
  %v1903 = vld [vmem:[#allocation2 + $0xc] sm:$0x1]
  %v1904 = vld [vmem:[#allocation2] sm:$0xe]
  %v1905 = vld [vmem:[#allocation2] sm:$0x8]
  %v1906 = vld [vmem:[#allocation2 + $0xc] sm:$0x7]
  %v1907 = vld [vmem:[#allocation2 + $0xc] sm:$0xf]
  %v1908 = vld [vmem:[#allocation2 + $0x4] sm:$0xc]
  %v1909 = vld [vmem:[#allocation2 + $0x10] sm:$0x3]
  %v1910 = vld [vmem:[#allocation2 + $0x10] sm:$0x7]
  %v1911 = vld [vmem:[#allocation2 + $0x4] sm:$0x8]
  %v1915 = vunpack.c.l.b16 %v1900
  %v1916 = vunpack.c.l.b16 %v1901
  %v1917 = vunpack.c.l.b16 %v1902
  %v1918 = vpack.c.b16 %v1916, %v1915
  %v1919 = vpack.c.b16 %v1917, %v1917
  %v1921 = vunpack.c.l.b16 %v1903
  %v1922 = vpack.c.b16 %v1921, %v1917
  %v1924 = vshrl.u32 %v1918, 16
  %v1926 = vshll.u32 %v1918, 16
  %v1928 = vrot.slane %v1926, 1
  %v1929 = vor.u32 %v1924, %v1928
  %v1931 = vshll.u32 %v1922, 16
  %v1933 = vrot.slane %v1931, 1
  %v1934 = vsel %vm189, %v1929, %v1933
  %v1935 = vshrl.u32 %v1922, 16
  %v1937 = vor.u32 %v1935, %v1933
  %1938 = vrot.lane.b32.xlu0 %v1934, 32
  %v1939 = vpop.permute.xlu0 %1938
  %1940 = vrot.lane.b32.xlu0 %v1937, 32
  %v1941 = vpop.permute.xlu0 %1940
  %v1943 = vunpack.c.l.b16 %v1904
  %v1944 = vpack.c.b16 %v1916, %v1943
  %v1945 = vrot.slane %v1944, 1
  %v1946 = vrot.slane %v1922, 1
  %v1947 = vsel %vm212, %v1945, %v1946
  %1948 = vrot.lane.b32.xlu0 %v1947, 64
  %v1949 = vpop.permute.xlu0 %1948
  %1950 = vrot.lane.b32.xlu0 %v1946, 64
  %v1951 = vpop.permute.xlu0 %1950
  %v1954 = vunpack.c.l.b16 %v1905
  %v1955 = vunpack.c.l.b16 %v1906
  %v1956 = vpack.c.b16 %v1916, %v1954
  %v1957 = vpack.c.b16 %v1955, %v1917
  %v1958 = vrot.slane %v1956, 3
  %v1959 = vrot.slane %v1957, 3
  %v1960 = vsel %vm226, %v1958, %v1959
  %1961 = vrot.lane.b32.xlu0 %v1960, 96
  %v1962 = vpop.permute.xlu0 %1961
  %1963 = vrot.lane.b32.xlu0 %v1959, 96
  %v1964 = vpop.permute.xlu0 %1963
  %v1966 = vunpack.c.l.b16 %v1907
  %v1967 = vpack.c.b16 %v1966, %v1917
  %v1969 = vshrl.u32 %v1956, 16
  %v1971 = vrot.slane %v1969, 3
  %v1972 = vshll.u32 %v1956, 16
  %v1974 = vrot.slane %v1972, 4
  %v1975 = vor.u32 %v1971, %v1974
  %v1977 = vshrl.u32 %v1967, 16
  %v1979 = vrot.slane %v1977, 3
  %v1980 = vshll.u32 %v1967, 16
  %v1982 = vrot.slane %v1980, 4
  %v1983 = vor.u32 %v1979, %v1982
  %v1984 = vsel %vm237, %v1975, %v1983
  %v1985 = vpack.c.b16 %v1917, %v1916
  %v1986 = vpack.c.b16 %v1966, %v1966
  %1987 = vrot.lane.b32.xlu0 %v1985, 32
  %v1988 = vpop.permute.xlu0 %1987
  %1989 = vrot.lane.b32.xlu0 %v1986, 32
  %v1990 = vpop.permute.xlu0 %1989
  %v1993 = vunpack.c.l.b16 %v1908
  %v1994 = vunpack.c.l.b16 %v1909
  %v1995 = vpack.c.b16 %v1917, %v1993
  %v1996 = vpack.c.b16 %v1994, %v1966
  %v1997 = vrot.slane %v1995, 2
  %v1998 = vrot.slane %v1996, 2
  %v1999 = vsel %vm267, %v1997, %v1998
  %2000 = vrot.lane.b32.xlu0 %v1999, 64
  %v2001 = vpop.permute.xlu0 %2000
  %2002 = vrot.lane.b32.xlu0 %v1998, 64
  %v2003 = vpop.permute.xlu0 %2002
  %v2005 = vunpack.c.l.b16 %v1910
  %v2006 = vpack.c.b16 %v2005, %v1966
  %v2008 = vshrl.u32 %v1995, 16
  %v2010 = vrot.slane %v2008, 2
  %v2011 = vshll.u32 %v1995, 16
  %v2013 = vrot.slane %v2011, 3
  %v2014 = vor.u32 %v2010, %v2013
  %v2016 = vshrl.u32 %v2006, 16
  %v2018 = vrot.slane %v2016, 2
  %v2019 = vshll.u32 %v2006, 16
  %v2021 = vrot.slane %v2019, 3
  %v2022 = vor.u32 %v2018, %v2021
  %v2023 = vsel %vm278, %v2014, %v2022
  %2024 = vrot.lane.b32.xlu0 %v2023, 96
  %v2025 = vpop.permute.xlu0 %2024
  %2026 = vrot.lane.b32.xlu0 %v2022, 96
  %v2027 = vpop.permute.xlu0 %2026
  %v2029 = vunpack.c.l.b16 %v1911
  %v2030 = vpack.c.b16 %v1917, %v2029
  %v2031 = vrot.slane %v2030, 3
  %v2032 = vrot.slane %v2006, 3
  %v2033 = vsel %vm226, %v2031, %v2032
  %v2035 = vsel %vm306, %v1918, %v1939
  %v2038 = vsel %vm306, %v1919, %v1941
  %v2040 = vsel %vm312, %v2035, %v1949
  %v2042 = vsel %vm312, %v2038, %v1951
  %v2044 = vsel %vm317, %v2040, %v1962
  %v2047 = vsel %vm317, %v2042, %v1964
  %v2050 = vsel %vm306, %v1984, %v1988
  %v2053 = vsel %vm306, %v1983, %v1990
  %v2055 = vsel %vm312, %v2050, %v2001
  %v2057 = vsel %vm312, %v2053, %v2003
  %v2059 = vsel %vm317, %v2055, %v2025
  %v2062 = vsel %vm317, %v2057, %v2027
  %v2063 = vld [vmem:[%s911] sm:$0xf]
  %v2064 = vld [vmem:[%s911 + $0x4] sm:$0xf]
  %v2065 = vld [vmem:[%s911 + $0x8] sm:$0xf]
  %v2066 = vld [vmem:[%s911 + $0xc] sm:$0x1]
  %v2067 = vld [vmem:[%s911] sm:$0xe]
  %v2068 = vld [vmem:[%s911] sm:$0x8]
  %v2069 = vld [vmem:[%s911 + $0xc] sm:$0x7]
  %v2070 = vld [vmem:[%s911 + $0xc] sm:$0xf]
  %v2071 = vld [vmem:[%s911 + $0x4] sm:$0xc]
  %v2072 = vld [vmem:[%s911 + $0x10] sm:$0x3]
  %v2073 = vld [vmem:[%s911 + $0x10] sm:$0x7]
  %v2074 = vld [vmem:[%s911 + $0x4] sm:$0x8]
  %v2078 = vunpack.c.l.b16 %v2063
  %v2079 = vunpack.c.l.b16 %v2064
  %v2080 = vunpack.c.l.b16 %v2065
  %v2081 = vpack.c.b16 %v2079, %v2078
  %v2082 = vpack.c.b16 %v2080, %v2080
  %v2084 = vunpack.c.l.b16 %v2066
  %v2085 = vpack.c.b16 %v2084, %v2080
  %v2087 = vshrl.u32 %v2081, 16
  %v2089 = vshll.u32 %v2081, 16
  %v2091 = vrot.slane %v2089, 1
  %v2092 = vor.u32 %v2087, %v2091
  %v2094 = vshll.u32 %v2085, 16
  %v2096 = vrot.slane %v2094, 1
  %v2097 = vsel %vm189, %v2092, %v2096
  %v2098 = vshrl.u32 %v2085, 16
  %v2100 = vor.u32 %v2098, %v2096
  %2101 = vrot.lane.b32.xlu0 %v2097, 32
  %v2102 = vpop.permute.xlu0 %2101
  %2103 = vrot.lane.b32.xlu0 %v2100, 32
  %v2104 = vpop.permute.xlu0 %2103
  %v2106 = vunpack.c.l.b16 %v2067
  %v2107 = vpack.c.b16 %v2079, %v2106
  %v2108 = vrot.slane %v2107, 1
  %v2109 = vrot.slane %v2085, 1
  %v2110 = vsel %vm212, %v2108, %v2109
  %2111 = vrot.lane.b32.xlu0 %v2110, 64
  %v2112 = vpop.permute.xlu0 %2111
  %2113 = vrot.lane.b32.xlu0 %v2109, 64
  %v2114 = vpop.permute.xlu0 %2113
  %v2117 = vunpack.c.l.b16 %v2068
  %v2118 = vunpack.c.l.b16 %v2069
  %v2119 = vpack.c.b16 %v2079, %v2117
  %v2120 = vpack.c.b16 %v2118, %v2080
  %v2121 = vrot.slane %v2119, 3
  %v2122 = vrot.slane %v2120, 3
  %v2123 = vsel %vm226, %v2121, %v2122
  %2124 = vrot.lane.b32.xlu0 %v2123, 96
  %v2125 = vpop.permute.xlu0 %2124
  %2126 = vrot.lane.b32.xlu0 %v2122, 96
  %v2127 = vpop.permute.xlu0 %2126
  %v2129 = vunpack.c.l.b16 %v2070
  %v2130 = vpack.c.b16 %v2129, %v2080
  %v2132 = vshrl.u32 %v2119, 16
  %v2134 = vrot.slane %v2132, 3
  %v2135 = vshll.u32 %v2119, 16
  %v2137 = vrot.slane %v2135, 4
  %v2138 = vor.u32 %v2134, %v2137
  %v2140 = vshrl.u32 %v2130, 16
  %v2142 = vrot.slane %v2140, 3
  %v2143 = vshll.u32 %v2130, 16
  %v2145 = vrot.slane %v2143, 4
  %v2146 = vor.u32 %v2142, %v2145
  %v2147 = vsel %vm237, %v2138, %v2146
  %v2148 = vpack.c.b16 %v2080, %v2079
  %v2149 = vpack.c.b16 %v2129, %v2129
  %2150 = vrot.lane.b32.xlu0 %v2148, 32
  %v2151 = vpop.permute.xlu0 %2150
  %2152 = vrot.lane.b32.xlu0 %v2149, 32
  %v2153 = vpop.permute.xlu0 %2152
  %v2156 = vunpack.c.l.b16 %v2071
  %v2157 = vunpack.c.l.b16 %v2072
  %v2158 = vpack.c.b16 %v2080, %v2156
  %v2159 = vpack.c.b16 %v2157, %v2129
  %v2160 = vrot.slane %v2158, 2
  %v2161 = vrot.slane %v2159, 2
  %v2162 = vsel %vm267, %v2160, %v2161
  %2163 = vrot.lane.b32.xlu0 %v2162, 64
  %v2164 = vpop.permute.xlu0 %2163
  %2165 = vrot.lane.b32.xlu0 %v2161, 64
  %v2166 = vpop.permute.xlu0 %2165
  %v2168 = vunpack.c.l.b16 %v2073
  %v2169 = vpack.c.b16 %v2168, %v2129
  %v2171 = vshrl.u32 %v2158, 16
  %v2173 = vrot.slane %v2171, 2
  %v2174 = vshll.u32 %v2158, 16
  %v2176 = vrot.slane %v2174, 3
  %v2177 = vor.u32 %v2173, %v2176
  %v2179 = vshrl.u32 %v2169, 16
  %v2181 = vrot.slane %v2179, 2
  %v2182 = vshll.u32 %v2169, 16
  %v2184 = vrot.slane %v2182, 3
  %v2185 = vor.u32 %v2181, %v2184
  %v2186 = vsel %vm278, %v2177, %v2185
  %2187 = vrot.lane.b32.xlu0 %v2186, 96
  %v2188 = vpop.permute.xlu0 %2187
  %2189 = vrot.lane.b32.xlu0 %v2185, 96
  %v2190 = vpop.permute.xlu0 %2189
  %v2192 = vunpack.c.l.b16 %v2074
  %v2193 = vpack.c.b16 %v2080, %v2192
  %v2194 = vrot.slane %v2193, 3
  %v2195 = vrot.slane %v2169, 3
  %v2196 = vsel %vm226, %v2194, %v2195
  %v2198 = vsel %vm306, %v2081, %v2102
  %v2201 = vsel %vm306, %v2082, %v2104
  %v2203 = vsel %vm312, %v2198, %v2112
  %v2205 = vsel %vm312, %v2201, %v2114
  %v2207 = vsel %vm317, %v2203, %v2125
  %v2209 = vsel %vm317, %v2205, %v2127
  %v2212 = vsel %vm306, %v2147, %v2151
  %v2215 = vsel %vm306, %v2146, %v2153
  %v2217 = vsel %vm312, %v2212, %v2164
  %v2219 = vsel %vm312, %v2215, %v2166
  %v2221 = vsel %vm317, %v2217, %v2188
  %v2223 = vsel %vm317, %v2219, %v2190
  %v2228 = vrot.slane %v2207, 4
  %v2229 = vrot.slane %v2221, 4
  %v2230 = vrot.slane %v2196, 4
  %v2231 = vrot.slane %v2209, 4
  %v2232 = vsel %vm504, %v2228, %v2231
  %v2233 = vrot.slane %v2223, 4
  %v2234 = vsel %vm504, %v2229, %v2233
  %v2235 = vrot.slane %v2195, 4
  %v2236 = vsel %vm504, %v2230, %v2235
  %v2240 = vsel %vm516, %v2047, %v2228
  %v2243 = vsel %vm516, %v2062, %v2229
  %v2247 = vsel %vm516, %v2032, %v2230
  %s2248 = scalar_lea.vmem %s3, 144
  %v2249 = vld [vmem:[%s2248] sm:$0xf]
  %v2250 = vld [vmem:[%s2248 + $0x4] sm:$0xf]
  %v2251 = vld [vmem:[%s2248 + $0x8] sm:$0xf]
  %v2252 = vld [vmem:[%s2248 + $0xc] sm:$0xf]
  %v2253 = vld [vmem:[%s2248 + $0x10] sm:$0xf]
  %v2254 = vld [vmem:[%s2248 + $0x14] sm:$0xf]
  %v2255 = vld [vmem:[%s2248 + $0x18] sm:$0xf]
  %v2256 = vld [vmem:[%s2248 + $0x1c] sm:$0xf]
  %v2257 = vld [vmem:[%s2248 + $0x20] sm:$0xf]
  %v2258 = vld [vmem:[%s2248 + $0x24] sm:$0xf]
  %v2259 = vld [vmem:[%s2248 + $0x28] sm:$0xf]
  %v2260 = vld [vmem:[%s2248 + $0x2c] sm:$0xf]
  %v2261 = vld [vmem:[%s2248 + $0x30] sm:$0xf]
  %v2262 = vld [vmem:[%s2248 + $0x34] sm:$0xf]
  %v2263 = vld [vmem:[%s2248 + $0x38] sm:$0xf]
  %v2264 = vld [vmem:[%s2248 + $0x3c] sm:$0xf]
  %v2265 = vld [vmem:[%s2248 + $0x40] sm:$0xf]
  %v2266 = vld [vmem:[%s2248 + $0x44] sm:$0xf]
  %v2267 = vld [vmem:[%s2248 + $0x48] sm:$0xf]
  %v2268 = vld [vmem:[%s2248 + $0x4c] sm:$0xf]
  %v2269 = vld [vmem:[%s2248 + $0x50] sm:$0xf]
  %v2270 = vld [vmem:[%s2248 + $0x54] sm:$0xf]
  %v2271 = vld [vmem:[%s2248 + $0x58] sm:$0xf]
  %v2272 = vld [vmem:[%s2248 + $0x5c] sm:$0xf]
  %v2273 = vld [vmem:[%s2248 + $0x60] sm:$0xf]
  %v2274 = vld [vmem:[%s2248 + $0x64] sm:$0xf]
  %v2275 = vld [vmem:[%s2248 + $0x68] sm:$0xf]
  %v2276 = vld [vmem:[%s2248 + $0x6c] sm:$0xf]
  %v2277 = vld [vmem:[%s2248 + $0x70] sm:$0xf]
  %v2278 = vld [vmem:[%s2248 + $0x74] sm:$0xf]
  %v2279 = vld [vmem:[%s2248 + $0x78] sm:$0xf]
  %v2280 = vld [vmem:[%s2248 + $0x7c] sm:$0xf]
  %v2281 = vld [vmem:[%s2248 + $0x80] sm:$0xf]
  %v2282 = vld [vmem:[%s2248 + $0x84] sm:$0xf]
  %v2283 = vld [vmem:[%s2248 + $0x88] sm:$0xf]
  %v2284 = vld [vmem:[%s2248 + $0x8c] sm:$0xf]
  %v2321 = vunpack.c.l.b16 %v2249
  %v2322 = vunpack.c.l.b16 %v2250
  %v2323 = vunpack.c.l.b16 %v2251
  %v2324 = vunpack.c.l.b16 %v2252
  %v2325 = vunpack.c.l.b16 %v2253
  %v2326 = vunpack.c.l.b16 %v2254
  %v2327 = vunpack.c.l.b16 %v2255
  %v2328 = vunpack.c.l.b16 %v2256
  %v2329 = vunpack.c.l.b16 %v2257
  %v2330 = vunpack.c.l.b16 %v2258
  %v2331 = vunpack.c.l.b16 %v2259
  %v2332 = vunpack.c.l.b16 %v2260
  %v2333 = vunpack.c.l.b16 %v2261
  %v2334 = vunpack.c.l.b16 %v2262
  %v2335 = vunpack.c.l.b16 %v2263
  %v2336 = vunpack.c.l.b16 %v2264
  %v2337 = vunpack.c.l.b16 %v2265
  %v2338 = vunpack.c.l.b16 %v2266
  %v2339 = vunpack.c.l.b16 %v2267
  %v2340 = vunpack.c.l.b16 %v2268
  %v2341 = vunpack.c.l.b16 %v2269
  %v2342 = vunpack.c.l.b16 %v2270
  %v2343 = vunpack.c.l.b16 %v2271
  %v2344 = vunpack.c.l.b16 %v2272
  %v2345 = vunpack.c.l.b16 %v2273
  %v2346 = vunpack.c.l.b16 %v2274
  %v2347 = vunpack.c.l.b16 %v2275
  %v2348 = vunpack.c.l.b16 %v2276
  %v2349 = vunpack.c.l.b16 %v2277
  %v2350 = vunpack.c.l.b16 %v2278
  %v2351 = vunpack.c.l.b16 %v2279
  %v2352 = vunpack.c.l.b16 %v2280
  %v2353 = vunpack.c.l.b16 %v2281
  %v2354 = vunpack.c.l.b16 %v2282
  %v2355 = vunpack.c.l.b16 %v2283
  %v2356 = vunpack.c.l.b16 %v2284
  %v2357 = vpack.c.b16 %v2322, %v2321
  %v2358 = vpack.c.b16 %v2324, %v2323
  %v2359 = vpack.c.b16 %v2326, %v2325
  %v2360 = vpack.c.b16 %v2328, %v2327
  %v2361 = vpack.c.b16 %v2330, %v2329
  %v2362 = vpack.c.b16 %v2332, %v2331
  %v2363 = vpack.c.b16 %v2334, %v2333
  %v2364 = vpack.c.b16 %v2336, %v2335
  %v2365 = vpack.c.b16 %v2338, %v2337
  %v2366 = vpack.c.b16 %v2340, %v2339
  %v2367 = vpack.c.b16 %v2342, %v2341
  %v2368 = vpack.c.b16 %v2344, %v2343
  %v2369 = vpack.c.b16 %v2346, %v2345
  %v2370 = vpack.c.b16 %v2348, %v2347
  %v2371 = vpack.c.b16 %v2350, %v2349
  %v2372 = vpack.c.b16 %v2352, %v2351
  %v2373 = vpack.c.b16 %v2354, %v2353
  %v2374 = vpack.c.b16 %v2356, %v2355
  %v2394 = vsel %vm306, %v2033, 0
  %v2396 = vsel %vm306, %v2247, 0
  %v2399 = vsel %vm306, %v2236, 0
  %2401 = vmatprep.subr.bf16.mxu0 0
  %2402 = vmatpush1.bf16.msra.mxu0 %v2357
  %2403 = vmatprep.subr.bf16.mxu0 0
  %2404 = vmatpush1.bf16.msra.mxu0 %v2358
  %2405 = vmatprep.subr.bf16.mxu0 0
  %2406 = vmatpush1.bf16.msra.mxu0 %v2359
  %2407 = vmatprep.subr.bf16.mxu0 0
  %2408 = vmatpush1.bf16.msra.mxu0 %v2360
  %2409 = vmatprep.subr.bf16.mxu0 0
  %2410 = vmatpush1.bf16.msra.mxu0 %v2361
  %2411 = vmatprep.subr.bf16.mxu0 0
  %2412 = vmatpush1.bf16.msra.mxu0 %v2362
  %2413 = vmatprep.subr.bf16.mxu0 0
  %2414 = vmatpush1.bf16.msra.mxu0 %v2363
  %2415 = vmatprep.subr.bf16.mxu0 0
  %2416 = vmatpush1.bf16.msra.mxu0 %v2364
  %2417 = vmatprep.subr.bf16.mxu0 0
  %2418 = vmatpush1.bf16.msra.mxu0 %v2365
  %2419 = vmatprep.subr.bf16.mxu0 0
  %2420 = vmatpush1.bf16.msra.mxu0 %v2366
  %2421 = vmatprep.subr.bf16.mxu0 0
  %2422 = vmatpush1.bf16.msra.mxu0 %v2367
  %2423 = vmatprep.subr.bf16.mxu0 0
  %2424 = vmatpush1.bf16.msra.mxu0 %v2368
  %2425 = vmatprep.subr.bf16.mxu0 0
  %2426 = vmatpush1.bf16.msra.mxu0 %v2369
  %2427 = vmatprep.subr.bf16.mxu0 0
  %2428 = vmatpush1.bf16.msra.mxu0 %v2370
  %2429 = vmatprep.subr.bf16.mxu0 0
  %2430 = vmatpush1.bf16.msra.mxu0 %v2371
  %2431 = vmatprep.subr.bf16.mxu0 0
  %2432 = vmatpush1.bf16.msra.mxu0 %v2372
  %2433 = vmatprep.mubr.bf16.mxu0 %v2059
  %2434 = vmatmul.mubr.bf16.gmra.mrb[0].mxu0 %v2044
  %v2435 = vpop.f32.mrb[0].mxu0
  %v2436 = vadd.f32 0.0, %v2435
  %v2437 = vpop.f32.mrb[0].mxu0
  %v2438 = vpop.f32.mrb[0].mxu0
  %v2439 = vadd.f32 0.0, %v2438
  %v2440 = vpop.f32.mrb[0].mxu0
  %2441 = vmatprep.mubr.bf16.mxu0 %v2243
  %2442 = vmatmul.mubr.bf16.gmra.mrb[0].mxu0 %v2240
  %v2443 = vpop.f32.mrb[0].mxu0
  %v2444 = vadd.f32 0.0, %v2443
  %v2445 = vpop.f32.mrb[0].mxu0
  %v2446 = vpop.f32.mrb[0].mxu0
  %v2447 = vadd.f32 0.0, %v2446
  %v2448 = vpop.f32.mrb[0].mxu0
  %2449 = vmatprep.mubr.bf16.mxu0 %v2234
  %2450 = vmatmul.mubr.bf16.gmra.mrb[0].mxu0 %v2232
  %v2451 = vpop.f32.mrb[0].mxu0
  %v2452 = vadd.f32 0.0, %v2451
  %v2453 = vpop.f32.mrb[0].mxu0
  %v2454 = vpop.f32.mrb[0].mxu0
  %v2455 = vadd.f32 0.0, %v2454
  %v2456 = vpop.f32.mrb[0].mxu0
  %2457 = vdwg.mxu0
  %2458 = vmatprep.subr.bf16.mxu0 0
  %2459 = vmatpush1.bf16.msra.mxu0 %v2373
  %2460 = vmatprep.subr.bf16.mxu0 0
  %2461 = vmatpush1.bf16.msra.mxu0 %v2374
  %2462 = vmatprep.subr.bf16.mxu0 0
  %2463 = vmatpush1.bf16.msra.mxu0 0
  %2464 = vmatprep.subr.bf16.mxu0 0
  %2465 = vmatpush1.bf16.msra.mxu0 0
  %2466 = vmatprep.subr.bf16.mxu0 0
  %2467 = vmatpush1.bf16.msra.mxu0 0
  %2468 = vmatprep.subr.bf16.mxu0 0
  %2469 = vmatpush1.bf16.msra.mxu0 0
  %2470 = vmatprep.subr.bf16.mxu0 0
  %2471 = vmatpush1.bf16.msra.mxu0 0
  %2472 = vmatprep.subr.bf16.mxu0 0
  %2473 = vmatpush1.bf16.msra.mxu0 0
  %2474 = vmatprep.subr.bf16.mxu0 0
  %2475 = vmatpush1.bf16.msra.mxu0 0
  %2476 = vmatprep.subr.bf16.mxu0 0
  %2477 = vmatpush1.bf16.msra.mxu0 0
  %2478 = vmatprep.subr.bf16.mxu0 0
  %2479 = vmatpush1.bf16.msra.mxu0 0
  %2480 = vmatprep.subr.bf16.mxu0 0
  %2481 = vmatpush1.bf16.msra.mxu0 0
  %2482 = vmatprep.subr.bf16.mxu0 0
  %2483 = vmatpush1.bf16.msra.mxu0 0
  %2484 = vmatprep.subr.bf16.mxu0 0
  %2485 = vmatpush1.bf16.msra.mxu0 0
  %2486 = vmatprep.subr.bf16.mxu0 0
  %2487 = vmatpush1.bf16.msra.mxu0 0
  %2488 = vmatprep.subr.bf16.mxu0 0
  %2489 = vmatpush1.bf16.msra.mxu0 0
  %2490 = vmatprep.mubr.bf16.mxu0 0
  %2491 = vmatmul.mubr.bf16.gmra.mrb[0].mxu0 %v2394
  %v2492 = vpop.f32.mrb[0].mxu0
  %v2493 = vadd.f32 %v2436, %v2492
  %v2494 = vpop.f32.mrb[0].mxu0
  %v2495 = vpop.f32.mrb[0].mxu0
  %v2496 = vadd.f32 %v2439, %v2495
  %v2497 = vpop.f32.mrb[0].mxu0
  %2498 = vmatprep.mubr.bf16.mxu0 0
  %2499 = vmatmul.mubr.bf16.gmra.mrb[0].mxu0 %v2396
  %v2500 = vpop.f32.mrb[0].mxu0
  %v2501 = vadd.f32 %v2444, %v2500
  %v2502 = vpop.f32.mrb[0].mxu0
  %v2503 = vpop.f32.mrb[0].mxu0
  %v2504 = vadd.f32 %v2447, %v2503
  %v2505 = vpop.f32.mrb[0].mxu0
  %2506 = vmatprep.mubr.bf16.mxu0 0
  %2507 = vmatmul.mubr.bf16.gmra.mrb[0].mxu0 %v2399
  %v2508 = vpop.f32.mrb[0].mxu0
  %v2509 = vadd.f32 %v2452, %v2508
  %v2510 = vpop.f32.mrb[0].mxu0
  %v2511 = vpop.f32.mrb[0].mxu0
  %v2512 = vadd.f32 %v2455, %v2511
  %v2513 = vpop.f32.mrb[0].mxu0
  %2514 = vdwg.mxu0
  %v2515 = vmul.f32 %v2493, %v148
  %v2516 = vmul.f32 %v2496, %v149
  %v2517 = vmul.f32 %v2501, %v150
  %v2518 = vmul.f32 %v2504, %v151
  %v2519 = vmul.f32 %v2509, %v152
  %v2520 = vmul.f32 %v2512, %v153
  %v2521 = vsel %vm1540, %v2515, 0.0
  %v2522 = vsel %vm1540, %v2516, 0.0
  %v2523 = vadd.f32 %v2521, %v2522
  %v2524 = vsel %vm1540, %v2517, 0.0
  %v2525 = vadd.f32 %v2523, %v2524
  %v2526 = vsel %vm1540, %v2518, 0.0
  %v2527 = vadd.f32 %v2525, %v2526
  %v2528 = vsel %vm1540, %v2519, 0.0
  %v2529 = vadd.f32 %v2527, %v2528
  %v2530 = vsel %vm1540, %v2520, 0.0
  %v2531 = vadd.f32 %v2529, %v2530
  %v2532 = vrot.slane %v2531, 4
  %v2533 = vadd.f32 %v2531, %v2532
  %v2534 = vrot.slane %v2533, 2
  %v2535 = vadd.f32 %v2533, %v2534
  %v2536 = vrot.slane %v2535, 1
  %v2537 = vadd.f32 %v2535, %v2536
  %v2538 = vmul.f32 %v2537, %v1558
  %v2539 = vmul.f32 %v2515, %v2493
  %v2540 = vmul.f32 %v2516, %v2496
  %v2541 = vmul.f32 %v2517, %v2501
  %v2542 = vmul.f32 %v2518, %v2504
  %v2543 = vmul.f32 %v2519, %v2509
  %v2544 = vmul.f32 %v2520, %v2512
  %v2545 = vsel %vm1540, %v2539, 0.0
  %v2546 = vsel %vm1540, %v2540, 0.0
  %v2547 = vadd.f32 %v2545, %v2546
  %v2548 = vsel %vm1540, %v2541, 0.0
  %v2549 = vadd.f32 %v2547, %v2548
  %v2550 = vsel %vm1540, %v2542, 0.0
  %v2551 = vadd.f32 %v2549, %v2550
  %v2552 = vsel %vm1540, %v2543, 0.0
  %v2553 = vadd.f32 %v2551, %v2552
  %v2554 = vsel %vm1540, %v2544, 0.0
  %v2555 = vadd.f32 %v2553, %v2554
  %v2556 = vrot.slane %v2555, 4
  %v2557 = vadd.f32 %v2555, %v2556
  %v2558 = vrot.slane %v2557, 2
  %v2559 = vadd.f32 %v2557, %v2558
  %v2560 = vrot.slane %v2559, 1
  %v2561 = vadd.f32 %v2559, %v2560
  %v2562 = vmul.f32 %v2561, %v1558
  %v2563 = vmul.f32 %v2538, %v2538
  %v2564 = vsub.f32 %v2562, %v2563
  %v2565 = vmax.f32 %v2564, 0.0
  %s2566 = scalar_lea.vmem %s4, 1
  %v2567 = vld [vmem:[%s2566] sm:$0x1]
  %v2568 = vadd.f32 %v2565, 1e-05
  %v2569 = vrsqrt.pop %v2568
  %v2570 = vmul.f32 %v2567, %v2569
  %s2571 = scalar_lea.vmem %s5, 1
  %v2572 = vld [vmem:[%s2571] sm:$0x1]
  %v2573 = vmul.f32 %v2538, %v2570
  %v2574 = vsub.f32 %v2572, %v2573
  %v2576 = vlaneseq
  %v2577 = vshrl.u32 %v2576, 7
  %v2578 = vsub.s32 0, %v2577
  %v2579 = vrot.slane %v2570, %v2578
  %v2581 = vmul.f32 %v2493, %v2579
  %v2582 = vmul.f32 %v2496, %v2579
  %v2583 = vmul.f32 %v2501, %v2579
  %v2584 = vmul.f32 %v2504, %v2579
  %v2585 = vmul.f32 %v2509, %v2579
  %v2586 = vmul.f32 %v2512, %v2579
  %v2588 = vlaneseq
  %v2589 = vshrl.u32 %v2588, 7
  %v2590 = vsub.s32 0, %v2589
  %v2591 = vrot.slane %v2574, %v2590
  %v2593 = vadd.f32 %v2581, %v2591
  %v2594 = vadd.f32 %v2582, %v2591
  %v2595 = vadd.f32 %v2583, %v2591
  %v2596 = vadd.f32 %v2584, %v2591
  %v2597 = vadd.f32 %v2585, %v2591
  %v2598 = vadd.f32 %v2586, %v2591
  %v2599 = vmax.f32 %v2593, 0.0
  %v2600 = vmax.f32 %v2594, 0.0
  %v2601 = vmax.f32 %v2595, 0.0
  %v2602 = vmax.f32 %v2596, 0.0
  %v2603 = vmax.f32 %v2597, 0.0
  %v2604 = vmax.f32 %v2598, 0.0
  %v2605 = vpack.c.bf16 %v2600, %v2599
  %v2606 = vpack.c.bf16 %v2602, %v2601
  %v2607 = vpack.c.bf16 %v2604, %v2603
  %s2608 = scalar_lea.vmem %s6, 8
  %v2609 = vld [vmem:[%s2608] sm:$0xf]
  %v2610 = vld [vmem:[%s2608 + $0x4] sm:$0xf]
  %v2613 = vunpack.c.l.b16 %v2609
  %v2614 = vunpack.c.l.b16 %v2610
  %v2615 = vpack.c.b16 %v2614, %v2613
  %v2618 = vsel %vm1540, %v2605, 0
  %v2621 = vsel %vm1540, %v2606, 0
  %v2624 = vsel %vm1540, %v2607, 0
  %2626 = vmatprep.subr.bf16.mxu0 0
  %2627 = vmatpush1.bf16.msra.mxu0 %v2615
  %2628 = vmatprep.subr.bf16.mxu0 0
  %2629 = vmatpush1.bf16.msra.mxu0 0
  %2630 = vmatprep.subr.bf16.mxu0 0
  %2631 = vmatpush1.bf16.msra.mxu0 0
  %2632 = vmatprep.subr.bf16.mxu0 0
  %2633 = vmatpush1.bf16.msra.mxu0 0
  %2634 = vmatprep.subr.bf16.mxu0 0
  %2635 = vmatpush1.bf16.msra.mxu0 0
  %2636 = vmatprep.subr.bf16.mxu0 0
  %2637 = vmatpush1.bf16.msra.mxu0 0
  %2638 = vmatprep.subr.bf16.mxu0 0
  %2639 = vmatpush1.bf16.msra.mxu0 0
  %2640 = vmatprep.subr.bf16.mxu0 0
  %2641 = vmatpush1.bf16.msra.mxu0 0
  %2642 = vmatprep.subr.bf16.mxu0 0
  %2643 = vmatpush1.bf16.msra.mxu0 0
  %2644 = vmatprep.subr.bf16.mxu0 0
  %2645 = vmatpush1.bf16.msra.mxu0 0
  %2646 = vmatprep.subr.bf16.mxu0 0
  %2647 = vmatpush1.bf16.msra.mxu0 0
  %2648 = vmatprep.subr.bf16.mxu0 0
  %2649 = vmatpush1.bf16.msra.mxu0 0
  %2650 = vmatprep.subr.bf16.mxu0 0
  %2651 = vmatpush1.bf16.msra.mxu0 0
  %2652 = vmatprep.subr.bf16.mxu0 0
  %2653 = vmatpush1.bf16.msra.mxu0 0
  %2654 = vmatprep.subr.bf16.mxu0 0
  %2655 = vmatpush1.bf16.msra.mxu0 0
  %2656 = vmatprep.subr.bf16.mxu0 0
  %2657 = vmatpush1.bf16.msra.mxu0 0
  %2658 = vmatprep.mubr.bf16.mxu0 0
  %2659 = vmatmul.mubr.bf16.gmra.mrb[0].mxu0 %v2618
  %v2660 = vpop.f32.mrb[0].mxu0
  %v2661 = vadd.f32 0.0, %v2660
  %v2662 = vpop.f32.mrb[0].mxu0
  %v2663 = vpop.f32.mrb[0].mxu0
  %v2664 = vadd.f32 0.0, %v2663
  %v2665 = vpop.f32.mrb[0].mxu0
  %2666 = vmatprep.mubr.bf16.mxu0 0
  %2667 = vmatmul.mubr.bf16.gmra.mrb[0].mxu0 %v2621
  %v2668 = vpop.f32.mrb[0].mxu0
  %v2669 = vadd.f32 0.0, %v2668
  %v2670 = vpop.f32.mrb[0].mxu0
  %v2671 = vpop.f32.mrb[0].mxu0
  %v2672 = vadd.f32 0.0, %v2671
  %v2673 = vpop.f32.mrb[0].mxu0
  %2674 = vmatprep.mubr.bf16.mxu0 0
  %2675 = vmatmul.mubr.bf16.gmra.mrb[0].mxu0 %v2624
  %v2676 = vpop.f32.mrb[0].mxu0
  %v2677 = vadd.f32 0.0, %v2676
  %v2678 = vpop.f32.mrb[0].mxu0
  %v2679 = vpop.f32.mrb[0].mxu0
  %v2680 = vadd.f32 0.0, %v2679
  %v2681 = vpop.f32.mrb[0].mxu0
  %2682 = vdwg.mxu0
  %v2683 = vmul.f32 %v2661, %v148
  %v2684 = vmul.f32 %v2664, %v149
  %v2685 = vmul.f32 %v2669, %v150
  %v2686 = vmul.f32 %v2672, %v151
  %v2687 = vmul.f32 %v2677, %v152
  %v2688 = vmul.f32 %v2680, %v153
  %v2689 = vsel %vm306, %v2683, 0.0
  %v2690 = vsel %vm306, %v2684, 0.0
  %v2691 = vadd.f32 %v2689, %v2690
  %v2692 = vsel %vm306, %v2685, 0.0
  %v2693 = vadd.f32 %v2691, %v2692
  %v2694 = vsel %vm306, %v2686, 0.0
  %v2695 = vadd.f32 %v2693, %v2694
  %v2696 = vsel %vm306, %v2687, 0.0
  %v2697 = vadd.f32 %v2695, %v2696
  %v2698 = vsel %vm306, %v2688, 0.0
  %v2699 = vadd.f32 %v2697, %v2698
  %v2700 = vrot.slane %v2699, 4
  %v2701 = vadd.f32 %v2699, %v2700
  %v2702 = vrot.slane %v2701, 2
  %v2703 = vadd.f32 %v2701, %v2702
  %v2704 = vrot.slane %v2703, 1
  %v2705 = vadd.f32 %v2703, %v2704
  %v2706 = vmul.f32 %v2705, %v1558
  %v2707 = vmul.f32 %v2683, %v2661
  %v2708 = vmul.f32 %v2684, %v2664
  %v2709 = vmul.f32 %v2685, %v2669
  %v2710 = vmul.f32 %v2686, %v2672
  %v2711 = vmul.f32 %v2687, %v2677
  %v2712 = vmul.f32 %v2688, %v2680
  %v2713 = vsel %vm306, %v2707, 0.0
  %v2714 = vsel %vm306, %v2708, 0.0
  %v2715 = vadd.f32 %v2713, %v2714
  %v2716 = vsel %vm306, %v2709, 0.0
  %v2717 = vadd.f32 %v2715, %v2716
  %v2718 = vsel %vm306, %v2710, 0.0
  %v2719 = vadd.f32 %v2717, %v2718
  %v2720 = vsel %vm306, %v2711, 0.0
  %v2721 = vadd.f32 %v2719, %v2720
  %v2722 = vsel %vm306, %v2712, 0.0
  %v2723 = vadd.f32 %v2721, %v2722
  %v2724 = vrot.slane %v2723, 4
  %v2725 = vadd.f32 %v2723, %v2724
  %v2726 = vrot.slane %v2725, 2
  %v2727 = vadd.f32 %v2725, %v2726
  %v2728 = vrot.slane %v2727, 1
  %v2729 = vadd.f32 %v2727, %v2728
  %v2730 = vmul.f32 %v2729, %v1558
  %v2731 = vmul.f32 %v2706, %v2706
  %v2732 = vsub.f32 %v2730, %v2731
  %v2733 = vmax.f32 %v2732, 0.0
  %s2734 = scalar_lea.vmem %s7, 1
  %v2735 = vld [vmem:[%s2734] sm:$0x1]
  %v2736 = vadd.f32 %v2733, 1e-05
  %v2737 = vrsqrt.pop %v2736
  %v2738 = vmul.f32 %v2735, %v2737
  %s2739 = scalar_lea.vmem %s8, 1
  %v2740 = vld [vmem:[%s2739] sm:$0x1]
  %v2741 = vmul.f32 %v2706, %v2738
  %v2742 = vsub.f32 %v2740, %v2741
  %v2744 = vlaneseq
  %v2745 = vshrl.u32 %v2744, 7
  %v2746 = vsub.s32 0, %v2745
  %v2747 = vrot.slane %v2738, %v2746
  %v2749 = vmul.f32 %v2661, %v2747
  %v2750 = vmul.f32 %v2664, %v2747
  %v2751 = vmul.f32 %v2669, %v2747
  %v2752 = vmul.f32 %v2672, %v2747
  %v2753 = vmul.f32 %v2677, %v2747
  %v2754 = vmul.f32 %v2680, %v2747
  %v2756 = vlaneseq
  %v2757 = vshrl.u32 %v2756, 7
  %v2758 = vsub.s32 0, %v2757
  %v2759 = vrot.slane %v2742, %v2758
  %v2761 = vadd.f32 %v2749, %v2759
  %v2762 = vadd.f32 %v2750, %v2759
  %v2763 = vadd.f32 %v2751, %v2759
  %v2764 = vadd.f32 %v2752, %v2759
  %v2765 = vadd.f32 %v2753, %v2759
  %v2766 = vadd.f32 %v2754, %v2759
  %v2767 = vadd.f32 %v2761, %v1789
  %v2768 = vadd.f32 %v2762, %v1790
  %v2769 = vadd.f32 %v2763, %v1791
  %v2770 = vadd.f32 %v2764, %v1792
  %v2771 = vadd.f32 %v2765, %v1793
  %v2772 = vadd.f32 %v2766, %v1794
  %v2773 = vmax.f32 %v2767, 0.0
  %v2774 = vmax.f32 %v2768, 0.0
  %v2775 = vmax.f32 %v2769, 0.0
  %v2776 = vmax.f32 %v2770, 0.0
  %v2777 = vmax.f32 %v2771, 0.0
  %v2778 = vmax.f32 %v2772, 0.0
  %2779 = vst.msk [vmem:[%s9] sm:$0xff] %vm306, %v2773
  %2780 = vst.msk [vmem:[%s9 + $0x8] sm:$0xff] %vm306, %v2774
  %2781 = vst.msk [vmem:[%s9 + $0x10] sm:$0xff] %vm306, %v2775
  %2782 = vst.msk [vmem:[%s9 + $0x18] sm:$0xff] %vm306, %v2776
  %2783 = vst.msk [vmem:[%s9 + $0x20] sm:$0xff] %vm306, %v2777
  %2784 = vst.msk [vmem:[%s9 + $0x28] sm:$0xff] %vm306, %v2778
  // Predicated region
  $region38: #{res_encoder_forward.5} parent=0 // pred_check
    _
  $region39: #{res_encoder_forward.5} parent=0 // pred_check_branch
    %2786 = sbr.rel (0) target = $region41
  $region40: #{res_encoder_forward.5} parent=0 // pred_region
    _
  $region41: #{res_encoder_forward.5} parent=0 // pred_fallthru
    _
  // Predicated region
  $region42: #{res_encoder_forward.5} parent=0 // pred_check
    _
  $region43: #{res_encoder_forward.5} parent=0 // pred_check_branch
    %2788 = sbr.rel (0) target = $region45
  $region44: #{res_encoder_forward.5} parent=0 // pred_region
    _
  $region45: #{res_encoder_forward.5} parent=0 // pred_fallthru
    _

</llo_original>
